<compile_context>
chip_gen: v5e
topology: v5e:2x2
jax: 0.10.0
libtpu: 0.0.40
codegen_flags: <defaults>
</compile_context>

<pallas_src>
import math

import jax
import jax.numpy as jnp
from jax.experimental import pallas as pl
from jax.experimental.pallas import tpu as pltpu

NEG_SLOPE = 0.2            # nn.LeakyReLU(0.2)
BN_EPS = 1e-5              # nn.BatchNorm2d default eps
LN_EPS = 1e-5              # nn.LayerNorm default eps
MXU_DTYPE = jnp.bfloat16   # MXU operand / intermediate storage dtype (accum stays f32)


# ---------------------------------------------------------------------------
# PositionalEncoding2D buffer (deterministic, computed once per shape)
# ---------------------------------------------------------------------------
def _positional_encoding(d_model, height, width):
    y_pos = jnp.arange(height, dtype=jnp.float32)[:, None] * jnp.ones((1, width), jnp.float32)
    x_pos = jnp.ones((height, 1), jnp.float32) * jnp.arange(width, dtype=jnp.float32)[None, :]
    div = jnp.exp(jnp.arange(0, d_model // 2, 2, dtype=jnp.float32)
                  * -(jnp.log(10000.0) / (d_model // 2)))            # (d_model//4,)
    sy = jnp.sin(y_pos[None] * div[:, None, None])
    cy = jnp.cos(y_pos[None] * div[:, None, None])
    sx = jnp.sin(x_pos[None] * div[:, None, None])
    cx = jnp.cos(x_pos[None] * div[:, None, None])
    # channel c = 4*i + j  ->  pe[j::4][i]   (matches the PyTorch buffer layout)
    return jnp.stack([sy, cy, sx, cx], axis=1).reshape(d_model, height, width)


def _row_tile(rows):
    """Largest multiple of 8 (<=1024) that divides `rows` -> big, bounded row tiles."""
    for t in (1024, 512, 256, 128, 64, 32, 16, 8):
        if t <= rows and rows % t == 0:
            return t
    return rows


# ---------------------------------------------------------------------------
# Kernel 1: per-block partial BN1 statistics of LeakyReLU(x + pe)
#           (partial outputs -> no accumulator axis, grid stays "parallel")
# ---------------------------------------------------------------------------
def _stats_pe_kernel(x_ref, pe_ref, sum_ref, sq_ref):
    y = x_ref[...] + pe_ref[...]
    y = jnp.where(y >= 0, y, NEG_SLOPE * y)                  # LeakyReLU(0.2), f32 VPU
    sum_ref[...] = jnp.sum(y, axis=0, keepdims=True)[None]
    sq_ref[...] = jnp.sum(y * y, axis=0, keepdims=True)[None]


# ---------------------------------------------------------------------------
# Kernel 2: pos-enc add + LeakyReLU + folded (BN1 affine ∘ conv1x1 ∘ in-proj) matmul
#           -> three contiguous lane-dense bf16 outputs q, k, v
# ---------------------------------------------------------------------------
def _qkv_kernel(x_ref, pe_ref, w_ref, b_ref, q_ref, k_ref, v_ref):
    C = q_ref.shape[-1]
    y = x_ref[...] + pe_ref[...]
    y = jnp.where(y >= 0, y, NEG_SLOPE * y)
    # BN1 affine, conv1 (1x1), MHA in-projection and q-scaling are all folded into
    # w_ref/b_ref in the wrapper -> a single (TM,C)@(C,3C) bf16 matmul, f32 accum.
    qkv = jnp.dot(y.astype(MXU_DTYPE), w_ref[...],
                  preferred_element_type=jnp.float32) + b_ref[...]
    q_ref[...] = qkv[:, :C].astype(q_ref.dtype)              # column slices are
    k_ref[...] = qkv[:, C:2 * C].astype(k_ref.dtype)         # 128-lane aligned
    v_ref[...] = qkv[:, 2 * C:].astype(v_ref.dtype)


# ---------------------------------------------------------------------------
# Kernel 3: per-batch multi-head attention + out-projection + fused BN2 partial stats
# ---------------------------------------------------------------------------
def _make_attn_kernel(nhead, head_dim):
    def kernel(q_ref, k_ref, v_ref, wo_ref, bo_ref, proj_ref, sum_ref, sq_ref):
        q = q_ref[...]                                        # (L, C) bf16, pre-scaled
        k = k_ref[...]
        v = v_ref[...]
        ctx = []
        for h in range(nhead):                                # static unroll over heads
            sl = slice(h * head_dim, (h + 1) * head_dim)
            # scores (L, L): bf16 operands, f32 accumulation
            s = jax.lax.dot_general(q[:, sl], k[:, sl], (((1,), (1,)), ((), ())),
                                    preferred_element_type=jnp.float32)
            m = jnp.max(s, axis=-1, keepdims=True)
            e = jnp.exp(s - m)                                # f32 EUP
            r = jnp.sum(e, axis=-1, keepdims=True)
            c = jnp.dot(e.astype(MXU_DTYPE), v[:, sl],
                        preferred_element_type=jnp.float32)
            # deferred softmax normalization: scale the small (L, head_dim) context
            ctx.append(c * pl.reciprocal(r, approx=True))
        ctx = jnp.concatenate(ctx, axis=-1)                   # (L, C) lane-dense
        proj = jnp.dot(ctx.astype(MXU_DTYPE), wo_ref[...],
                       preferred_element_type=jnp.float32) + bo_ref[...]
        proj_ref[...] = proj.astype(proj_ref.dtype)           # bf16 store (half bytes)
        # fused per-batch BN2 partial statistics of LeakyReLU(proj)
        y = jnp.where(proj >= 0, proj, NEG_SLOPE * proj)
        sum_ref[...] = jnp.sum(y, axis=0, keepdims=True)[None]
        sq_ref[...] = jnp.sum(y * y, axis=0, keepdims=True)[None]

    return kernel


# ---------------------------------------------------------------------------
# Kernel 4: LeakyReLU + folded (BN2 affine ∘ conv1x1) + residual add + LayerNorm(C)
# ---------------------------------------------------------------------------
def _final_kernel(p_ref, res_ref, w2_ref, b2_ref, g_ref, beta_ref, o_ref):
    p = p_ref[...].astype(jnp.float32)
    y = jnp.where(p >= 0, p, NEG_SLOPE * p)
    o2 = jnp.dot(y.astype(MXU_DTYPE), w2_ref[...],
                 preferred_element_type=jnp.float32) + b2_ref[...]
    r = res_ref[...] + o2                                     # residual add
    mu = jnp.mean(r, axis=-1, keepdims=True)                  # LayerNorm over channels
    d = r - mu
    var = jnp.mean(d * d, axis=-1, keepdims=True)
    o_ref[...] = d * jax.lax.rsqrt(var + LN_EPS) * g_ref[...] + beta_ref[...]


# ---------------------------------------------------------------------------
# Wrapper
# ---------------------------------------------------------------------------
def encoder_forward(x_nchw, params, *, nhead):
    B, C, H, W = x_nchw.shape
    L = H * W
    M = B * L
    head_dim = C // nhead
    assert C % 4 == 0 and C % nhead == 0
    assert L % 8 == 0, "H*W must be a multiple of 8 for the row tiling"

    f32 = jnp.float32
    x_flat = jnp.transpose(x_nchw, (0, 2, 3, 1)).reshape(M, C).astype(f32)
    pe_flat = jnp.transpose(_positional_encoding(C, H, W), (1, 2, 0)).reshape(L, C)

    tm = _row_tile(L)                 # row tile (multiple of 8, divides L, up to 1024)
    nblk = M // tm
    pe_blocks = L // tm
    pe_map = (lambda i: (i % pe_blocks, 0)) if pe_blocks > 1 else (lambda i: (0, 0))

    row = lambda v: v.reshape(1, -1).astype(f32)
    const = lambda shape: pl.BlockSpec(shape, lambda i: (0, 0))
    # vmem_limit raised so v5e's 16 MiB default scoped VMEM does not cap the row tile
    cparams = pltpu.CompilerParams(dimension_semantics=("parallel",),
                                   vmem_limit_bytes=32 * 1024 * 1024)

    # ---- BN1 batch statistics of LeakyReLU(x + pe) (training-mode BN) ----
    psum1, psq1 = pl.pallas_call(
        _stats_pe_kernel,
        out_shape=(jax.ShapeDtypeStruct((nblk, 1, C), f32),
                   jax.ShapeDtypeStruct((nblk, 1, C), f32)),
        grid=(nblk,),
        in_specs=[pl.BlockSpec((tm, C), lambda i: (i, 0)),
                  pl.BlockSpec((tm, C), pe_map)],
        out_specs=(pl.BlockSpec((1, 1, C), lambda i: (i, 0, 0)),
                   pl.BlockSpec((1, 1, C), lambda i: (i, 0, 0))),
        compiler_params=cparams,
    )(x_flat, pe_flat)
    mean1 = jnp.sum(psum1, axis=0)[0] / M
    var1 = jnp.maximum(jnp.sum(psq1, axis=0)[0] / M - mean1 * mean1, 0.0)

    # ---- fold BN1 affine + conv1(1x1) + q-scaling into the in-projection (f32) ----
    inv_sqrt_d = 1.0 / math.sqrt(head_dim)
    scale1 = params["bn1_gamma"] * jax.lax.rsqrt(var1 + BN_EPS)
    shift1 = params["bn1_beta"] - mean1 * scale1
    w_fold = params["w1"] @ params["w_qkv"]                          # (C, 3C)
    b_fold = params["b1"] @ params["w_qkv"] + params["b_qkv"]        # (3C,)
    qcol = jnp.concatenate([jnp.full((C,), inv_sqrt_d, f32), jnp.ones((2 * C,), f32)])
    w_in = ((scale1[:, None] * w_fold) * qcol[None, :]).astype(MXU_DTYPE)
    b_in = ((shift1 @ w_fold + b_fold) * qcol).reshape(1, -1).astype(f32)

    # ---- fused: pos-enc + LeakyReLU + folded matmul -> contiguous bf16 q, k, v ----
    q, k, v = pl.pallas_call(
        _qkv_kernel,
        out_shape=(jax.ShapeDtypeStruct((M, C), MXU_DTYPE),) * 3,
        grid=(nblk,),
        in_specs=[pl.BlockSpec((tm, C), lambda i: (i, 0)),
                  pl.BlockSpec((tm, C), pe_map),
                  const((C, 3 * C)), const((1, 3 * C))],
        out_specs=(pl.BlockSpec((tm, C), lambda i: (i, 0)),) * 3,
        compiler_params=cparams,
    )(x_flat, pe_flat, w_in, b_in)

    # ---- MHA core + out-projection + fused per-batch BN2 partial stats ----
    proj, bsum, bsq = pl.pallas_call(
        _make_attn_kernel(nhead, head_dim),
        out_shape=(jax.ShapeDtypeStruct((M, C), MXU_DTYPE),
                   jax.ShapeDtypeStruct((B, 1, C), f32),
                   jax.ShapeDtypeStruct((B, 1, C), f32)),
        grid=(B,),
        in_specs=[pl.BlockSpec((L, C), lambda b: (b, 0)),
                  pl.BlockSpec((L, C), lambda b: (b, 0)),
                  pl.BlockSpec((L, C), lambda b: (b, 0)),
                  pl.BlockSpec((C, C), lambda b: (0, 0)),
                  pl.BlockSpec((1, C), lambda b: (0, 0))],
        out_specs=(pl.BlockSpec((L, C), lambda b: (b, 0)),
                   pl.BlockSpec((1, 1, C), lambda b: (b, 0, 0)),
                   pl.BlockSpec((1, 1, C), lambda b: (b, 0, 0))),
        compiler_params=pltpu.CompilerParams(dimension_semantics=("parallel",)),
    )(q, k, v, params["w_o"].astype(MXU_DTYPE), row(params["b_o"]))
    mean2 = jnp.sum(bsum, axis=0)[0] / M
    var2 = jnp.maximum(jnp.sum(bsq, axis=0)[0] / M - mean2 * mean2, 0.0)

    # ---- fold BN2 affine into conv2 (f32) ----
    scale2 = params["bn2_gamma"] * jax.lax.rsqrt(var2 + BN_EPS)
    shift2 = params["bn2_beta"] - mean2 * scale2
    w2_eff = (scale2[:, None] * params["w2"]).astype(MXU_DTYPE)
    b2_eff = (shift2 @ params["w2"] + params["b2"]).reshape(1, -1).astype(f32)

    # ---- fused: LeakyReLU + folded conv2 + residual + LayerNorm ----
    out_flat = pl.pallas_call(
        _final_kernel,
        out_shape=jax.ShapeDtypeStruct((M, C), f32),
        grid=(nblk,),
        in_specs=[pl.BlockSpec((tm, C), lambda i: (i, 0)),     # attention projection (bf16)
                  pl.BlockSpec((tm, C), lambda i: (i, 0)),     # residual (original x, f32)
                  const((C, C)), const((1, C)),
                  const((1, C)), const((1, C))],
        out_specs=pl.BlockSpec((tm, C), lambda i: (i, 0)),
        compiler_params=cparams,
    )(proj, x_flat, w2_eff, b2_eff, row(params["ln_gamma"]), row(params["ln_beta"]))

    return jnp.transpose(out_flat.reshape(B, H, W, C), (0, 3, 1, 2))


# ---------------------------------------------------------------------------
# Pure-JAX f32 reference (mirrors the PyTorch forward exactly)
# ---------------------------------------------------------------------------
def _reference(x, params, nhead):
    B, C, H, W = x.shape
    L = H * W
    hd = C // nhead
    pe = _positional_encoding(C, H, W)[None]

    def cnn_block_1x1(t, gamma, beta, w, b):
        y = jnp.where(t >= 0, t, NEG_SLOPE * t)
        mean = jnp.mean(y, axis=(0, 2, 3), keepdims=True)
        var = jnp.mean((y - mean) ** 2, axis=(0, 2, 3), keepdims=True)
        yn = (y - mean) / jnp.sqrt(var + BN_EPS)
        yn = yn * gamma.reshape(1, -1, 1, 1) + beta.reshape(1, -1, 1, 1)
        return jnp.einsum("bchw,cd->bdhw", yn, w) + b.reshape(1, -1, 1, 1)

    residual = x
    x1 = cnn_block_1x1(x + pe, params["bn1_gamma"], params["bn1_beta"],
                       params["w1"], params["b1"])

    xf = jnp.transpose(x1, (0, 2, 3, 1)).reshape(B, L, C)
    qkv = xf @ params["w_qkv"] + params["b_qkv"]
    q, k, v = qkv[..., :C], qkv[..., C:2 * C], qkv[..., 2 * C:]
    split = lambda a: jnp.transpose(a.reshape(B, L, nhead, hd), (0, 2, 1, 3))
    q, k, v = split(q), split(k), split(v)
    s = jnp.einsum("bnqd,bnkd->bnqk", q, k) / math.sqrt(hd)
    p = jax.nn.softmax(s, axis=-1)
    ctx = jnp.einsum("bnqk,bnkd->bnqd", p, v)
    ctx = jnp.transpose(ctx, (0, 2, 1, 3)).reshape(B, L, C)
    proj = ctx @ params["w_o"] + params["b_o"]

    x2 = jnp.transpose(proj.reshape(B, H, W, C), (0, 3, 1, 2))
    x2 = cnn_block_1x1(x2, params["bn2_gamma"], params["bn2_beta"],
                       params["w2"], params["b2"])

    out = residual + x2
    o = jnp.transpose(out, (0, 2, 3, 1))
    mu = jnp.mean(o, axis=-1, keepdims=True)
    var = jnp.mean((o - mu) ** 2, axis=-1, keepdims=True)
    o = (o - mu) / jnp.sqrt(var + LN_EPS) * params["ln_gamma"] + params["ln_beta"]
    return jnp.transpose(o, (0, 3, 1, 2))


if __name__ == "__main__":
    # Small EncoderModule: d_model=128 (lane-dense channel axis), 8x8 feature map.
    B, C, H, W = 2, 128, 8, 8
    nhead = 4

    key = jax.random.PRNGKey(0)
    ks = jax.random.split(key, 14)
    wscale = 1.0 / math.sqrt(C)

    # Weights stored in "math" layout:
    #   conv1x1:  (Cin, Cout)  == torch conv.weight.reshape(Cout, Cin).T
    #   w_qkv:    (C, 3C)      == torch mha.in_proj_weight.T
    #   w_o:      (C, C)       == torch mha.out_proj.weight.T
    params = {
        "bn1_gamma": 1.0 + 0.1 * jax.random.normal(ks[1], (C,), jnp.float32),
        "bn1_beta": 0.1 * jax.random.normal(ks[2], (C,), jnp.float32),
        "w1": wscale * jax.random.normal(ks[3], (C, C), jnp.float32),
        "b1": 0.05 * jax.random.normal(ks[4], (C,), jnp.float32),
        "w_qkv": wscale * jax.random.normal(ks[5], (C, 3 * C), jnp.float32),
        "b_qkv": 0.05 * jax.random.normal(ks[6], (3 * C,), jnp.float32),
        "w_o": wscale * jax.random.normal(ks[7], (C, C), jnp.float32),
        "b_o": 0.05 * jax.random.normal(ks[8], (C,), jnp.float32),
        "bn2_gamma": 1.0 + 0.1 * jax.random.normal(ks[9], (C,), jnp.float32),
        "bn2_beta": 0.1 * jax.random.normal(ks[10], (C,), jnp.float32),
        "w2": wscale * jax.random.normal(ks[11], (C, C), jnp.float32),
        "b2": 0.05 * jax.random.normal(ks[12], (C,), jnp.float32),
        "ln_gamma": jnp.ones((C,), jnp.float32),
        "ln_beta": jnp.zeros((C,), jnp.float32),
    }
    x = jax.random.normal(ks[0], (B, C, H, W), jnp.float32)

    fwd = jax.jit(encoder_forward, static_argnames=("nhead",))
    out = jax.block_until_ready(fwd(x, params, nhead=nhead))

    ref = _reference(x, params, nhead)
    assert out.shape == ref.shape == (B, C, H, W)
    # Tolerance sized for bf16 MXU operands AND bf16 storage of the q/k/v/proj
    # intermediates across the chained channel-mixing matmuls (f32 accumulation);
    # typical max-abs error is a few 1e-2 vs the f32 reference.
    max_err = float(jnp.max(jnp.abs(out - ref)))
    assert jnp.allclose(out, ref, atol=8e-2, rtol=8e-2), f"max abs err {max_err}"

    print("KERNEL_OK")
</pallas_src>

<mosaic_0001>
module attributes {stable_mosaic.version = 11 : i64} {
  func.func @_stats_pe_kernel(%arg0: i32, %arg1: memref<64x128xf32, #tpu.memory_space<vmem>>, %arg2: memref<64x128xf32, #tpu.memory_space<vmem>>, %arg3: memref<1x1x128xf32, #tpu.memory_space<vmem>>, %arg4: memref<1x1x128xf32, #tpu.memory_space<vmem>>) attributes {dimension_semantics = [#tpu.dimension_semantics<parallel>], iteration_bounds = array<i64: 2>, scalar_prefetch = 0 : i64, scratch_operands = 0 : i64, tpu.core_type = #tpu.core_type<tc>, window_params = [{transform_indices = @transform_0, window_bounds = array<i64: 64, 128>}, {pipeline_mode = #tpu.pipeline_mode<synchronous>, transform_indices = @transform_1, window_bounds = array<i64: 64, 128>}, {transform_indices = @transform_2, window_bounds = array<i64: 1, 1, 128>}, {transform_indices = @transform_3, window_bounds = array<i64: 1, 1, 128>}]} {
    %c0 = arith.constant 0 : index
    %c0_0 = arith.constant 0 : index
    %0 = vector.load %arg1[%c0, %c0_0] : memref<64x128xf32, #tpu.memory_space<vmem>>, vector<64x128xf32>
    %c0_1 = arith.constant 0 : index
    %c0_2 = arith.constant 0 : index
    %1 = vector.load %arg2[%c0_1, %c0_2] : memref<64x128xf32, #tpu.memory_space<vmem>>, vector<64x128xf32>
    %2 = arith.addf %0, %1 : vector<64x128xf32>
    %cst = arith.constant 0.000000e+00 : f32
    %3 = vector.broadcast %cst : f32 to vector<64x128xf32>
    %4 = arith.cmpf oge, %2, %3 : vector<64x128xf32>
    %cst_3 = arith.constant 2.000000e-01 : f32
    %5 = vector.broadcast %cst_3 : f32 to vector<64x128xf32>
    %6 = arith.mulf %5, %2 : vector<64x128xf32>
    %7 = arith.select %4, %2, %6 : vector<64x128xi1>, vector<64x128xf32>
    %cst_4 = arith.constant dense<0.000000e+00> : vector<128xf32>
    %8 = vector.multi_reduction <add>, %7, %cst_4 [0] : vector<64x128xf32> to vector<128xf32>
    %9 = vector.shape_cast %8 : vector<128xf32> to vector<1x128xf32>
    %10 = vector.shape_cast %9 : vector<1x128xf32> to vector<1x1x128xf32>
    %c0_5 = arith.constant 0 : index
    %c0_6 = arith.constant 0 : index
    %c0_7 = arith.constant 0 : index
    %11 = vector.load %arg3[%c0_5, %c0_6, %c0_7] : memref<1x1x128xf32, #tpu.memory_space<vmem>>, vector<1x1x128xf32>
    tpu.vector_store %arg3[%c0_5, %c0_6, %c0_7], %10 {strides = array<i32>} : memref<1x1x128xf32, #tpu.memory_space<vmem>>, vector<1x1x128xf32>,
    %12 = arith.mulf %7, %7 : vector<64x128xf32>
    %cst_8 = arith.constant dense<0.000000e+00> : vector<128xf32>
    %13 = vector.multi_reduction <add>, %12, %cst_8 [0] : vector<64x128xf32> to vector<128xf32>
    %14 = vector.shape_cast %13 : vector<128xf32> to vector<1x128xf32>
    %15 = vector.shape_cast %14 : vector<1x128xf32> to vector<1x1x128xf32>
    %c0_9 = arith.constant 0 : index
    %c0_10 = arith.constant 0 : index
    %c0_11 = arith.constant 0 : index
    %16 = vector.load %arg4[%c0_9, %c0_10, %c0_11] : memref<1x1x128xf32, #tpu.memory_space<vmem>>, vector<1x1x128xf32>
    tpu.vector_store %arg4[%c0_9, %c0_10, %c0_11], %15 {strides = array<i32>} : memref<1x1x128xf32, #tpu.memory_space<vmem>>, vector<1x1x128xf32>,
    return
  }
  func.func @transform_0(%arg0: i32) -> (i32, i32) {
    %c0_i32 = arith.constant 0 : i32
    %c0_i32_0 = arith.constant 0 : i32
    return %arg0, %c0_i32 : i32, i32
  }
  func.func @transform_1(%arg0: i32) -> (i32, i32) {
    %c0_i32 = arith.constant 0 : i32
    %c0_i32_0 = arith.constant 0 : i32
    %c0_i32_1 = arith.constant 0 : i32
    return %c0_i32, %c0_i32_0 : i32, i32
  }
  func.func @transform_2(%arg0: i32) -> (i32, i32, i32) {
    %c0_i32 = arith.constant 0 : i32
    %c0_i32_0 = arith.constant 0 : i32
    %c0_i32_1 = arith.constant 0 : i32
    return %arg0, %c0_i32, %c0_i32_0 : i32, i32, i32
  }
  func.func @transform_3(%arg0: i32) -> (i32, i32, i32) {
    %c0_i32 = arith.constant 0 : i32
    %c0_i32_0 = arith.constant 0 : i32
    %c0_i32_1 = arith.constant 0 : i32
    return %arg0, %c0_i32, %c0_i32_0 : i32, i32, i32
  }
}

module attributes {stable_mosaic.version = 11 : i64} {
  func.func @kernel(%arg0: i32, %arg1: memref<64x128xbf16, #tpu.memory_space<vmem>>, %arg2: memref<64x128xbf16, #tpu.memory_space<vmem>>, %arg3: memref<64x128xbf16, #tpu.memory_space<vmem>>, %arg4: memref<128x128xbf16, #tpu.memory_space<vmem>>, %arg5: memref<1x128xf32, #tpu.memory_space<vmem>>, %arg6: memref<64x128xbf16, #tpu.memory_space<vmem>>, %arg7: memref<1x1x128xf32, #tpu.memory_space<vmem>>, %arg8: memref<1x1x128xf32, #tpu.memory_space<vmem>>) attributes {dimension_semantics = [#tpu.dimension_semantics<parallel>], iteration_bounds = array<i64: 2>, scalar_prefetch = 0 : i64, scratch_operands = 0 : i64, tpu.core_type = #tpu.core_type<tc>, window_params = [{transform_indices = @transform_0, window_bounds = array<i64: 64, 128>}, {transform_indices = @transform_1, window_bounds = array<i64: 64, 128>}, {transform_indices = @transform_2, window_bounds = array<i64: 64, 128>}, {pipeline_mode = #tpu.pipeline_mode<synchronous>, transform_indices = @transform_3, window_bounds = array<i64: 128, 128>}, {pipeline_mode = #tpu.pipeline_mode<synchronous>, transform_indices = @transform_4, window_bounds = array<i64: 1, 128>}, {transform_indices = @transform_5, window_bounds = array<i64: 64, 128>}, {transform_indices = @transform_6, window_bounds = array<i64: 1, 1, 128>}, {transform_indices = @transform_7, window_bounds = array<i64: 1, 1, 128>}]} {
    %c0 = arith.constant 0 : index
    %c0_0 = arith.constant 0 : index
    %0 = vector.load %arg1[%c0, %c0_0] : memref<64x128xbf16, #tpu.memory_space<vmem>>, vector<64x128xbf16>
    %c0_1 = arith.constant 0 : index
    %c0_2 = arith.constant 0 : index
    %1 = vector.load %arg2[%c0_1, %c0_2] : memref<64x128xbf16, #tpu.memory_space<vmem>>, vector<64x128xbf16>
    %c0_3 = arith.constant 0 : index
    %c0_4 = arith.constant 0 : index
    %2 = vector.load %arg3[%c0_3, %c0_4] : memref<64x128xbf16, #tpu.memory_space<vmem>>, vector<64x128xbf16>
    %3 = vector.extract_strided_slice %0 {offsets = [0, 0], sizes = [64, 32], strides = [1, 1]} : vector<64x128xbf16> to vector<64x32xbf16>
    %4 = vector.extract_strided_slice %1 {offsets = [0, 0], sizes = [64, 32], strides = [1, 1]} : vector<64x128xbf16> to vector<64x32xbf16>
    %cst = arith.constant dense<0.000000e+00> : vector<64x64xf32>
    %5 = tpu.matmul %3, %4, %cst {dimension_numbers = #tpu.dot_dimension_numbers<[1], [1], [0], [0], [0, 0, 1, 0], [], []>} : vector<64x32xbf16>, vector<64x32xbf16>, vector<64x64xf32> -> vector<64x64xf32>
    %cst_5 = arith.constant dense<0xFF800000> : vector<64xf32>
    %6 = vector.multi_reduction <maximumf>, %5, %cst_5 [1] : vector<64x64xf32> to vector<64xf32>
    %7 = vector.shape_cast %6 : vector<64xf32> to vector<64x1xf32>
    %8 = vector.broadcast %7 : vector<64x1xf32> to vector<64x64xf32>
    %9 = arith.subf %5, %8 : vector<64x64xf32>
    %10 = math.exp %9 : vector<64x64xf32>
    %cst_6 = arith.constant dense<0.000000e+00> : vector<64xf32>
    %11 = vector.multi_reduction <add>, %10, %cst_6 [1] : vector<64x64xf32> to vector<64xf32>
    %12 = vector.shape_cast %11 : vector<64xf32> to vector<64x1xf32>
    %13 = arith.truncf %10 : vector<64x64xf32> to vector<64x64xbf16>
    %14 = vector.extract_strided_slice %2 {offsets = [0, 0], sizes = [64, 32], strides = [1, 1]} : vector<64x128xbf16> to vector<64x32xbf16>
    %cst_7 = arith.constant dense<0.000000e+00> : vector<64x32xf32>
    %15 = tpu.matmul %13, %14, %cst_7 {dimension_numbers = #tpu.dot_dimension_numbers<[1], [0], [0], [1], [0, 0, 1, 1], [], []>} : vector<64x64xbf16>, vector<64x32xbf16>, vector<64x32xf32> -> vector<64x32xf32>
    %16 = tpu.reciprocal %12 {approx = true} : vector<64x1xf32> -> vector<64x1xf32>
    %17 = vector.broadcast %16 : vector<64x1xf32> to vector<64x32xf32>
    %18 = arith.mulf %15, %17 : vector<64x32xf32>
    %19 = vector.extract_strided_slice %0 {offsets = [0, 32], sizes = [64, 32], strides = [1, 1]} : vector<64x128xbf16> to vector<64x32xbf16>
    %20 = vector.extract_strided_slice %1 {offsets = [0, 32], sizes = [64, 32], strides = [1, 1]} : vector<64x128xbf16> to vector<64x32xbf16>
    %cst_8 = arith.constant dense<0.000000e+00> : vector<64x64xf32>
    %21 = tpu.matmul %19, %20, %cst_8 {dimension_numbers = #tpu.dot_dimension_numbers<[1], [1], [0], [0], [0, 0, 1, 0], [], []>} : vector<64x32xbf16>, vector<64x32xbf16>, vector<64x64xf32> -> vector<64x64xf32>
    %cst_9 = arith.constant dense<0xFF800000> : vector<64xf32>
    %22 = vector.multi_reduction <maximumf>, %21, %cst_9 [1] : vector<64x64xf32> to vector<64xf32>
    %23 = vector.shape_cast %22 : vector<64xf32> to vector<64x1xf32>
    %24 = vector.broadcast %23 : vector<64x1xf32> to vector<64x64xf32>
    %25 = arith.subf %21, %24 : vector<64x64xf32>
    %26 = math.exp %25 : vector<64x64xf32>
    %cst_10 = arith.constant dense<0.000000e+00> : vector<64xf32>
    %27 = vector.multi_reduction <add>, %26, %cst_10 [1] : vector<64x64xf32> to vector<64xf32>
    %28 = vector.shape_cast %27 : vector<64xf32> to vector<64x1xf32>
    %29 = arith.truncf %26 : vector<64x64xf32> to vector<64x64xbf16>
    %30 = vector.extract_strided_slice %2 {offsets = [0, 32], sizes = [64, 32], strides = [1, 1]} : vector<64x128xbf16> to vector<64x32xbf16>
    %cst_11 = arith.constant dense<0.000000e+00> : vector<64x32xf32>
    %31 = tpu.matmul %29, %30, %cst_11 {dimension_numbers = #tpu.dot_dimension_numbers<[1], [0], [0], [1], [0, 0, 1, 1], [], []>} : vector<64x64xbf16>, vector<64x32xbf16>, vector<64x32xf32> -> vector<64x32xf32>
    %32 = tpu.reciprocal %28 {approx = true} : vector<64x1xf32> -> vector<64x1xf32>
    %33 = vector.broadcast %32 : vector<64x1xf32> to vector<64x32xf32>
    %34 = arith.mulf %31, %33 : vector<64x32xf32>
    %35 = vector.extract_strided_slice %0 {offsets = [0, 64], sizes = [64, 32], strides = [1, 1]} : vector<64x128xbf16> to vector<64x32xbf16>
    %36 = vector.extract_strided_slice %1 {offsets = [0, 64], sizes = [64, 32], strides = [1, 1]} : vector<64x128xbf16> to vector<64x32xbf16>
    %cst_12 = arith.constant dense<0.000000e+00> : vector<64x64xf32>
    %37 = tpu.matmul %35, %36, %cst_12 {dimension_numbers = #tpu.dot_dimension_numbers<[1], [1], [0], [0], [0, 0, 1, 0], [], []>} : vector<64x32xbf16>, vector<64x32xbf16>, vector<64x64xf32> -> vector<64x64xf32>
    %cst_13 = arith.constant dense<0xFF800000> : vector<64xf32>
    %38 = vector.multi_reduction <maximumf>, %37, %cst_13 [1] : vector<64x64xf32> to vector<64xf32>
    %39 = vector.shape_cast %38 : vector<64xf32> to vector<64x1xf32>
    %40 = vector.broadcast %39 : vector<64x1xf32> to vector<64x64xf32>
    %41 = arith.subf %37, %40 : vector<64x64xf32>
    %42 = math.exp %41 : vector<64x64xf32>
    %cst_14 = arith.constant dense<0.000000e+00> : vector<64xf32>
    %43 = vector.multi_reduction <add>, %42, %cst_14 [1] : vector<64x64xf32> to vector<64xf32>
    %44 = vector.shape_cast %43 : vector<64xf32> to vector<64x1xf32>
    %45 = arith.truncf %42 : vector<64x64xf32> to vector<64x64xbf16>
    %46 = vector.extract_strided_slice %2 {offsets = [0, 64], sizes = [64, 32], strides = [1, 1]} : vector<64x128xbf16> to vector<64x32xbf16>
    %cst_15 = arith.constant dense<0.000000e+00> : vector<64x32xf32>
    %47 = tpu.matmul %45, %46, %cst_15 {dimension_numbers = #tpu.dot_dimension_numbers<[1], [0], [0], [1], [0, 0, 1, 1], [], []>} : vector<64x64xbf16>, vector<64x32xbf16>, vector<64x32xf32> -> vector<64x32xf32>
    %48 = tpu.reciprocal %44 {approx = true} : vector<64x1xf32> -> vector<64x1xf32>
    %49 = vector.broadcast %48 : vector<64x1xf32> to vector<64x32xf32>
    %50 = arith.mulf %47, %49 : vector<64x32xf32>
    %51 = vector.extract_strided_slice %0 {offsets = [0, 96], sizes = [64, 32], strides = [1, 1]} : vector<64x128xbf16> to vector<64x32xbf16>
    %52 = vector.extract_strided_slice %1 {offsets = [0, 96], sizes = [64, 32], strides = [1, 1]} : vector<64x128xbf16> to vector<64x32xbf16>
    %cst_16 = arith.constant dense<0.000000e+00> : vector<64x64xf32>
    %53 = tpu.matmul %51, %52, %cst_16 {dimension_numbers = #tpu.dot_dimension_numbers<[1], [1], [0], [0], [0, 0, 1, 0], [], []>} : vector<64x32xbf16>, vector<64x32xbf16>, vector<64x64xf32> -> vector<64x64xf32>
    %cst_17 = arith.constant dense<0xFF800000> : vector<64xf32>
    %54 = vector.multi_reduction <maximumf>, %53, %cst_17 [1] : vector<64x64xf32> to vector<64xf32>
    %55 = vector.shape_cast %54 : vector<64xf32> to vector<64x1xf32>
    %56 = vector.broadcast %55 : vector<64x1xf32> to vector<64x64xf32>
    %57 = arith.subf %53, %56 : vector<64x64xf32>
    %58 = math.exp %57 : vector<64x64xf32>
    %cst_18 = arith.constant dense<0.000000e+00> : vector<64xf32>
    %59 = vector.multi_reduction <add>, %58, %cst_18 [1] : vector<64x64xf32> to vector<64xf32>
    %60 = vector.shape_cast %59 : vector<64xf32> to vector<64x1xf32>
    %61 = arith.truncf %58 : vector<64x64xf32> to vector<64x64xbf16>
    %62 = vector.extract_strided_slice %2 {offsets = [0, 96], sizes = [64, 32], strides = [1, 1]} : vector<64x128xbf16> to vector<64x32xbf16>
    %cst_19 = arith.constant dense<0.000000e+00> : vector<64x32xf32>
    %63 = tpu.matmul %61, %62, %cst_19 {dimension_numbers = #tpu.dot_dimension_numbers<[1], [0], [0], [1], [0, 0, 1, 1], [], []>} : vector<64x64xbf16>, vector<64x32xbf16>, vector<64x32xf32> -> vector<64x32xf32>
    %64 = tpu.reciprocal %60 {approx = true} : vector<64x1xf32> -> vector<64x1xf32>
    %65 = vector.broadcast %64 : vector<64x1xf32> to vector<64x32xf32>
    %66 = arith.mulf %63, %65 : vector<64x32xf32>
    %67 = tpu.concatenate %18, %34, %50, %66 in 1 : vector<64x32xf32>, vector<64x32xf32>, vector<64x32xf32>, vector<64x32xf32> -> vector<64x128xf32>
    %68 = arith.truncf %67 : vector<64x128xf32> to vector<64x128xbf16>
    %c0_20 = arith.constant 0 : index
    %c0_21 = arith.constant 0 : index
    %69 = vector.load %arg4[%c0_20, %c0_21] : memref<128x128xbf16, #tpu.memory_space<vmem>>, vector<128x128xbf16>
    %cst_22 = arith.constant dense<0.000000e+00> : vector<64x128xf32>
    %70 = tpu.matmul %68, %69, %cst_22 {dimension_numbers = #tpu.dot_dimension_numbers<[1], [0], [0], [1], [0, 0, 1, 1], [], []>} : vector<64x128xbf16>, vector<128x128xbf16>, vector<64x128xf32> -> vector<64x128xf32>
    %c0_23 = arith.constant 0 : index
    %c0_24 = arith.constant 0 : index
    %71 = vector.load %arg5[%c0_23, %c0_24] : memref<1x128xf32, #tpu.memory_space<vmem>>, vector<1x128xf32>
    %72 = vector.broadcast %71 : vector<1x128xf32> to vector<64x128xf32>
    %73 = arith.addf %70, %72 : vector<64x128xf32>
    %74 = arith.truncf %73 : vector<64x128xf32> to vector<64x128xbf16>
    %c0_25 = arith.constant 0 : index
    %c0_26 = arith.constant 0 : index
    %75 = vector.load %arg6[%c0_25, %c0_26] : memref<64x128xbf16, #tpu.memory_space<vmem>>, vector<64x128xbf16>
    tpu.vector_store %arg6[%c0_25, %c0_26], %74 {strides = array<i32>} : memref<64x128xbf16, #tpu.memory_space<vmem>>, vector<64x128xbf16>,
    %cst_27 = arith.constant 0.000000e+00 : f32
    %76 = vector.broadcast %cst_27 : f32 to vector<64x128xf32>
    %77 = arith.cmpf oge, %73, %76 : vector<64x128xf32>
    %cst_28 = arith.constant 2.000000e-01 : f32
    %78 = vector.broadcast %cst_28 : f32 to vector<64x128xf32>
    %79 = arith.mulf %78, %73 : vector<64x128xf32>
    %80 = arith.select %77, %73, %79 : vector<64x128xi1>, vector<64x128xf32>
    %cst_29 = arith.constant dense<0.000000e+00> : vector<128xf32>
    %81 = vector.multi_reduction <add>, %80, %cst_29 [0] : vector<64x128xf32> to vector<128xf32>
    %82 = vector.shape_cast %81 : vector<128xf32> to vector<1x128xf32>
    %83 = vector.shape_cast %82 : vector<1x128xf32> to vector<1x1x128xf32>
    %c0_30 = arith.constant 0 : index
    %c0_31 = arith.constant 0 : index
    %c0_32 = arith.constant 0 : index
    %84 = vector.load %arg7[%c0_30, %c0_31, %c0_32] : memref<1x1x128xf32, #tpu.memory_space<vmem>>, vector<1x1x128xf32>
    tpu.vector_store %arg7[%c0_30, %c0_31, %c0_32], %83 {strides = array<i32>} : memref<1x1x128xf32, #tpu.memory_space<vmem>>, vector<1x1x128xf32>,
    %85 = arith.mulf %80, %80 : vector<64x128xf32>
    %cst_33 = arith.constant dense<0.000000e+00> : vector<128xf32>
    %86 = vector.multi_reduction <add>, %85, %cst_33 [0] : vector<64x128xf32> to vector<128xf32>
    %87 = vector.shape_cast %86 : vector<128xf32> to vector<1x128xf32>
    %88 = vector.shape_cast %87 : vector<1x128xf32> to vector<1x1x128xf32>
    %c0_34 = arith.constant 0 : index
    %c0_35 = arith.constant 0 : index
    %c0_36 = arith.constant 0 : index
    %89 = vector.load %arg8[%c0_34, %c0_35, %c0_36] : memref<1x1x128xf32, #tpu.memory_space<vmem>>, vector<1x1x128xf32>
    tpu.vector_store %arg8[%c0_34, %c0_35, %c0_36], %88 {strides = array<i32>} : memref<1x1x128xf32, #tpu.memory_space<vmem>>, vector<1x1x128xf32>,
    return
  }
  func.func @transform_0(%arg0: i32) -> (i32, i32) {
    %c0_i32 = arith.constant 0 : i32
    %c0_i32_0 = arith.constant 0 : i32
    return %arg0, %c0_i32 : i32, i32
  }
  func.func @transform_1(%arg0: i32) -> (i32, i32) {
    %c0_i32 = arith.constant 0 : i32
    %c0_i32_0 = arith.constant 0 : i32
    return %arg0, %c0_i32 : i32, i32
  }
  func.func @transform_2(%arg0: i32) -> (i32, i32) {
    %c0_i32 = arith.constant 0 : i32
    %c0_i32_0 = arith.constant 0 : i32
    return %arg0, %c0_i32 : i32, i32
  }
  func.func @transform_3(%arg0: i32) -> (i32, i32) {
    %c0_i32 = arith.constant 0 : i32
    %c0_i32_0 = arith.constant 0 : i32
    %c0_i32_1 = arith.constant 0 : i32
    return %c0_i32, %c0_i32_0 : i32, i32
  }
  func.func @transform_4(%arg0: i32) -> (i32, i32) {
    %c0_i32 = arith.constant 0 : i32
    %c0_i32_0 = arith.constant 0 : i32
    %c0_i32_1 = arith.constant 0 : i32
    return %c0_i32, %c0_i32_0 : i32, i32
  }
  func.func @transform_5(%arg0: i32) -> (i32, i32) {
    %c0_i32 = arith.constant 0 : i32
    %c0_i32_0 = arith.constant 0 : i32
    return %arg0, %c0_i32 : i32, i32
  }
  func.func @transform_6(%arg0: i32) -> (i32, i32, i32) {
    %c0_i32 = arith.constant 0 : i32
    %c0_i32_0 = arith.constant 0 : i32
    %c0_i32_1 = arith.constant 0 : i32
    return %arg0, %c0_i32, %c0_i32_0 : i32, i32, i32
  }
  func.func @transform_7(%arg0: i32) -> (i32, i32, i32) {
    %c0_i32 = arith.constant 0 : i32
    %c0_i32_0 = arith.constant 0 : i32
    %c0_i32_1 = arith.constant 0 : i32
    return %arg0, %c0_i32, %c0_i32_0 : i32, i32, i32
  }
}

module attributes {stable_mosaic.version = 11 : i64} {
  func.func @_qkv_kernel(%arg0: i32, %arg1: memref<64x128xf32, #tpu.memory_space<vmem>>, %arg2: memref<64x128xf32, #tpu.memory_space<vmem>>, %arg3: memref<128x384xbf16, #tpu.memory_space<vmem>>, %arg4: memref<1x384xf32, #tpu.memory_space<vmem>>, %arg5: memref<64x128xbf16, #tpu.memory_space<vmem>>, %arg6: memref<64x128xbf16, #tpu.memory_space<vmem>>, %arg7: memref<64x128xbf16, #tpu.memory_space<vmem>>) attributes {dimension_semantics = [#tpu.dimension_semantics<parallel>], iteration_bounds = array<i64: 2>, scalar_prefetch = 0 : i64, scratch_operands = 0 : i64, tpu.core_type = #tpu.core_type<tc>, window_params = [{transform_indices = @transform_0, window_bounds = array<i64: 64, 128>}, {pipeline_mode = #tpu.pipeline_mode<synchronous>, transform_indices = @transform_1, window_bounds = array<i64: 64, 128>}, {pipeline_mode = #tpu.pipeline_mode<synchronous>, transform_indices = @transform_2, window_bounds = array<i64: 128, 384>}, {pipeline_mode = #tpu.pipeline_mode<synchronous>, transform_indices = @transform_3, window_bounds = array<i64: 1, 384>}, {transform_indices = @transform_4, window_bounds = array<i64: 64, 128>}, {transform_indices = @transform_5, window_bounds = array<i64: 64, 128>}, {transform_indices = @transform_6, window_bounds = array<i64: 64, 128>}]} {
    %c0 = arith.constant 0 : index
    %c0_0 = arith.constant 0 : index
    %0 = vector.load %arg1[%c0, %c0_0] : memref<64x128xf32, #tpu.memory_space<vmem>>, vector<64x128xf32>
    %c0_1 = arith.constant 0 : index
    %c0_2 = arith.constant 0 : index
    %1 = vector.load %arg2[%c0_1, %c0_2] : memref<64x128xf32, #tpu.memory_space<vmem>>, vector<64x128xf32>
    %2 = arith.addf %0, %1 : vector<64x128xf32>
    %cst = arith.constant 0.000000e+00 : f32
    %3 = vector.broadcast %cst : f32 to vector<64x128xf32>
    %4 = arith.cmpf oge, %2, %3 : vector<64x128xf32>
    %cst_3 = arith.constant 2.000000e-01 : f32
    %5 = vector.broadcast %cst_3 : f32 to vector<64x128xf32>
    %6 = arith.mulf %5, %2 : vector<64x128xf32>
    %7 = arith.select %4, %2, %6 : vector<64x128xi1>, vector<64x128xf32>
    %8 = arith.truncf %7 : vector<64x128xf32> to vector<64x128xbf16>
    %c0_4 = arith.constant 0 : index
    %c0_5 = arith.constant 0 : index
    %9 = vector.load %arg3[%c0_4, %c0_5] : memref<128x384xbf16, #tpu.memory_space<vmem>>, vector<128x384xbf16>
    %cst_6 = arith.constant dense<0.000000e+00> : vector<64x384xf32>
    %10 = tpu.matmul %8, %9, %cst_6 {dimension_numbers = #tpu.dot_dimension_numbers<[1], [0], [0], [1], [0, 0, 1, 1], [], []>} : vector<64x128xbf16>, vector<128x384xbf16>, vector<64x384xf32> -> vector<64x384xf32>
    %c0_7 = arith.constant 0 : index
    %c0_8 = arith.constant 0 : index
    %11 = vector.load %arg4[%c0_7, %c0_8] : memref<1x384xf32, #tpu.memory_space<vmem>>, vector<1x384xf32>
    %12 = vector.broadcast %11 : vector<1x384xf32> to vector<64x384xf32>
    %13 = arith.addf %10, %12 : vector<64x384xf32>
    %14 = vector.extract_strided_slice %13 {offsets = [0, 0], sizes = [64, 128], strides = [1, 1]} : vector<64x384xf32> to vector<64x128xf32>
    %15 = arith.truncf %14 : vector<64x128xf32> to vector<64x128xbf16>
    %c0_9 = arith.constant 0 : index
    %c0_10 = arith.constant 0 : index
    %16 = vector.load %arg5[%c0_9, %c0_10] : memref<64x128xbf16, #tpu.memory_space<vmem>>, vector<64x128xbf16>
    tpu.vector_store %arg5[%c0_9, %c0_10], %15 {strides = array<i32>} : memref<64x128xbf16, #tpu.memory_space<vmem>>, vector<64x128xbf16>,
    %17 = vector.extract_strided_slice %13 {offsets = [0, 128], sizes = [64, 128], strides = [1, 1]} : vector<64x384xf32> to vector<64x128xf32>
    %18 = arith.truncf %17 : vector<64x128xf32> to vector<64x128xbf16>
    %c0_11 = arith.constant 0 : index
    %c0_12 = arith.constant 0 : index
    %19 = vector.load %arg6[%c0_11, %c0_12] : memref<64x128xbf16, #tpu.memory_space<vmem>>, vector<64x128xbf16>
    tpu.vector_store %arg6[%c0_11, %c0_12], %18 {strides = array<i32>} : memref<64x128xbf16, #tpu.memory_space<vmem>>, vector<64x128xbf16>,
    %20 = vector.extract_strided_slice %13 {offsets = [0, 256], sizes = [64, 128], strides = [1, 1]} : vector<64x384xf32> to vector<64x128xf32>
    %21 = arith.truncf %20 : vector<64x128xf32> to vector<64x128xbf16>
    %c0_13 = arith.constant 0 : index
    %c0_14 = arith.constant 0 : index
    %22 = vector.load %arg7[%c0_13, %c0_14] : memref<64x128xbf16, #tpu.memory_space<vmem>>, vector<64x128xbf16>
    tpu.vector_store %arg7[%c0_13, %c0_14], %21 {strides = array<i32>} : memref<64x128xbf16, #tpu.memory_space<vmem>>, vector<64x128xbf16>,
    return
  }
  func.func @transform_0(%arg0: i32) -> (i32, i32) {
    %c0_i32 = arith.constant 0 : i32
    %c0_i32_0 = arith.constant 0 : i32
    return %arg0, %c0_i32 : i32, i32
  }
  func.func @transform_1(%arg0: i32) -> (i32, i32) {
    %c0_i32 = arith.constant 0 : i32
    %c0_i32_0 = arith.constant 0 : i32
    %c0_i32_1 = arith.constant 0 : i32
    return %c0_i32, %c0_i32_0 : i32, i32
  }
  func.func @transform_2(%arg0: i32) -> (i32, i32) {
    %c0_i32 = arith.constant 0 : i32
    %c0_i32_0 = arith.constant 0 : i32
    %c0_i32_1 = arith.constant 0 : i32
    return %c0_i32, %c0_i32_0 : i32, i32
  }
  func.func @transform_3(%arg0: i32) -> (i32, i32) {
    %c0_i32 = arith.constant 0 : i32
    %c0_i32_0 = arith.constant 0 : i32
    %c0_i32_1 = arith.constant 0 : i32
    return %c0_i32, %c0_i32_0 : i32, i32
  }
  func.func @transform_4(%arg0: i32) -> (i32, i32) {
    %c0_i32 = arith.constant 0 : i32
    %c0_i32_0 = arith.constant 0 : i32
    return %arg0, %c0_i32 : i32, i32
  }
  func.func @transform_5(%arg0: i32) -> (i32, i32) {
    %c0_i32 = arith.constant 0 : i32
    %c0_i32_0 = arith.constant 0 : i32
    return %arg0, %c0_i32 : i32, i32
  }
  func.func @transform_6(%arg0: i32) -> (i32, i32) {
    %c0_i32 = arith.constant 0 : i32
    %c0_i32_0 = arith.constant 0 : i32
    return %arg0, %c0_i32 : i32, i32
  }
}

module attributes {stable_mosaic.version = 11 : i64} {
  func.func @_final_kernel(%arg0: i32, %arg1: memref<64x128xbf16, #tpu.memory_space<vmem>>, %arg2: memref<64x128xf32, #tpu.memory_space<vmem>>, %arg3: memref<128x128xbf16, #tpu.memory_space<vmem>>, %arg4: memref<1x128xf32, #tpu.memory_space<vmem>>, %arg5: memref<1x128xf32, #tpu.memory_space<vmem>>, %arg6: memref<1x128xf32, #tpu.memory_space<vmem>>, %arg7: memref<64x128xf32, #tpu.memory_space<vmem>>) attributes {dimension_semantics = [#tpu.dimension_semantics<parallel>], iteration_bounds = array<i64: 2>, scalar_prefetch = 0 : i64, scratch_operands = 0 : i64, tpu.core_type = #tpu.core_type<tc>, window_params = [{transform_indices = @transform_0, window_bounds = array<i64: 64, 128>}, {transform_indices = @transform_1, window_bounds = array<i64: 64, 128>}, {pipeline_mode = #tpu.pipeline_mode<synchronous>, transform_indices = @transform_2, window_bounds = array<i64: 128, 128>}, {pipeline_mode = #tpu.pipeline_mode<synchronous>, transform_indices = @transform_3, window_bounds = array<i64: 1, 128>}, {pipeline_mode = #tpu.pipeline_mode<synchronous>, transform_indices = @transform_4, window_bounds = array<i64: 1, 128>}, {pipeline_mode = #tpu.pipeline_mode<synchronous>, transform_indices = @transform_5, window_bounds = array<i64: 1, 128>}, {transform_indices = @transform_6, window_bounds = array<i64: 64, 128>}]} {
    %c0 = arith.constant 0 : index
    %c0_0 = arith.constant 0 : index
    %0 = vector.load %arg1[%c0, %c0_0] : memref<64x128xbf16, #tpu.memory_space<vmem>>, vector<64x128xbf16>
    %1 = arith.extf %0 : vector<64x128xbf16> to vector<64x128xf32>
    %cst = arith.constant 0.000000e+00 : f32
    %2 = vector.broadcast %cst : f32 to vector<64x128xf32>
    %3 = arith.cmpf oge, %1, %2 : vector<64x128xf32>
    %cst_1 = arith.constant 2.000000e-01 : f32
    %4 = vector.broadcast %cst_1 : f32 to vector<64x128xf32>
    %5 = arith.mulf %4, %1 : vector<64x128xf32>
    %6 = arith.select %3, %1, %5 : vector<64x128xi1>, vector<64x128xf32>
    %7 = arith.truncf %6 : vector<64x128xf32> to vector<64x128xbf16>
    %c0_2 = arith.constant 0 : index
    %c0_3 = arith.constant 0 : index
    %8 = vector.load %arg3[%c0_2, %c0_3] : memref<128x128xbf16, #tpu.memory_space<vmem>>, vector<128x128xbf16>
    %cst_4 = arith.constant dense<0.000000e+00> : vector<64x128xf32>
    %9 = tpu.matmul %7, %8, %cst_4 {dimension_numbers = #tpu.dot_dimension_numbers<[1], [0], [0], [1], [0, 0, 1, 1], [], []>} : vector<64x128xbf16>, vector<128x128xbf16>, vector<64x128xf32> -> vector<64x128xf32>
    %c0_5 = arith.constant 0 : index
    %c0_6 = arith.constant 0 : index
    %10 = vector.load %arg4[%c0_5, %c0_6] : memref<1x128xf32, #tpu.memory_space<vmem>>, vector<1x128xf32>
    %11 = vector.broadcast %10 : vector<1x128xf32> to vector<64x128xf32>
    %12 = arith.addf %9, %11 : vector<64x128xf32>
    %c0_7 = arith.constant 0 : index
    %c0_8 = arith.constant 0 : index
    %13 = vector.load %arg2[%c0_7, %c0_8] : memref<64x128xf32, #tpu.memory_space<vmem>>, vector<64x128xf32>
    %14 = arith.addf %13, %12 : vector<64x128xf32>
    %cst_9 = arith.constant dense<0.000000e+00> : vector<64xf32>
    %15 = vector.multi_reduction <add>, %14, %cst_9 [1] : vector<64x128xf32> to vector<64xf32>
    %16 = vector.shape_cast %15 : vector<64xf32> to vector<64x1xf32>
    %cst_10 = arith.constant 1.280000e+02 : f32
    %17 = vector.broadcast %cst_10 : f32 to vector<64x1xf32>
    %18 = arith.divf %16, %17 : vector<64x1xf32>
    %19 = vector.broadcast %18 : vector<64x1xf32> to vector<64x128xf32>
    %20 = arith.subf %14, %19 : vector<64x128xf32>
    %21 = arith.mulf %20, %20 : vector<64x128xf32>
    %cst_11 = arith.constant dense<0.000000e+00> : vector<64xf32>
    %22 = vector.multi_reduction <add>, %21, %cst_11 [1] : vector<64x128xf32> to vector<64xf32>
    %23 = vector.shape_cast %22 : vector<64xf32> to vector<64x1xf32>
    %cst_12 = arith.constant 1.280000e+02 : f32
    %24 = vector.broadcast %cst_12 : f32 to vector<64x1xf32>
    %25 = arith.divf %23, %24 : vector<64x1xf32>
    %cst_13 = arith.constant 9.99999974E-6 : f32
    %26 = vector.broadcast %cst_13 : f32 to vector<64x1xf32>
    %27 = arith.addf %25, %26 : vector<64x1xf32>
    %28 = math.rsqrt %27 : vector<64x1xf32>
    %29 = vector.broadcast %28 : vector<64x1xf32> to vector<64x128xf32>
    %30 = arith.mulf %20, %29 : vector<64x128xf32>
    %c0_14 = arith.constant 0 : index
    %c0_15 = arith.constant 0 : index
    %31 = vector.load %arg5[%c0_14, %c0_15] : memref<1x128xf32, #tpu.memory_space<vmem>>, vector<1x128xf32>
    %32 = vector.broadcast %31 : vector<1x128xf32> to vector<64x128xf32>
    %33 = arith.mulf %30, %32 : vector<64x128xf32>
    %c0_16 = arith.constant 0 : index
    %c0_17 = arith.constant 0 : index
    %34 = vector.load %arg6[%c0_16, %c0_17] : memref<1x128xf32, #tpu.memory_space<vmem>>, vector<1x128xf32>
    %35 = vector.broadcast %34 : vector<1x128xf32> to vector<64x128xf32>
    %36 = arith.addf %33, %35 : vector<64x128xf32>
    %c0_18 = arith.constant 0 : index
    %c0_19 = arith.constant 0 : index
    %37 = vector.load %arg7[%c0_18, %c0_19] : memref<64x128xf32, #tpu.memory_space<vmem>>, vector<64x128xf32>
    tpu.vector_store %arg7[%c0_18, %c0_19], %36 {strides = array<i32>} : memref<64x128xf32, #tpu.memory_space<vmem>>, vector<64x128xf32>,
    return
  }
  func.func @transform_0(%arg0: i32) -> (i32, i32) {
    %c0_i32 = arith.constant 0 : i32
    %c0_i32_0 = arith.constant 0 : i32
    return %arg0, %c0_i32 : i32, i32
  }
  func.func @transform_1(%arg0: i32) -> (i32, i32) {
    %c0_i32 = arith.constant 0 : i32
    %c0_i32_0 = arith.constant 0 : i32
    return %arg0, %c0_i32 : i32, i32
  }
  func.func @transform_2(%arg0: i32) -> (i32, i32) {
    %c0_i32 = arith.constant 0 : i32
    %c0_i32_0 = arith.constant 0 : i32
    %c0_i32_1 = arith.constant 0 : i32
    return %c0_i32, %c0_i32_0 : i32, i32
  }
  func.func @transform_3(%arg0: i32) -> (i32, i32) {
    %c0_i32 = arith.constant 0 : i32
    %c0_i32_0 = arith.constant 0 : i32
    %c0_i32_1 = arith.constant 0 : i32
    return %c0_i32, %c0_i32_0 : i32, i32
  }
  func.func @transform_4(%arg0: i32) -> (i32, i32) {
    %c0_i32 = arith.constant 0 : i32
    %c0_i32_0 = arith.constant 0 : i32
    %c0_i32_1 = arith.constant 0 : i32
    return %c0_i32, %c0_i32_0 : i32, i32
  }
  func.func @transform_5(%arg0: i32) -> (i32, i32) {
    %c0_i32 = arith.constant 0 : i32
    %c0_i32_0 = arith.constant 0 : i32
    %c0_i32_1 = arith.constant 0 : i32
    return %c0_i32, %c0_i32_0 : i32, i32
  }
  func.func @transform_6(%arg0: i32) -> (i32, i32) {
    %c0_i32 = arith.constant 0 : i32
    %c0_i32_0 = arith.constant 0 : i32
    return %arg0, %c0_i32 : i32, i32
  }
}

</mosaic_0001>

<llo_original>
// kernel: encoder_forward.4
$region0: #{encoder_forward.4}
  #allocation0 [shape = 'u32[]', space=smem, size = 0x4, offset = 0x4, fixed_abs, tag = 'smem constant byte address 0x4 - core index']
  #allocation1 [shape = 'u32[72,128]{1,0:T(1,128)}', space=vmem, size = 0x9000, scoped, tag = 'internal scratch']
  %s0 = inlined_call_operand.vmem [shape: f32[128,128], index: 0, kind: input, shape index: {}]
  %s1 = inlined_call_operand.vmem [shape: f32[64,128], index: 1, kind: input, shape index: {}]
  %s2 = inlined_call_operand.vmem [shape: f32[2,1,128], index: 2, kind: output, shape index: {0}]
  %s3 = inlined_call_operand.vmem [shape: f32[2,1,128], index: 3, kind: output, shape index: {1}]
  %4 = xla_tuple %s2, %s3
  %s5 = sld [smem:[#allocation0]]
  $region49: #{encoder_forward.4} parent=0
    _
  %s7 = ssub.s32 1, %s5
  %s8 = scalar_select 0, %s7, %s5
  loop: start=0, step=1, limit=4
  $region2: #{encoder_forward.4} parent=0 // loop_pre_header
    _
  $region3: #{encoder_forward.4} parent=0 // loop_header
    %s10 = sphi 0, %s14
    %p11 = scmp.ge.s32.totalorder %s10, 4
    %s20 = sphi 0, %s22
    %s23 = sphi 0, %s20
    %s24 = sphi 0, %s23
    %s40 = sphi 0, %s24
    %s44 = sphi 0, %s44
    %s46 = sphi 0, %s44
    %s47 = sphi 0, %s46
    %s61 = sphi 0, %s47
    %s67 = sphi 0, %s69
    %s70 = sphi 0, %s67
    %s71 = sphi 0, %s70
    %s87 = sphi 0, %s71
    %s93 = sphi 0, %s95
    %s96 = sphi 0, %s93
    %s97 = sphi 0, %s96
    %s113 = sphi 0, %s97
  $region4: #{encoder_forward.4} parent=0 // loop_header_branch
    %13 = sbr.rel (%p11) target = $region8
  $region5: #{encoder_forward.4} parent=0 // loop_body
    %s15 = ssub.s32 %s10, 1
    %s16 = ssub.s32 %s10, 2
    %s17 = sadd.s32 %s10, 1
    %s18 = ssub.s32 %s10, %s17
    %p19 = scmp.eq.s32.totalorder %s18, 0
    %s21 = sadd.s32 %s20, 1
    %s22 = scalar_select %p19, %s20, %s21
    %p25 = pneg %p19
    %p26 = scmp.eq.s32.totalorder %s10, 1
    %p27 = por %p25, %p26
    %p28 = scmp.ne.s32.totalorder %s20, %s23
    %p29 = scmp.eq.s32.totalorder %s10, 0
    %p30 = por %p28, %p29
    %p31 = scmp.ne.s32.totalorder %s20, %s23
    %p32 = scmp.eq.s32.totalorder %s15, 1
    %p33 = por %p31, %p32
    %p34 = scmp.ne.s32.totalorder %s23, %s24
    %p35 = scmp.eq.s32.totalorder %s15, 0
    %p36 = por %p34, %p35
    %p37 = scmp.ne.s32.totalorder %s23, %s24
    %p38 = scmp.eq.s32.totalorder %s16, 1
    %p39 = por %p37, %p38
    %p41 = scmp.ne.s32.totalorder %s24, %s40
    %p42 = scmp.eq.s32.totalorder %s16, 0
    %p43 = por %p41, %p42
    %s45 = sadd.s32 %s44, 1
    %p48 = scmp.eq.s32.totalorder %s10, 1
    %p49 = scmp.ne.s32.totalorder %s44, %s46
    %p50 = scmp.eq.s32.totalorder %s10, 0
    %p51 = por %p49, %p50
    %p52 = scmp.ne.s32.totalorder %s44, %s46
    %p53 = scmp.eq.s32.totalorder %s15, 1
    %p54 = por %p52, %p53
    %p55 = scmp.ne.s32.totalorder %s46, %s47
    %p56 = scmp.eq.s32.totalorder %s15, 0
    %p57 = por %p55, %p56
    %p58 = scmp.ne.s32.totalorder %s46, %s47
    %p59 = scmp.eq.s32.totalorder %s16, 1
    %p60 = por %p58, %p59
    %p62 = scmp.ne.s32.totalorder %s47, %s61
    %p63 = scmp.eq.s32.totalorder %s16, 0
    %p64 = por %p62, %p63
    %s65 = ssub.s32 %s10, %s17
    %p66 = scmp.eq.s32.totalorder %s65, 0
    %s68 = sadd.s32 %s67, 1
    %s69 = scalar_select %p66, %s67, %s68
    %p72 = pneg %p66
    %p73 = scmp.eq.s32.totalorder %s10, 1
    %p74 = por %p72, %p73
    %p75 = scmp.ne.s32.totalorder %s67, %s70
    %p76 = scmp.eq.s32.totalorder %s10, 0
    %p77 = por %p75, %p76
    %p78 = scmp.ne.s32.totalorder %s67, %s70
    %p79 = scmp.eq.s32.totalorder %s15, 1
    %p80 = por %p78, %p79
    %p81 = scmp.ne.s32.totalorder %s70, %s71
    %p82 = scmp.eq.s32.totalorder %s15, 0
    %p83 = por %p81, %p82
    %p84 = scmp.ne.s32.totalorder %s70, %s71
    %p85 = scmp.eq.s32.totalorder %s16, 1
    %p86 = por %p84, %p85
    %p88 = scmp.ne.s32.totalorder %s71, %s87
    %p89 = scmp.eq.s32.totalorder %s16, 0
    %p90 = por %p88, %p89
    %s91 = ssub.s32 %s10, %s17
    %p92 = scmp.eq.s32.totalorder %s91, 0
    %s94 = sadd.s32 %s93, 1
    %s95 = scalar_select %p92, %s93, %s94
    %p98 = pneg %p92
    %p99 = scmp.eq.s32.totalorder %s10, 1
    %p100 = por %p98, %p99
    %p101 = scmp.ne.s32.totalorder %s93, %s96
    %p102 = scmp.eq.s32.totalorder %s10, 0
    %p103 = por %p101, %p102
    %p104 = scmp.ne.s32.totalorder %s93, %s96
    %p105 = scmp.eq.s32.totalorder %s15, 1
    %p106 = por %p104, %p105
    %p107 = scmp.ne.s32.totalorder %s96, %s97
    %p108 = scmp.eq.s32.totalorder %s15, 0
    %p109 = por %p107, %p108
    %p110 = scmp.ne.s32.totalorder %s96, %s97
    %p111 = scmp.eq.s32.totalorder %s16, 1
    %p112 = por %p110, %p111
    %p114 = scmp.ne.s32.totalorder %s97, %s113
    %p115 = scmp.eq.s32.totalorder %s16, 0
    %p116 = por %p114, %p115
    %p117 = scmp.le.s32.totalorder 1, %s10
    %p118 = scmp.lt.s32.totalorder %s10, 3
    %p119 = pnand %p117, %p118
    %p120 = pneg %p119
    // Predicated region
    $region9: #{encoder_forward.4} parent=5 // pred_check
      _
    $region10: #{encoder_forward.4} parent=5 // pred_check_branch
      %122 = sbr.rel (%p119) target = $region12
    $region11: #{encoder_forward.4} parent=5 // pred_region
      %s123 = ssub.s32 %s10, 1
      // Predicated region
      $region13: #{encoder_forward.4} parent=11 // pred_check
        %p124 = pneg %p57
      $region14: #{encoder_forward.4} parent=11 // pred_check_branch
        %126 = sbr.rel (%p124) target = $region16
      $region15: #{encoder_forward.4} parent=11 // pred_region
        _
      $region16: #{encoder_forward.4} parent=11 // pred_fallthru
        _
    $region12: #{encoder_forward.4} parent=5 // pred_fallthru
      _
    %p127 = scmp.lt.s32.totalorder %s10, 2
    // Predicated region
    $region17: #{encoder_forward.4} parent=5 // pred_check
      %p128 = pneg %p127
    $region18: #{encoder_forward.4} parent=5 // pred_check_branch
      %130 = sbr.rel (%p128) target = $region20
    $region19: #{encoder_forward.4} parent=5 // pred_region
      // Predicated region
      $region21: #{encoder_forward.4} parent=19 // pred_check
        %p131 = pneg %p30
      $region22: #{encoder_forward.4} parent=19 // pred_check_branch
        %133 = sbr.rel (%p131) target = $region24
      $region23: #{encoder_forward.4} parent=19 // pred_region
        %s134 = smul.u32 8, %s10
        %p135 = scmp.lt.s32.totalorder %s134, 15
        %s136 = scalar_select %p135, %s134, 15
        %s137 = smul.addr %s136, 8
        %s138 = scalar_lea.vmem %s0, %s137
        %s139 = smul.u32 8, %s10
      $region24: #{encoder_forward.4} parent=19 // pred_fallthru
        _
    $region20: #{encoder_forward.4} parent=5 // pred_fallthru
      _
    %p140 = scmp.le.s32.totalorder 1, %s10
    %p141 = scmp.lt.s32.totalorder %s10, 3
    %p142 = pnand %p140, %p141
    %p143 = pneg %p142
    // Predicated region
    $region25: #{encoder_forward.4} parent=5 // pred_check
      _
    $region26: #{encoder_forward.4} parent=5 // pred_check_branch
      %145 = sbr.rel (%p142) target = $region28
    $region27: #{encoder_forward.4} parent=5 // pred_region
      %s146 = ssub.s32 %s10, 1
      %s147 = smul.u32 8, %s15
      %p148 = scmp.lt.s32.totalorder %s147, 15
      %s149 = scalar_select %p148, %s147, 15
      %s150 = smul.addr %s149, 8
      %s151 = scalar_lea.vmem %s0, %s150
      %p152 = pneg %p36
      %p153 = pneg %p33
      %p154 = pneg %p57
      %p155 = pneg %p54
      %p156 = pneg %p83
      %p157 = pneg %p80
      %p158 = scmp.lt.s32.totalorder %s15, 1
      %s159 = scalar_select %p158, %s15, 1
      %s160 = scalar_lea.vmem %s2, %s159
      %p161 = pneg %p109
      %p162 = pneg %p106
      %p163 = scmp.lt.s32.totalorder %s15, 1
      %s164 = scalar_select %p163, %s15, 1
      %s165 = scalar_lea.vmem %s3, %s164
      %s166 = smul.u32 8, %s15
      %p167 = scmp.lt.s32.totalorder %s166, 15
      %s168 = scalar_select %p167, %s166, 15
      %s169 = smul.addr %s168, 8
      %s170 = scalar_lea.vmem %s0, %s169
      %s171 = smul.u32 8, %s15
      %p172 = scmp.lt.s32.totalorder %s15, 1
      %s173 = scalar_select %p172, %s15, 1
      %s174 = scalar_lea.vmem %s2, %s173
      %p175 = scmp.lt.s32.totalorder %s15, 1
      %s176 = scalar_select %p175, %s15, 1
      %s177 = scalar_lea.vmem %s3, %s176
      %v178 = vld [vmem:[%s170] sm:$0xff]
      %v179 = vld [vmem:[%s170 + $0x8] sm:$0xff]
      %v180 = vld [vmem:[%s170 + $0x10] sm:$0xff]
      %v181 = vld [vmem:[%s170 + $0x18] sm:$0xff]
      %v182 = vld [vmem:[%s170 + $0x20] sm:$0xff]
      %v183 = vld [vmem:[%s170 + $0x28] sm:$0xff]
      %v184 = vld [vmem:[%s170 + $0x30] sm:$0xff]
      %v185 = vld [vmem:[%s170 + $0x38] sm:$0xff]
      %v186 = vld [vmem:[%s1] sm:$0xff]
      %v187 = vld [vmem:[%s1 + $0x8] sm:$0xff]
      %v188 = vld [vmem:[%s1 + $0x10] sm:$0xff]
      %v189 = vld [vmem:[%s1 + $0x18] sm:$0xff]
      %v190 = vld [vmem:[%s1 + $0x20] sm:$0xff]
      %v191 = vld [vmem:[%s1 + $0x28] sm:$0xff]
      %v192 = vld [vmem:[%s1 + $0x30] sm:$0xff]
      %v193 = vld [vmem:[%s1 + $0x38] sm:$0xff]
      %v194 = vadd.f32 %v178, %v186
      %v195 = vadd.f32 %v179, %v187
      %v196 = vadd.f32 %v180, %v188
      %v197 = vadd.f32 %v181, %v189
      %v198 = vadd.f32 %v182, %v190
      %v199 = vadd.f32 %v183, %v191
      %v200 = vadd.f32 %v184, %v192
      %v201 = vadd.f32 %v185, %v193
      %vm202 = vcmp.ge.f32.partialorder %v194, 0.0
      %vm203 = vcmp.ge.f32.partialorder %v195, 0.0
      %vm204 = vcmp.ge.f32.partialorder %v196, 0.0
      %vm205 = vcmp.ge.f32.partialorder %v197, 0.0
      %vm206 = vcmp.ge.f32.partialorder %v198, 0.0
      %vm207 = vcmp.ge.f32.partialorder %v199, 0.0
      %vm208 = vcmp.ge.f32.partialorder %v200, 0.0
      %vm209 = vcmp.ge.f32.partialorder %v201, 0.0
      %v210 = vmul.f32 %v194, 0.2
      %v211 = vmul.f32 %v195, 0.2
      %v212 = vmul.f32 %v196, 0.2
      %v213 = vmul.f32 %v197, 0.2
      %v214 = vmul.f32 %v198, 0.2
      %v215 = vmul.f32 %v199, 0.2
      %v216 = vmul.f32 %v200, 0.2
      %v217 = vmul.f32 %v201, 0.2
      %v218 = vsel %vm202, %v194, %v210
      %v219 = vsel %vm203, %v195, %v211
      %v220 = vsel %vm204, %v196, %v212
      %v221 = vsel %vm205, %v197, %v213
      %v222 = vsel %vm206, %v198, %v214
      %v223 = vsel %vm207, %v199, %v215
      %v224 = vsel %vm208, %v200, %v216
      %v225 = vsel %vm209, %v201, %v217
      %v226 = vadd.f32 %v218, %v219
      %v227 = vadd.f32 %v226, %v220
      %v228 = vadd.f32 %v227, %v221
      %v229 = vadd.f32 %v228, %v222
      %v230 = vadd.f32 %v229, %v223
      %v231 = vadd.f32 %v230, %v224
      %v232 = vadd.f32 %v231, %v225
      %v233 = vrot.slane %v232, 4
      %v234 = vadd.f32 %v232, %v233
      %v235 = vrot.slane %v234, 2
      %v236 = vadd.f32 %v234, %v235
      %v237 = vrot.slane %v236, 1
      %v238 = vadd.f32 %v236, %v237
      %239 = vst [vmem:[%s174] sm:$0x1] %v238
      %v240 = vmul.f32 %v218, %v218
      %v241 = vmul.f32 %v219, %v219
      %v242 = vmul.f32 %v220, %v220
      %v243 = vmul.f32 %v221, %v221
      %v244 = vmul.f32 %v222, %v222
      %v245 = vmul.f32 %v223, %v223
      %v246 = vmul.f32 %v224, %v224
      %v247 = vmul.f32 %v225, %v225
      %v248 = vadd.f32 %v240, %v241
      %v249 = vadd.f32 %v248, %v242
      %v250 = vadd.f32 %v249, %v243
      %v251 = vadd.f32 %v250, %v244
      %v252 = vadd.f32 %v251, %v245
      %v253 = vadd.f32 %v252, %v246
      %v254 = vadd.f32 %v253, %v247
      %v255 = vrot.slane %v254, 4
      %v256 = vadd.f32 %v254, %v255
      %v257 = vrot.slane %v256, 2
      %v258 = vadd.f32 %v256, %v257
      %v259 = vrot.slane %v258, 1
      %v260 = vadd.f32 %v258, %v259
      %261 = vst [vmem:[%s177] sm:$0x1] %v260
      %p262 = scmp.lt.s32.totalorder %s15, 1
      %s263 = scalar_select %p262, %s15, 1
      %s264 = scalar_lea.vmem %s2, %s263
      %p265 = scmp.lt.s32.totalorder %s15, 1
      %s266 = scalar_select %p265, %s15, 1
      %s267 = scalar_lea.vmem %s3, %s266
      // Predicated region
      $region29: #{encoder_forward.4} parent=27 // pred_check
        %p268 = pneg %p80
      $region30: #{encoder_forward.4} parent=27 // pred_check_branch
        %270 = sbr.rel (%p268) target = $region32
      $region31: #{encoder_forward.4} parent=27 // pred_region
        _
      $region32: #{encoder_forward.4} parent=27 // pred_fallthru
        _
      // Predicated region
      $region33: #{encoder_forward.4} parent=27 // pred_check
        %p271 = pneg %p106
      $region34: #{encoder_forward.4} parent=27 // pred_check_branch
        %273 = sbr.rel (%p271) target = $region36
      $region35: #{encoder_forward.4} parent=27 // pred_region
        _
      $region36: #{encoder_forward.4} parent=27 // pred_fallthru
        _
    $region28: #{encoder_forward.4} parent=5 // pred_fallthru
      _
    %p274 = scmp.le.s32.totalorder 2, %s10
    // Predicated region
    $region37: #{encoder_forward.4} parent=5 // pred_check
      %p275 = pneg %p274
    $region38: #{encoder_forward.4} parent=5 // pred_check_branch
      %277 = sbr.rel (%p275) target = $region40
    $region39: #{encoder_forward.4} parent=5 // pred_region
      %s278 = ssub.s32 %s10, 2
      // Predicated region
      $region41: #{encoder_forward.4} parent=39 // pred_check
        %p279 = pneg %p86
      $region42: #{encoder_forward.4} parent=39 // pred_check_branch
        %281 = sbr.rel (%p279) target = $region44
      $region43: #{encoder_forward.4} parent=39 // pred_region
        %p282 = scmp.lt.s32.totalorder %s16, 1
        %s283 = scalar_select %p282, %s16, 1
        %s284 = scalar_lea.vmem %s2, %s283
      $region44: #{encoder_forward.4} parent=39 // pred_fallthru
        _
      // Predicated region
      $region45: #{encoder_forward.4} parent=39 // pred_check
        %p285 = pneg %p112
      $region46: #{encoder_forward.4} parent=39 // pred_check_branch
        %287 = sbr.rel (%p285) target = $region48
      $region47: #{encoder_forward.4} parent=39 // pred_region
        %p288 = scmp.lt.s32.totalorder %s16, 1
        %s289 = scalar_select %p288, %s16, 1
        %s290 = scalar_lea.vmem %s3, %s289
      $region48: #{encoder_forward.4} parent=39 // pred_fallthru
        _
    $region40: #{encoder_forward.4} parent=5 // pred_fallthru
      _
  $region6: #{encoder_forward.4} parent=0 // loop_footer
    %s14 = sadd.s32 1, %s10
  $region7: #{encoder_forward.4} parent=0 // loop_footer_branch
    %9 = sbr.rel target = $region3
  $region8: #{encoder_forward.4} parent=0 // loop_exit
    _

// kernel: encoder_forward.7
$region0: #{encoder_forward.7}
  #allocation0 [shape = 'u32[]', space=smem, size = 0x4, offset = 0x4, fixed_abs, tag = 'smem constant byte address 0x4 - core index']
  #allocation1 [shape = 'u32[72,128]{1,0:T(1,128)}', space=vmem, size = 0x9000, scoped, tag = 'internal scratch']
  %s0 = inlined_call_operand.vmem [shape: bf16[128,128], index: 0, kind: input, shape index: {}]
  %s1 = inlined_call_operand.vmem [shape: f32[128,128], index: 1, kind: input, shape index: {}]
  %s2 = inlined_call_operand.vmem [shape: bf16[128,128], index: 2, kind: input, shape index: {}]
  %s3 = inlined_call_operand.vmem [shape: f32[1,128], index: 3, kind: input, shape index: {}]
  %s4 = inlined_call_operand.vmem [shape: f32[1,128], index: 4, kind: input, shape index: {}]
  %s5 = inlined_call_operand.vmem [shape: f32[1,128], index: 5, kind: input, shape index: {}]
  %s6 = inlined_call_operand.hbm [shape: f32[128,128], index: 6, kind: output, shape index: {}]
  %s7 = sld [smem:[#allocation0]]
  $region57: #{encoder_forward.7} parent=0
    _
  %s9 = ssub.s32 1, %s7
  %s10 = scalar_select 0, %s9, %s7
  $region1: #{encoder_forward.7} parent=0
    #allocation2 [shape = 'u8[65536]{0}', space=vmem, size = 0x10000, scoped, tag = 'output window, operand 0']
    #allocation3 [shape = 's32[2]{0}', space=sflag, size = 0x8, scoped, tag = 'scoped memory for encoder_forward.7']
    %11 = vsyncpa [#allocation3], 0
    %s12 = scalar_lea.sflag [#allocation3], 1
    %13 = vsyncpa %s12, 0
    loop: start=0, step=1, limit=4
    $region2: #{encoder_forward.7} parent=1 // loop_pre_header
      _
    $region3: #{encoder_forward.7} parent=1 // loop_header
      %s15 = sphi 0, %s19
      %p16 = scmp.ge.s32.totalorder %s15, 4
      %s25 = sphi 0, %s27
      %s28 = sphi 0, %s25
      %s29 = sphi 0, %s28
      %s45 = sphi 0, %s29
      %s51 = sphi 0, %s53
      %s54 = sphi 0, %s51
      %s55 = sphi 0, %s54
      %s71 = sphi 0, %s55
      %s75 = sphi 0, %s75
      %s77 = sphi 0, %s75
      %s78 = sphi 0, %s77
      %s92 = sphi 0, %s78
      %s96 = sphi 0, %s96
      %s98 = sphi 0, %s96
      %s99 = sphi 0, %s98
      %s113 = sphi 0, %s99
      %s117 = sphi 0, %s117
      %s119 = sphi 0, %s117
      %s120 = sphi 0, %s119
      %s134 = sphi 0, %s120
      %s138 = sphi 0, %s138
      %s140 = sphi 0, %s138
      %s141 = sphi 0, %s140
      %s155 = sphi 0, %s141
      %s161 = sphi 0, %s163
      %s164 = sphi 0, %s161
      %s165 = sphi 0, %s164
      %s181 = sphi 0, %s165
    $region4: #{encoder_forward.7} parent=1 // loop_header_branch
      %18 = sbr.rel (%p16) target = $region8
    $region5: #{encoder_forward.7} parent=1 // loop_body
      %s20 = ssub.s32 %s15, 1
      %s21 = ssub.s32 %s15, 2
      %s22 = sadd.s32 %s15, 1
      %s23 = ssub.s32 %s15, %s22
      %p24 = scmp.eq.s32.totalorder %s23, 0
      %s26 = sadd.s32 %s25, 1
      %s27 = scalar_select %p24, %s25, %s26
      %p30 = pneg %p24
      %p31 = scmp.eq.s32.totalorder %s15, 1
      %p32 = por %p30, %p31
      %p33 = scmp.ne.s32.totalorder %s25, %s28
      %p34 = scmp.eq.s32.totalorder %s15, 0
      %p35 = por %p33, %p34
      %p36 = scmp.ne.s32.totalorder %s25, %s28
      %p37 = scmp.eq.s32.totalorder %s20, 1
      %p38 = por %p36, %p37
      %p39 = scmp.ne.s32.totalorder %s28, %s29
      %p40 = scmp.eq.s32.totalorder %s20, 0
      %p41 = por %p39, %p40
      %p42 = scmp.ne.s32.totalorder %s28, %s29
      %p43 = scmp.eq.s32.totalorder %s21, 1
      %p44 = por %p42, %p43
      %p46 = scmp.ne.s32.totalorder %s29, %s45
      %p47 = scmp.eq.s32.totalorder %s21, 0
      %p48 = por %p46, %p47
      %s49 = ssub.s32 %s15, %s22
      %p50 = scmp.eq.s32.totalorder %s49, 0
      %s52 = sadd.s32 %s51, 1
      %s53 = scalar_select %p50, %s51, %s52
      %p56 = pneg %p50
      %p57 = scmp.eq.s32.totalorder %s15, 1
      %p58 = por %p56, %p57
      %p59 = scmp.ne.s32.totalorder %s51, %s54
      %p60 = scmp.eq.s32.totalorder %s15, 0
      %p61 = por %p59, %p60
      %p62 = scmp.ne.s32.totalorder %s51, %s54
      %p63 = scmp.eq.s32.totalorder %s20, 1
      %p64 = por %p62, %p63
      %p65 = scmp.ne.s32.totalorder %s54, %s55
      %p66 = scmp.eq.s32.totalorder %s20, 0
      %p67 = por %p65, %p66
      %p68 = scmp.ne.s32.totalorder %s54, %s55
      %p69 = scmp.eq.s32.totalorder %s21, 1
      %p70 = por %p68, %p69
      %p72 = scmp.ne.s32.totalorder %s55, %s71
      %p73 = scmp.eq.s32.totalorder %s21, 0
      %p74 = por %p72, %p73
      %s76 = sadd.s32 %s75, 1
      %p79 = scmp.eq.s32.totalorder %s15, 1
      %p80 = scmp.ne.s32.totalorder %s75, %s77
      %p81 = scmp.eq.s32.totalorder %s15, 0
      %p82 = por %p80, %p81
      %p83 = scmp.ne.s32.totalorder %s75, %s77
      %p84 = scmp.eq.s32.totalorder %s20, 1
      %p85 = por %p83, %p84
      %p86 = scmp.ne.s32.totalorder %s77, %s78
      %p87 = scmp.eq.s32.totalorder %s20, 0
      %p88 = por %p86, %p87
      %p89 = scmp.ne.s32.totalorder %s77, %s78
      %p90 = scmp.eq.s32.totalorder %s21, 1
      %p91 = por %p89, %p90
      %p93 = scmp.ne.s32.totalorder %s78, %s92
      %p94 = scmp.eq.s32.totalorder %s21, 0
      %p95 = por %p93, %p94
      %s97 = sadd.s32 %s96, 1
      %p100 = scmp.eq.s32.totalorder %s15, 1
      %p101 = scmp.ne.s32.totalorder %s96, %s98
      %p102 = scmp.eq.s32.totalorder %s15, 0
      %p103 = por %p101, %p102
      %p104 = scmp.ne.s32.totalorder %s96, %s98
      %p105 = scmp.eq.s32.totalorder %s20, 1
      %p106 = por %p104, %p105
      %p107 = scmp.ne.s32.totalorder %s98, %s99
      %p108 = scmp.eq.s32.totalorder %s20, 0
      %p109 = por %p107, %p108
      %p110 = scmp.ne.s32.totalorder %s98, %s99
      %p111 = scmp.eq.s32.totalorder %s21, 1
      %p112 = por %p110, %p111
      %p114 = scmp.ne.s32.totalorder %s99, %s113
      %p115 = scmp.eq.s32.totalorder %s21, 0
      %p116 = por %p114, %p115
      %s118 = sadd.s32 %s117, 1
      %p121 = scmp.eq.s32.totalorder %s15, 1
      %p122 = scmp.ne.s32.totalorder %s117, %s119
      %p123 = scmp.eq.s32.totalorder %s15, 0
      %p124 = por %p122, %p123
      %p125 = scmp.ne.s32.totalorder %s117, %s119
      %p126 = scmp.eq.s32.totalorder %s20, 1
      %p127 = por %p125, %p126
      %p128 = scmp.ne.s32.totalorder %s119, %s120
      %p129 = scmp.eq.s32.totalorder %s20, 0
      %p130 = por %p128, %p129
      %p131 = scmp.ne.s32.totalorder %s119, %s120
      %p132 = scmp.eq.s32.totalorder %s21, 1
      %p133 = por %p131, %p132
      %p135 = scmp.ne.s32.totalorder %s120, %s134
      %p136 = scmp.eq.s32.totalorder %s21, 0
      %p137 = por %p135, %p136
      %s139 = sadd.s32 %s138, 1
      %p142 = scmp.eq.s32.totalorder %s15, 1
      %p143 = scmp.ne.s32.totalorder %s138, %s140
      %p144 = scmp.eq.s32.totalorder %s15, 0
      %p145 = por %p143, %p144
      %p146 = scmp.ne.s32.totalorder %s138, %s140
      %p147 = scmp.eq.s32.totalorder %s20, 1
      %p148 = por %p146, %p147
      %p149 = scmp.ne.s32.totalorder %s140, %s141
      %p150 = scmp.eq.s32.totalorder %s20, 0
      %p151 = por %p149, %p150
      %p152 = scmp.ne.s32.totalorder %s140, %s141
      %p153 = scmp.eq.s32.totalorder %s21, 1
      %p154 = por %p152, %p153
      %p156 = scmp.ne.s32.totalorder %s141, %s155
      %p157 = scmp.eq.s32.totalorder %s21, 0
      %p158 = por %p156, %p157
      %s159 = ssub.s32 %s15, %s22
      %p160 = scmp.eq.s32.totalorder %s159, 0
      %s162 = sadd.s32 %s161, 1
      %s163 = scalar_select %p160, %s161, %s162
      %p166 = pneg %p160
      %p167 = scmp.eq.s32.totalorder %s15, 1
      %p168 = por %p166, %p167
      %p169 = scmp.ne.s32.totalorder %s161, %s164
      %p170 = scmp.eq.s32.totalorder %s15, 0
      %p171 = por %p169, %p170
      %p172 = scmp.ne.s32.totalorder %s161, %s164
      %p173 = scmp.eq.s32.totalorder %s20, 1
      %p174 = por %p172, %p173
      %p175 = scmp.ne.s32.totalorder %s164, %s165
      %p176 = scmp.eq.s32.totalorder %s20, 0
      %p177 = por %p175, %p176
      %p178 = scmp.ne.s32.totalorder %s164, %s165
      %p179 = scmp.eq.s32.totalorder %s21, 1
      %p180 = por %p178, %p179
      %p182 = scmp.ne.s32.totalorder %s165, %s181
      %p183 = scmp.eq.s32.totalorder %s21, 0
      %p184 = por %p182, %p183
      %p185 = scmp.le.s32.totalorder 1, %s15
      %p186 = scmp.lt.s32.totalorder %s15, 3
      %p187 = pnand %p185, %p186
      %p188 = pneg %p187
      // Predicated region
      $region9: #{encoder_forward.7} parent=5 // pred_check
        _
      $region10: #{encoder_forward.7} parent=5 // pred_check_branch
        %190 = sbr.rel (%p187) target = $region12
      $region11: #{encoder_forward.7} parent=5 // pred_region
        %s191 = ssub.s32 %s15, 1
        // Predicated region
        $region13: #{encoder_forward.7} parent=11 // pred_check
          %p192 = pneg %p88
        $region14: #{encoder_forward.7} parent=11 // pred_check_branch
          %194 = sbr.rel (%p192) target = $region16
        $region15: #{encoder_forward.7} parent=11 // pred_region
          _
        $region16: #{encoder_forward.7} parent=11 // pred_fallthru
          _
        // Predicated region
        $region17: #{encoder_forward.7} parent=11 // pred_check
          %p195 = pneg %p109
        $region18: #{encoder_forward.7} parent=11 // pred_check_branch
          %197 = sbr.rel (%p195) target = $region20
        $region19: #{encoder_forward.7} parent=11 // pred_region
          _
        $region20: #{encoder_forward.7} parent=11 // pred_fallthru
          _
        // Predicated region
        $region21: #{encoder_forward.7} parent=11 // pred_check
          %p198 = pneg %p130
        $region22: #{encoder_forward.7} parent=11 // pred_check_branch
          %200 = sbr.rel (%p198) target = $region24
        $region23: #{encoder_forward.7} parent=11 // pred_region
          _
        $region24: #{encoder_forward.7} parent=11 // pred_fallthru
          _
        // Predicated region
        $region25: #{encoder_forward.7} parent=11 // pred_check
          %p201 = pneg %p151
        $region26: #{encoder_forward.7} parent=11 // pred_check_branch
          %203 = sbr.rel (%p201) target = $region28
        $region27: #{encoder_forward.7} parent=11 // pred_region
          _
        $region28: #{encoder_forward.7} parent=11 // pred_fallthru
          _
      $region12: #{encoder_forward.7} parent=5 // pred_fallthru
        _
      %p204 = scmp.lt.s32.totalorder %s15, 2
      // Predicated region
      $region29: #{encoder_forward.7} parent=5 // pred_check
        %p205 = pneg %p204
      $region30: #{encoder_forward.7} parent=5 // pred_check_branch
        %207 = sbr.rel (%p205) target = $region32
      $region31: #{encoder_forward.7} parent=5 // pred_region
        // Predicated region
        $region33: #{encoder_forward.7} parent=31 // pred_check
          %p208 = pneg %p35
        $region34: #{encoder_forward.7} parent=31 // pred_check_branch
          %210 = sbr.rel (%p208) target = $region36
        $region35: #{encoder_forward.7} parent=31 // pred_region
          %s211 = smul.u32 8, %s15
          %p212 = scmp.lt.s32.totalorder %s211, 15
          %s213 = scalar_select %p212, %s211, 15
          %s214 = smul.addr %s213, 4
          %s215 = scalar_lea.vmem %s0, %s214
          %s216 = smul.u32 8, %s15
        $region36: #{encoder_forward.7} parent=31 // pred_fallthru
          _
        // Predicated region
        $region37: #{encoder_forward.7} parent=31 // pred_check
          %p217 = pneg %p61
        $region38: #{encoder_forward.7} parent=31 // pred_check_branch
          %219 = sbr.rel (%p217) target = $region40
        $region39: #{encoder_forward.7} parent=31 // pred_region
          %s220 = smul.u32 8, %s15
          %p221 = scmp.lt.s32.totalorder %s220, 15
          %s222 = scalar_select %p221, %s220, 15
          %s223 = smul.addr %s222, 8
          %s224 = scalar_lea.vmem %s1, %s223
          %s225 = smul.u32 8, %s15
        $region40: #{encoder_forward.7} parent=31 // pred_fallthru
          _
      $region32: #{encoder_forward.7} parent=5 // pred_fallthru
        _
      %p226 = scmp.le.s32.totalorder 1, %s15
      %p227 = scmp.lt.s32.totalorder %s15, 3
      %p228 = pnand %p226, %p227
      %p229 = pneg %p228
      // Predicated region
      $region41: #{encoder_forward.7} parent=5 // pred_check
        _
      $region42: #{encoder_forward.7} parent=5 // pred_check_branch
        %231 = sbr.rel (%p228) target = $region44
      $region43: #{encoder_forward.7} parent=5 // pred_region
        %s232 = ssub.s32 %s15, 1
        %s233 = smul.u32 8, %s20
        %p234 = scmp.lt.s32.totalorder %s233, 15
        %s235 = scalar_select %p234, %s233, 15
        %s236 = smul.addr %s235, 4
        %s237 = scalar_lea.vmem %s0, %s236
        %p238 = pneg %p41
        %p239 = pneg %p38
        %s240 = smul.u32 8, %s20
        %p241 = scmp.lt.s32.totalorder %s240, 15
        %s242 = scalar_select %p241, %s240, 15
        %s243 = smul.addr %s242, 8
        %s244 = scalar_lea.vmem %s1, %s243
        %p245 = pneg %p67
        %p246 = pneg %p64
        %p247 = pneg %p88
        %p248 = pneg %p85
        %p249 = pneg %p109
        %p250 = pneg %p106
        %p251 = pneg %p130
        %p252 = pneg %p127
        %p253 = pneg %p151
        %p254 = pneg %p148
        %p255 = pneg %p177
        %p256 = pneg %p174
        %s257 = sand.u32 %s164, 1
        %s258 = scalar_lea.sflag [#allocation3], %s257
        %s259 = sand.u32 %s164, 1
        %s260 = smul.addr %s259, 64
        %s261 = scalar_lea.vmem [#allocation2], %s260
        %s262 = smul.u32 8, %s20
        %p263 = scmp.lt.s32.totalorder %s262, 15
        %s264 = scalar_select %p263, %s262, 15
        %s265 = smul.addr %s264, 4
        %s266 = scalar_lea.vmem %s0, %s265
        %s267 = smul.u32 8, %s20
        %s268 = smul.u32 8, %s20
        %p269 = scmp.lt.s32.totalorder %s268, 15
        %s270 = scalar_select %p269, %s268, 15
        %s271 = smul.addr %s270, 8
        %s272 = scalar_lea.vmem %s1, %s271
        %s273 = smul.u32 8, %s20
        %s274 = smul.u32 8, %s20
        %v275 = vld [vmem:[%s266] sm:$0xf]
        %v276 = vld [vmem:[%s266 + $0x4] sm:$0xf]
        %v277 = vld [vmem:[%s266 + $0x8] sm:$0xf]
        %v278 = vld [vmem:[%s266 + $0xc] sm:$0xf]
        %v279 = vld [vmem:[%s266 + $0x10] sm:$0xf]
        %v280 = vld [vmem:[%s266 + $0x14] sm:$0xf]
        %v281 = vld [vmem:[%s266 + $0x18] sm:$0xf]
        %v282 = vld [vmem:[%s266 + $0x1c] sm:$0xf]
        %v283 = vunpack.c.l.bf16 %v275
        %v284 = vunpack.c.l.bf16 %v276
        %v285 = vunpack.c.l.bf16 %v277
        %v286 = vunpack.c.l.bf16 %v278
        %v287 = vunpack.c.l.bf16 %v279
        %v288 = vunpack.c.l.bf16 %v280
        %v289 = vunpack.c.l.bf16 %v281
        %v290 = vunpack.c.l.bf16 %v282
        %vm291 = vcmp.ge.f32.partialorder %v283, 0.0
        %vm292 = vcmp.ge.f32.partialorder %v284, 0.0
        %vm293 = vcmp.ge.f32.partialorder %v285, 0.0
        %vm294 = vcmp.ge.f32.partialorder %v286, 0.0
        %vm295 = vcmp.ge.f32.partialorder %v287, 0.0
        %vm296 = vcmp.ge.f32.partialorder %v288, 0.0
        %vm297 = vcmp.ge.f32.partialorder %v289, 0.0
        %vm298 = vcmp.ge.f32.partialorder %v290, 0.0
        %v299 = vmul.f32 %v283, 0.2
        %v300 = vmul.f32 %v284, 0.2
        %v301 = vmul.f32 %v285, 0.2
        %v302 = vmul.f32 %v286, 0.2
        %v303 = vmul.f32 %v287, 0.2
        %v304 = vmul.f32 %v288, 0.2
        %v305 = vmul.f32 %v289, 0.2
        %v306 = vmul.f32 %v290, 0.2
        %v307 = vsel %vm291, %v283, %v299
        %v308 = vsel %vm292, %v284, %v300
        %v309 = vsel %vm293, %v285, %v301
        %v310 = vsel %vm294, %v286, %v302
        %v311 = vsel %vm295, %v287, %v303
        %v312 = vsel %vm296, %v288, %v304
        %v313 = vsel %vm297, %v289, %v305
        %v314 = vsel %vm298, %v290, %v306
        %v315 = vpack.c.bf16 %v308, %v307
        %v316 = vpack.c.bf16 %v310, %v309
        %v317 = vpack.c.bf16 %v312, %v311
        %v318 = vpack.c.bf16 %v314, %v313
        %v319 = vld [vmem:[%s2] sm:$0xf]
        %v320 = vld [vmem:[%s2 + $0x4] sm:$0xf]
        %v321 = vld [vmem:[%s2 + $0x8] sm:$0xf]
        %v322 = vld [vmem:[%s2 + $0xc] sm:$0xf]
        %v323 = vld [vmem:[%s2 + $0x10] sm:$0xf]
        %v324 = vld [vmem:[%s2 + $0x14] sm:$0xf]
        %v325 = vld [vmem:[%s2 + $0x18] sm:$0xf]
        %v326 = vld [vmem:[%s2 + $0x1c] sm:$0xf]
        %v327 = vld [vmem:[%s2 + $0x20] sm:$0xf]
        %v328 = vld [vmem:[%s2 + $0x24] sm:$0xf]
        %v329 = vld [vmem:[%s2 + $0x28] sm:$0xf]
        %v330 = vld [vmem:[%s2 + $0x2c] sm:$0xf]
        %v331 = vld [vmem:[%s2 + $0x30] sm:$0xf]
        %v332 = vld [vmem:[%s2 + $0x34] sm:$0xf]
        %v333 = vld [vmem:[%s2 + $0x38] sm:$0xf]
        %v334 = vld [vmem:[%s2 + $0x3c] sm:$0xf]
        %v335 = vld [vmem:[%s3] sm:$0x1]
        %v337 = vperm.slane %v335, 0
        %v355 = vunpack.c.l.b16 %v319
        %v356 = vunpack.c.l.b16 %v320
        %v357 = vunpack.c.l.b16 %v321
        %v358 = vunpack.c.l.b16 %v322
        %v359 = vunpack.c.l.b16 %v323
        %v360 = vunpack.c.l.b16 %v324
        %v361 = vunpack.c.l.b16 %v325
        %v362 = vunpack.c.l.b16 %v326
        %v363 = vunpack.c.l.b16 %v327
        %v364 = vunpack.c.l.b16 %v328
        %v365 = vunpack.c.l.b16 %v329
        %v366 = vunpack.c.l.b16 %v330
        %v367 = vunpack.c.l.b16 %v331
        %v368 = vunpack.c.l.b16 %v332
        %v369 = vunpack.c.l.b16 %v333
        %v370 = vunpack.c.l.b16 %v334
        %v371 = vpack.c.b16 %v356, %v355
        %v372 = vpack.c.b16 %v358, %v357
        %v373 = vpack.c.b16 %v360, %v359
        %v374 = vpack.c.b16 %v362, %v361
        %v375 = vpack.c.b16 %v364, %v363
        %v376 = vpack.c.b16 %v366, %v365
        %v377 = vpack.c.b16 %v368, %v367
        %v378 = vpack.c.b16 %v370, %v369
        %387 = vmatpush.bf16.msra.mxu0 %v378
        %388 = vmatpush.bf16.msra.mxu0 %v377
        %389 = vmatpush.bf16.msra.mxu0 %v376
        %390 = vmatpush.bf16.msra.mxu0 %v375
        %391 = vmatpush.bf16.msra.mxu0 %v374
        %392 = vmatpush.bf16.msra.mxu0 %v373
        %393 = vmatpush.bf16.msra.mxu0 %v372
        %394 = vmatpush.bf16.msra.mxu0 %v371
        %395 = vmatmul.bf16.gmra.mxu0 %v315
        %v396 = vpop.f32.mrf.mxu0
        %v397 = vadd.f32 %v337, %v396
        %v398 = vpop.f32.mrf.mxu0
        %v399 = vadd.f32 %v337, %v398
        %400 = vmatmul.bf16.gmra.mxu0 %v316
        %v401 = vpop.f32.mrf.mxu0
        %v402 = vadd.f32 %v337, %v401
        %v403 = vpop.f32.mrf.mxu0
        %v404 = vadd.f32 %v337, %v403
        %405 = vmatmul.bf16.gmra.mxu0 %v317
        %v406 = vpop.f32.mrf.mxu0
        %v407 = vadd.f32 %v337, %v406
        %v408 = vpop.f32.mrf.mxu0
        %v409 = vadd.f32 %v337, %v408
        %410 = vmatmul.bf16.gmra.mxu0 %v318
        %v411 = vpop.f32.mrf.mxu0
        %v412 = vadd.f32 %v337, %v411
        %v413 = vpop.f32.mrf.mxu0
        %v414 = vadd.f32 %v337, %v413
        %415 = vdwg.mxu0
        %v416 = vld [vmem:[%s272] sm:$0xff]
        %v417 = vld [vmem:[%s272 + $0x8] sm:$0xff]
        %v418 = vld [vmem:[%s272 + $0x10] sm:$0xff]
        %v419 = vld [vmem:[%s272 + $0x18] sm:$0xff]
        %v420 = vld [vmem:[%s272 + $0x20] sm:$0xff]
        %v421 = vld [vmem:[%s272 + $0x28] sm:$0xff]
        %v422 = vld [vmem:[%s272 + $0x30] sm:$0xff]
        %v423 = vld [vmem:[%s272 + $0x38] sm:$0xff]
        %v424 = vadd.f32 %v416, %v397
        %v425 = vadd.f32 %v417, %v399
        %v426 = vadd.f32 %v418, %v402
        %v427 = vadd.f32 %v419, %v404
        %v428 = vadd.f32 %v420, %v407
        %v429 = vadd.f32 %v421, %v409
        %v430 = vadd.f32 %v422, %v412
        %v431 = vadd.f32 %v423, %v414
        %432 = vadd.xlane.f32.xlu0 %v424
        %v433 = vpop.xlane.xlu0 %432
        %434 = vadd.xlane.f32.xlu0 %v425
        %v435 = vpop.xlane.xlu0 %434
        %436 = vadd.xlane.f32.xlu0 %v426
        %v437 = vpop.xlane.xlu0 %436
        %438 = vadd.xlane.f32.xlu0 %v427
        %v439 = vpop.xlane.xlu0 %438
        %440 = vadd.xlane.f32.xlu0 %v428
        %v441 = vpop.xlane.xlu0 %440
        %442 = vadd.xlane.f32.xlu0 %v429
        %v443 = vpop.xlane.xlu0 %442
        %444 = vadd.xlane.f32.xlu0 %v430
        %v445 = vpop.xlane.xlu0 %444
        %446 = vadd.xlane.f32.xlu0 %v431
        %v447 = vpop.xlane.xlu0 %446
        %v448 = vrcp.pop 128.0
        %v449 = vmul.f32 128.0, %v448
        %v450 = vsub.f32 1.0, %v449
        %v451 = vmul.f32 %v448, %v450
        %v452 = vadd.f32 %v448, %v451
        %vm453 = vweird.f32 %v448
        %v454 = vsel %vm453, %v448, %v452
        %v455 = vmul.f32 %v433, %v454
        %v456 = vmul.f32 %v435, %v454
        %v457 = vmul.f32 %v437, %v454
        %v458 = vmul.f32 %v439, %v454
        %v459 = vmul.f32 %v441, %v454
        %v460 = vmul.f32 %v443, %v454
        %v461 = vmul.f32 %v445, %v454
        %v462 = vmul.f32 %v447, %v454
        %v463 = vsub.f32 %v424, %v455
        %v464 = vsub.f32 %v425, %v456
        %v465 = vsub.f32 %v426, %v457
        %v466 = vsub.f32 %v427, %v458
        %v467 = vsub.f32 %v428, %v459
        %v468 = vsub.f32 %v429, %v460
        %v469 = vsub.f32 %v430, %v461
        %v470 = vsub.f32 %v431, %v462
        %v471 = vmul.f32 %v463, %v463
        %v472 = vmul.f32 %v464, %v464
        %v473 = vmul.f32 %v465, %v465
        %v474 = vmul.f32 %v466, %v466
        %v475 = vmul.f32 %v467, %v467
        %v476 = vmul.f32 %v468, %v468
        %v477 = vmul.f32 %v469, %v469
        %v478 = vmul.f32 %v470, %v470
        %479 = vadd.xlane.f32.xlu0 %v471
        %v480 = vpop.xlane.xlu0 %479
        %481 = vadd.xlane.f32.xlu0 %v472
        %v482 = vpop.xlane.xlu0 %481
        %483 = vadd.xlane.f32.xlu0 %v473
        %v484 = vpop.xlane.xlu0 %483
        %485 = vadd.xlane.f32.xlu0 %v474
        %v486 = vpop.xlane.xlu0 %485
        %487 = vadd.xlane.f32.xlu0 %v475
        %v488 = vpop.xlane.xlu0 %487
        %489 = vadd.xlane.f32.xlu0 %v476
        %v490 = vpop.xlane.xlu0 %489
        %491 = vadd.xlane.f32.xlu0 %v477
        %v492 = vpop.xlane.xlu0 %491
        %493 = vadd.xlane.f32.xlu0 %v478
        %v494 = vpop.xlane.xlu0 %493
        %v495 = vmul.f32 %v480, %v454
        %v496 = vmul.f32 %v482, %v454
        %v497 = vmul.f32 %v484, %v454
        %v498 = vmul.f32 %v486, %v454
        %v499 = vmul.f32 %v488, %v454
        %v500 = vmul.f32 %v490, %v454
        %v501 = vmul.f32 %v492, %v454
        %v502 = vmul.f32 %v494, %v454
        %v503 = vadd.f32 %v495, 1e-05
        %v504 = vadd.f32 %v496, 1e-05
        %v505 = vadd.f32 %v497, 1e-05
        %v506 = vadd.f32 %v498, 1e-05
        %v507 = vadd.f32 %v499, 1e-05
        %v508 = vadd.f32 %v500, 1e-05
        %v509 = vadd.f32 %v501, 1e-05
        %v510 = vadd.f32 %v502, 1e-05
        %v511 = vrsqrt.pop %v503
        %v512 = vmul.f32 %v511, %v503
        %v513 = vmul.f32 %v512, %v511
        %v514 = vmul.f32 0.5, %v513
        %v515 = vsub.f32 1.5, %v514
        %v516 = vmul.f32 %v511, %v515
        %vm517 = vweird.f32 %v503
        %vm518 = vweird.f32 %v511
        %vm519 = vmor %vm517, %vm518
        %v520 = vsel %vm519, %v511, %v516
        %v521 = vrsqrt.pop %v504
        %v522 = vmul.f32 %v521, %v504
        %v523 = vmul.f32 %v522, %v521
        %v524 = vmul.f32 0.5, %v523
        %v525 = vsub.f32 1.5, %v524
        %v526 = vmul.f32 %v521, %v525
        %vm527 = vweird.f32 %v504
        %vm528 = vweird.f32 %v521
        %vm529 = vmor %vm527, %vm528
        %v530 = vsel %vm529, %v521, %v526
        %v531 = vrsqrt.pop %v505
        %v532 = vmul.f32 %v531, %v505
        %v533 = vmul.f32 %v532, %v531
        %v534 = vmul.f32 0.5, %v533
        %v535 = vsub.f32 1.5, %v534
        %v536 = vmul.f32 %v531, %v535
        %vm537 = vweird.f32 %v505
        %vm538 = vweird.f32 %v531
        %vm539 = vmor %vm537, %vm538
        %v540 = vsel %vm539, %v531, %v536
        %v541 = vrsqrt.pop %v506
        %v542 = vmul.f32 %v541, %v506
        %v543 = vmul.f32 %v542, %v541
        %v544 = vmul.f32 0.5, %v543
        %v545 = vsub.f32 1.5, %v544
        %v546 = vmul.f32 %v541, %v545
        %vm547 = vweird.f32 %v506
        %vm548 = vweird.f32 %v541
        %vm549 = vmor %vm547, %vm548
        %v550 = vsel %vm549, %v541, %v546
        %v551 = vrsqrt.pop %v507
        %v552 = vmul.f32 %v551, %v507
        %v553 = vmul.f32 %v552, %v551
        %v554 = vmul.f32 0.5, %v553
        %v555 = vsub.f32 1.5, %v554
        %v556 = vmul.f32 %v551, %v555
        %vm557 = vweird.f32 %v507
        %vm558 = vweird.f32 %v551
        %vm559 = vmor %vm557, %vm558
        %v560 = vsel %vm559, %v551, %v556
        %v561 = vrsqrt.pop %v508
        %v562 = vmul.f32 %v561, %v508
        %v563 = vmul.f32 %v562, %v561
        %v564 = vmul.f32 0.5, %v563
        %v565 = vsub.f32 1.5, %v564
        %v566 = vmul.f32 %v561, %v565
        %vm567 = vweird.f32 %v508
        %vm568 = vweird.f32 %v561
        %vm569 = vmor %vm567, %vm568
        %v570 = vsel %vm569, %v561, %v566
        %v571 = vrsqrt.pop %v509
        %v572 = vmul.f32 %v571, %v509
        %v573 = vmul.f32 %v572, %v571
        %v574 = vmul.f32 0.5, %v573
        %v575 = vsub.f32 1.5, %v574
        %v576 = vmul.f32 %v571, %v575
        %vm577 = vweird.f32 %v509
        %vm578 = vweird.f32 %v571
        %vm579 = vmor %vm577, %vm578
        %v580 = vsel %vm579, %v571, %v576
        %v581 = vrsqrt.pop %v510
        %v582 = vmul.f32 %v581, %v510
        %v583 = vmul.f32 %v582, %v581
        %v584 = vmul.f32 0.5, %v583
        %v585 = vsub.f32 1.5, %v584
        %v586 = vmul.f32 %v581, %v585
        %vm587 = vweird.f32 %v510
        %vm588 = vweird.f32 %v581
        %vm589 = vmor %vm587, %vm588
        %v590 = vsel %vm589, %v581, %v586
        %v591 = vmul.f32 %v463, %v520
        %v592 = vmul.f32 %v464, %v530
        %v593 = vmul.f32 %v465, %v540
        %v594 = vmul.f32 %v466, %v550
        %v595 = vmul.f32 %v467, %v560
        %v596 = vmul.f32 %v468, %v570
        %v597 = vmul.f32 %v469, %v580
        %v598 = vmul.f32 %v470, %v590
        %v599 = vld [vmem:[%s4] sm:$0x1]
        %v601 = vperm.slane %v599, 0
        %v603 = vmul.f32 %v591, %v601
        %v604 = vmul.f32 %v592, %v601
        %v605 = vmul.f32 %v593, %v601
        %v606 = vmul.f32 %v594, %v601
        %v607 = vmul.f32 %v595, %v601
        %v608 = vmul.f32 %v596, %v601
        %v609 = vmul.f32 %v597, %v601
        %v610 = vmul.f32 %v598, %v601
        %v611 = vld [vmem:[%s5] sm:$0x1]
        %v613 = vperm.slane %v611, 0
        %v615 = vadd.f32 %v603, %v613
        %v616 = vadd.f32 %v604, %v613
        %v617 = vadd.f32 %v605, %v613
        %v618 = vadd.f32 %v606, %v613
        %v619 = vadd.f32 %v607, %v613
        %v620 = vadd.f32 %v608, %v613
        %v621 = vadd.f32 %v609, %v613
        %v622 = vadd.f32 %v610, %v613
        %623 = vst [vmem:[%s261] sm:$0xff] %v615
        %624 = vst [vmem:[%s261 + $0x8] sm:$0xff] %v616
        %625 = vst [vmem:[%s261 + $0x10] sm:$0xff] %v617
        %626 = vst [vmem:[%s261 + $0x18] sm:$0xff] %v618
        %627 = vst [vmem:[%s261 + $0x20] sm:$0xff] %v619
        %628 = vst [vmem:[%s261 + $0x28] sm:$0xff] %v620
        %629 = vst [vmem:[%s261 + $0x30] sm:$0xff] %v621
        %630 = vst [vmem:[%s261 + $0x38] sm:$0xff] %v622
        %s631 = sand.u32 %s164, 1
        %s632 = scalar_lea.sflag [#allocation3], %s631
        %s633 = sand.u32 %s164, 1
        %s634 = smul.addr %s633, 64
        %s635 = scalar_lea.vmem [#allocation2], %s634
        // Predicated region
        $region45: #{encoder_forward.7} parent=43 // pred_check
          %p636 = pneg %p174
        $region46: #{encoder_forward.7} parent=43 // pred_check_branch
          %638 = sbr.rel (%p636) target = $region48
        $region47: #{encoder_forward.7} parent=43 // pred_region
          %s639 = smul.u32 8, %s20
          %641 = vsyncadd %s632, 0
          %s642 = smul.addr %s639, 8
          %s643 = scalar_lea.hbm %s6, %s642
          %s644 = sshll.u32 %s635, 4
          %s645 = int_to_ptr.vmem [resolvable:$true] %s644
          %s646 = sshll.u32 %s643, 4
          %s647 = int_to_ptr.hbm [resolvable:$true] %s646
          %652 = dma.vmem_to_hbm [thread:$0]  %s645, 1024, %s647, %s632, 128, 128, 8
        $region48: #{encoder_forward.7} parent=43 // pred_fallthru
          _
      $region44: #{encoder_forward.7} parent=5 // pred_fallthru
        _
      %p653 = scmp.le.s32.totalorder 2, %s15
      // Predicated region
      $region49: #{encoder_forward.7} parent=5 // pred_check
        %p654 = pneg %p653
      $region50: #{encoder_forward.7} parent=5 // pred_check_branch
        %656 = sbr.rel (%p654) target = $region52
      $region51: #{encoder_forward.7} parent=5 // pred_region
        %s657 = ssub.s32 %s15, 2
        // Predicated region
        $region53: #{encoder_forward.7} parent=51 // pred_check
          %p658 = pneg %p180
        $region54: #{encoder_forward.7} parent=51 // pred_check_branch
          %660 = sbr.rel (%p658) target = $region56
        $region55: #{encoder_forward.7} parent=51 // pred_region
          %s661 = sand.u32 %s165, 1
          %s662 = scalar_lea.sflag [#allocation3], %s661
          %s663 = sand.u32 %s165, 1
          %s664 = smul.addr %s663, 64
          %s665 = scalar_lea.vmem [#allocation2], %s664
          %667 = dma.done %s662, 1024
        $region56: #{encoder_forward.7} parent=51 // pred_fallthru
          _
      $region52: #{encoder_forward.7} parent=5 // pred_fallthru
        _
    $region6: #{encoder_forward.7} parent=1 // loop_footer
      %s19 = sadd.s32 1, %s15
    $region7: #{encoder_forward.7} parent=1 // loop_footer_branch
      %14 = sbr.rel target = $region3
    $region8: #{encoder_forward.7} parent=1 // loop_exit
      _
    %668 = vsyncpa [#allocation3], 1
    %s669 = scalar_lea.sflag [#allocation3], 1
    %670 = vsyncpa %s669, 1

// kernel: encoder_forward.5
$region0: #{encoder_forward.5}
  #allocation0 [shape = 'u32[]', space=smem, size = 0x4, offset = 0x4, fixed_abs, tag = 'smem constant byte address 0x4 - core index']
  #allocation1 [shape = 'u32[72,128]{1,0:T(1,128)}', space=vmem, size = 0x9000, scoped, tag = 'internal scratch']
  %s0 = inlined_call_operand.vmem [shape: f32[128,128], index: 0, kind: input, shape index: {}]
  %s1 = inlined_call_operand.vmem [shape: f32[64,128], index: 1, kind: input, shape index: {}]
  %s2 = inlined_call_operand.vmem [shape: bf16[128,384], index: 2, kind: input, shape index: {}]
  %s3 = inlined_call_operand.vmem [shape: f32[1,384], index: 3, kind: input, shape index: {}]
  %s4 = inlined_call_operand.vmem [shape: bf16[128,128], index: 4, kind: output, shape index: {0}]
  %s5 = inlined_call_operand.vmem [shape: bf16[128,128], index: 5, kind: output, shape index: {1}]
  %s6 = inlined_call_operand.vmem [shape: bf16[128,128], index: 6, kind: output, shape index: {2}]
  %7 = xla_tuple %s4, %s5, %s6
  %s8 = sld [smem:[#allocation0]]
  $region65: #{encoder_forward.5} parent=0
    _
  %s10 = ssub.s32 1, %s8
  %s11 = scalar_select 0, %s10, %s8
  loop: start=0, step=1, limit=4
  $region2: #{encoder_forward.5} parent=0 // loop_pre_header
    _
  $region3: #{encoder_forward.5} parent=0 // loop_header
    %s13 = sphi 0, %s17
    %p14 = scmp.ge.s32.totalorder %s13, 4
    %s23 = sphi 0, %s25
    %s26 = sphi 0, %s23
    %s27 = sphi 0, %s26
    %s43 = sphi 0, %s27
    %s47 = sphi 0, %s47
    %s49 = sphi 0, %s47
    %s50 = sphi 0, %s49
    %s64 = sphi 0, %s50
    %s68 = sphi 0, %s68
    %s70 = sphi 0, %s68
    %s71 = sphi 0, %s70
    %s85 = sphi 0, %s71
    %s89 = sphi 0, %s89
    %s91 = sphi 0, %s89
    %s92 = sphi 0, %s91
    %s106 = sphi 0, %s92
    %s112 = sphi 0, %s114
    %s115 = sphi 0, %s112
    %s116 = sphi 0, %s115
    %s132 = sphi 0, %s116
    %s138 = sphi 0, %s140
    %s141 = sphi 0, %s138
    %s142 = sphi 0, %s141
    %s158 = sphi 0, %s142
    %s164 = sphi 0, %s166
    %s167 = sphi 0, %s164
    %s168 = sphi 0, %s167
    %s184 = sphi 0, %s168
  $region4: #{encoder_forward.5} parent=0 // loop_header_branch
    %16 = sbr.rel (%p14) target = $region8
  $region5: #{encoder_forward.5} parent=0 // loop_body
    %s18 = ssub.s32 %s13, 1
    %s19 = ssub.s32 %s13, 2
    %s20 = sadd.s32 %s13, 1
    %s21 = ssub.s32 %s13, %s20
    %p22 = scmp.eq.s32.totalorder %s21, 0
    %s24 = sadd.s32 %s23, 1
    %s25 = scalar_select %p22, %s23, %s24
    %p28 = pneg %p22
    %p29 = scmp.eq.s32.totalorder %s13, 1
    %p30 = por %p28, %p29
    %p31 = scmp.ne.s32.totalorder %s23, %s26
    %p32 = scmp.eq.s32.totalorder %s13, 0
    %p33 = por %p31, %p32
    %p34 = scmp.ne.s32.totalorder %s23, %s26
    %p35 = scmp.eq.s32.totalorder %s18, 1
    %p36 = por %p34, %p35
    %p37 = scmp.ne.s32.totalorder %s26, %s27
    %p38 = scmp.eq.s32.totalorder %s18, 0
    %p39 = por %p37, %p38
    %p40 = scmp.ne.s32.totalorder %s26, %s27
    %p41 = scmp.eq.s32.totalorder %s19, 1
    %p42 = por %p40, %p41
    %p44 = scmp.ne.s32.totalorder %s27, %s43
    %p45 = scmp.eq.s32.totalorder %s19, 0
    %p46 = por %p44, %p45
    %s48 = sadd.s32 %s47, 1
    %p51 = scmp.eq.s32.totalorder %s13, 1
    %p52 = scmp.ne.s32.totalorder %s47, %s49
    %p53 = scmp.eq.s32.totalorder %s13, 0
    %p54 = por %p52, %p53
    %p55 = scmp.ne.s32.totalorder %s47, %s49
    %p56 = scmp.eq.s32.totalorder %s18, 1
    %p57 = por %p55, %p56
    %p58 = scmp.ne.s32.totalorder %s49, %s50
    %p59 = scmp.eq.s32.totalorder %s18, 0
    %p60 = por %p58, %p59
    %p61 = scmp.ne.s32.totalorder %s49, %s50
    %p62 = scmp.eq.s32.totalorder %s19, 1
    %p63 = por %p61, %p62
    %p65 = scmp.ne.s32.totalorder %s50, %s64
    %p66 = scmp.eq.s32.totalorder %s19, 0
    %p67 = por %p65, %p66
    %s69 = sadd.s32 %s68, 1
    %p72 = scmp.eq.s32.totalorder %s13, 1
    %p73 = scmp.ne.s32.totalorder %s68, %s70
    %p74 = scmp.eq.s32.totalorder %s13, 0
    %p75 = por %p73, %p74
    %p76 = scmp.ne.s32.totalorder %s68, %s70
    %p77 = scmp.eq.s32.totalorder %s18, 1
    %p78 = por %p76, %p77
    %p79 = scmp.ne.s32.totalorder %s70, %s71
    %p80 = scmp.eq.s32.totalorder %s18, 0
    %p81 = por %p79, %p80
    %p82 = scmp.ne.s32.totalorder %s70, %s71
    %p83 = scmp.eq.s32.totalorder %s19, 1
    %p84 = por %p82, %p83
    %p86 = scmp.ne.s32.totalorder %s71, %s85
    %p87 = scmp.eq.s32.totalorder %s19, 0
    %p88 = por %p86, %p87
    %s90 = sadd.s32 %s89, 1
    %p93 = scmp.eq.s32.totalorder %s13, 1
    %p94 = scmp.ne.s32.totalorder %s89, %s91
    %p95 = scmp.eq.s32.totalorder %s13, 0
    %p96 = por %p94, %p95
    %p97 = scmp.ne.s32.totalorder %s89, %s91
    %p98 = scmp.eq.s32.totalorder %s18, 1
    %p99 = por %p97, %p98
    %p100 = scmp.ne.s32.totalorder %s91, %s92
    %p101 = scmp.eq.s32.totalorder %s18, 0
    %p102 = por %p100, %p101
    %p103 = scmp.ne.s32.totalorder %s91, %s92
    %p104 = scmp.eq.s32.totalorder %s19, 1
    %p105 = por %p103, %p104
    %p107 = scmp.ne.s32.totalorder %s92, %s106
    %p108 = scmp.eq.s32.totalorder %s19, 0
    %p109 = por %p107, %p108
    %s110 = ssub.s32 %s13, %s20
    %p111 = scmp.eq.s32.totalorder %s110, 0
    %s113 = sadd.s32 %s112, 1
    %s114 = scalar_select %p111, %s112, %s113
    %p117 = pneg %p111
    %p118 = scmp.eq.s32.totalorder %s13, 1
    %p119 = por %p117, %p118
    %p120 = scmp.ne.s32.totalorder %s112, %s115
    %p121 = scmp.eq.s32.totalorder %s13, 0
    %p122 = por %p120, %p121
    %p123 = scmp.ne.s32.totalorder %s112, %s115
    %p124 = scmp.eq.s32.totalorder %s18, 1
    %p125 = por %p123, %p124
    %p126 = scmp.ne.s32.totalorder %s115, %s116
    %p127 = scmp.eq.s32.totalorder %s18, 0
    %p128 = por %p126, %p127
    %p129 = scmp.ne.s32.totalorder %s115, %s116
    %p130 = scmp.eq.s32.totalorder %s19, 1
    %p131 = por %p129, %p130
    %p133 = scmp.ne.s32.totalorder %s116, %s132
    %p134 = scmp.eq.s32.totalorder %s19, 0
    %p135 = por %p133, %p134
    %s136 = ssub.s32 %s13, %s20
    %p137 = scmp.eq.s32.totalorder %s136, 0
    %s139 = sadd.s32 %s138, 1
    %s140 = scalar_select %p137, %s138, %s139
    %p143 = pneg %p137
    %p144 = scmp.eq.s32.totalorder %s13, 1
    %p145 = por %p143, %p144
    %p146 = scmp.ne.s32.totalorder %s138, %s141
    %p147 = scmp.eq.s32.totalorder %s13, 0
    %p148 = por %p146, %p147
    %p149 = scmp.ne.s32.totalorder %s138, %s141
    %p150 = scmp.eq.s32.totalorder %s18, 1
    %p151 = por %p149, %p150
    %p152 = scmp.ne.s32.totalorder %s141, %s142
    %p153 = scmp.eq.s32.totalorder %s18, 0
    %p154 = por %p152, %p153
    %p155 = scmp.ne.s32.totalorder %s141, %s142
    %p156 = scmp.eq.s32.totalorder %s19, 1
    %p157 = por %p155, %p156
    %p159 = scmp.ne.s32.totalorder %s142, %s158
    %p160 = scmp.eq.s32.totalorder %s19, 0
    %p161 = por %p159, %p160
    %s162 = ssub.s32 %s13, %s20
    %p163 = scmp.eq.s32.totalorder %s162, 0
    %s165 = sadd.s32 %s164, 1
    %s166 = scalar_select %p163, %s164, %s165
    %p169 = pneg %p163
    %p170 = scmp.eq.s32.totalorder %s13, 1
    %p171 = por %p169, %p170
    %p172 = scmp.ne.s32.totalorder %s164, %s167
    %p173 = scmp.eq.s32.totalorder %s13, 0
    %p174 = por %p172, %p173
    %p175 = scmp.ne.s32.totalorder %s164, %s167
    %p176 = scmp.eq.s32.totalorder %s18, 1
    %p177 = por %p175, %p176
    %p178 = scmp.ne.s32.totalorder %s167, %s168
    %p179 = scmp.eq.s32.totalorder %s18, 0
    %p180 = por %p178, %p179
    %p181 = scmp.ne.s32.totalorder %s167, %s168
    %p182 = scmp.eq.s32.totalorder %s19, 1
    %p183 = por %p181, %p182
    %p185 = scmp.ne.s32.totalorder %s168, %s184
    %p186 = scmp.eq.s32.totalorder %s19, 0
    %p187 = por %p185, %p186
    %p188 = scmp.le.s32.totalorder 1, %s13
    %p189 = scmp.lt.s32.totalorder %s13, 3
    %p190 = pnand %p188, %p189
    %p191 = pneg %p190
    // Predicated region
    $region9: #{encoder_forward.5} parent=5 // pred_check
      _
    $region10: #{encoder_forward.5} parent=5 // pred_check_branch
      %193 = sbr.rel (%p190) target = $region12
    $region11: #{encoder_forward.5} parent=5 // pred_region
      %s194 = ssub.s32 %s13, 1
      // Predicated region
      $region13: #{encoder_forward.5} parent=11 // pred_check
        %p195 = pneg %p60
      $region14: #{encoder_forward.5} parent=11 // pred_check_branch
        %197 = sbr.rel (%p195) target = $region16
      $region15: #{encoder_forward.5} parent=11 // pred_region
        _
      $region16: #{encoder_forward.5} parent=11 // pred_fallthru
        _
      // Predicated region
      $region17: #{encoder_forward.5} parent=11 // pred_check
        %p198 = pneg %p81
      $region18: #{encoder_forward.5} parent=11 // pred_check_branch
        %200 = sbr.rel (%p198) target = $region20
      $region19: #{encoder_forward.5} parent=11 // pred_region
        _
      $region20: #{encoder_forward.5} parent=11 // pred_fallthru
        _
      // Predicated region
      $region21: #{encoder_forward.5} parent=11 // pred_check
        %p201 = pneg %p102
      $region22: #{encoder_forward.5} parent=11 // pred_check_branch
        %203 = sbr.rel (%p201) target = $region24
      $region23: #{encoder_forward.5} parent=11 // pred_region
        _
      $region24: #{encoder_forward.5} parent=11 // pred_fallthru
        _
    $region12: #{encoder_forward.5} parent=5 // pred_fallthru
      _
    %p204 = scmp.lt.s32.totalorder %s13, 2
    // Predicated region
    $region25: #{encoder_forward.5} parent=5 // pred_check
      %p205 = pneg %p204
    $region26: #{encoder_forward.5} parent=5 // pred_check_branch
      %207 = sbr.rel (%p205) target = $region28
    $region27: #{encoder_forward.5} parent=5 // pred_region
      // Predicated region
      $region29: #{encoder_forward.5} parent=27 // pred_check
        %p208 = pneg %p33
      $region30: #{encoder_forward.5} parent=27 // pred_check_branch
        %210 = sbr.rel (%p208) target = $region32
      $region31: #{encoder_forward.5} parent=27 // pred_region
        %s211 = smul.u32 8, %s13
        %p212 = scmp.lt.s32.totalorder %s211, 15
        %s213 = scalar_select %p212, %s211, 15
        %s214 = smul.addr %s213, 8
        %s215 = scalar_lea.vmem %s0, %s214
        %s216 = smul.u32 8, %s13
      $region32: #{encoder_forward.5} parent=27 // pred_fallthru
        _
    $region28: #{encoder_forward.5} parent=5 // pred_fallthru
      _
    %p217 = scmp.le.s32.totalorder 1, %s13
    %p218 = scmp.lt.s32.totalorder %s13, 3
    %p219 = pnand %p217, %p218
    %p220 = pneg %p219
    // Predicated region
    $region33: #{encoder_forward.5} parent=5 // pred_check
      _
    $region34: #{encoder_forward.5} parent=5 // pred_check_branch
      %222 = sbr.rel (%p219) target = $region36
    $region35: #{encoder_forward.5} parent=5 // pred_region
      %s223 = ssub.s32 %s13, 1
      %s224 = smul.u32 8, %s18
      %p225 = scmp.lt.s32.totalorder %s224, 15
      %s226 = scalar_select %p225, %s224, 15
      %s227 = smul.addr %s226, 8
      %s228 = scalar_lea.vmem %s0, %s227
      %p229 = pneg %p39
      %p230 = pneg %p36
      %p231 = pneg %p60
      %p232 = pneg %p57
      %p233 = pneg %p81
      %p234 = pneg %p78
      %p235 = pneg %p102
      %p236 = pneg %p99
      %p237 = pneg %p128
      %p238 = pneg %p125
      %s239 = smul.u32 8, %s18
      %p240 = scmp.lt.s32.totalorder %s239, 15
      %s241 = scalar_select %p240, %s239, 15
      %s242 = smul.addr %s241, 4
      %s243 = scalar_lea.vmem %s4, %s242
      %p244 = pneg %p154
      %p245 = pneg %p151
      %s246 = smul.u32 8, %s18
      %p247 = scmp.lt.s32.totalorder %s246, 15
      %s248 = scalar_select %p247, %s246, 15
      %s249 = smul.addr %s248, 4
      %s250 = scalar_lea.vmem %s5, %s249
      %p251 = pneg %p180
      %p252 = pneg %p177
      %s253 = smul.u32 8, %s18
      %p254 = scmp.lt.s32.totalorder %s253, 15
      %s255 = scalar_select %p254, %s253, 15
      %s256 = smul.addr %s255, 4
      %s257 = scalar_lea.vmem %s6, %s256
      %s258 = smul.u32 8, %s18
      %p259 = scmp.lt.s32.totalorder %s258, 15
      %s260 = scalar_select %p259, %s258, 15
      %s261 = smul.addr %s260, 8
      %s262 = scalar_lea.vmem %s0, %s261
      %s263 = smul.u32 8, %s18
      %s264 = smul.u32 8, %s18
      %p265 = scmp.lt.s32.totalorder %s264, 15
      %s266 = scalar_select %p265, %s264, 15
      %s267 = smul.addr %s266, 4
      %s268 = scalar_lea.vmem %s4, %s267
      %s269 = smul.u32 8, %s18
      %s270 = smul.u32 8, %s18
      %p271 = scmp.lt.s32.totalorder %s270, 15
      %s272 = scalar_select %p271, %s270, 15
      %s273 = smul.addr %s272, 4
      %s274 = scalar_lea.vmem %s5, %s273
      %s275 = smul.u32 8, %s18
      %s276 = smul.u32 8, %s18
      %p277 = scmp.lt.s32.totalorder %s276, 15
      %s278 = scalar_select %p277, %s276, 15
      %s279 = smul.addr %s278, 4
      %s280 = scalar_lea.vmem %s6, %s279
      %s281 = smul.u32 8, %s18
      %v282 = vld [vmem:[%s262] sm:$0xff]
      %v283 = vld [vmem:[%s262 + $0x8] sm:$0xff]
      %v284 = vld [vmem:[%s262 + $0x10] sm:$0xff]
      %v285 = vld [vmem:[%s262 + $0x18] sm:$0xff]
      %v286 = vld [vmem:[%s262 + $0x20] sm:$0xff]
      %v287 = vld [vmem:[%s262 + $0x28] sm:$0xff]
      %v288 = vld [vmem:[%s262 + $0x30] sm:$0xff]
      %v289 = vld [vmem:[%s262 + $0x38] sm:$0xff]
      %v290 = vld [vmem:[%s1] sm:$0xff]
      %v291 = vld [vmem:[%s1 + $0x8] sm:$0xff]
      %v292 = vld [vmem:[%s1 + $0x10] sm:$0xff]
      %v293 = vld [vmem:[%s1 + $0x18] sm:$0xff]
      %v294 = vld [vmem:[%s1 + $0x20] sm:$0xff]
      %v295 = vld [vmem:[%s1 + $0x28] sm:$0xff]
      %v296 = vld [vmem:[%s1 + $0x30] sm:$0xff]
      %v297 = vld [vmem:[%s1 + $0x38] sm:$0xff]
      %v298 = vadd.f32 %v282, %v290
      %v299 = vadd.f32 %v283, %v291
      %v300 = vadd.f32 %v284, %v292
      %v301 = vadd.f32 %v285, %v293
      %v302 = vadd.f32 %v286, %v294
      %v303 = vadd.f32 %v287, %v295
      %v304 = vadd.f32 %v288, %v296
      %v305 = vadd.f32 %v289, %v297
      %vm306 = vcmp.ge.f32.partialorder %v298, 0.0
      %vm307 = vcmp.ge.f32.partialorder %v299, 0.0
      %vm308 = vcmp.ge.f32.partialorder %v300, 0.0
      %vm309 = vcmp.ge.f32.partialorder %v301, 0.0
      %vm310 = vcmp.ge.f32.partialorder %v302, 0.0
      %vm311 = vcmp.ge.f32.partialorder %v303, 0.0
      %vm312 = vcmp.ge.f32.partialorder %v304, 0.0
      %vm313 = vcmp.ge.f32.partialorder %v305, 0.0
      %v314 = vmul.f32 %v298, 0.2
      %v315 = vmul.f32 %v299, 0.2
      %v316 = vmul.f32 %v300, 0.2
      %v317 = vmul.f32 %v301, 0.2
      %v318 = vmul.f32 %v302, 0.2
      %v319 = vmul.f32 %v303, 0.2
      %v320 = vmul.f32 %v304, 0.2
      %v321 = vmul.f32 %v305, 0.2
      %v322 = vsel %vm306, %v298, %v314
      %v323 = vsel %vm307, %v299, %v315
      %v324 = vsel %vm308, %v300, %v316
      %v325 = vsel %vm309, %v301, %v317
      %v326 = vsel %vm310, %v302, %v318
      %v327 = vsel %vm311, %v303, %v319
      %v328 = vsel %vm312, %v304, %v320
      %v329 = vsel %vm313, %v305, %v321
      %v330 = vpack.c.bf16 %v323, %v322
      %v331 = vpack.c.bf16 %v325, %v324
      %v332 = vpack.c.bf16 %v327, %v326
      %v333 = vpack.c.bf16 %v329, %v328
      %v334 = vld [vmem:[%s2] sm:$0xff]
      %v335 = vld [vmem:[%s2 + $0x8] sm:$0xf]
      %v336 = vld [vmem:[%s2 + $0xc] sm:$0xff]
      %v337 = vld [vmem:[%s2 + $0x14] sm:$0xf]
      %v338 = vld [vmem:[%s2 + $0x18] sm:$0xff]
      %v339 = vld [vmem:[%s2 + $0x20] sm:$0xf]
      %v340 = vld [vmem:[%s2 + $0x24] sm:$0xff]
      %v341 = vld [vmem:[%s2 + $0x2c] sm:$0xf]
      %v342 = vld [vmem:[%s2 + $0x30] sm:$0xff]
      %v343 = vld [vmem:[%s2 + $0x38] sm:$0xf]
      %v344 = vld [vmem:[%s2 + $0x3c] sm:$0xff]
      %v345 = vld [vmem:[%s2 + $0x44] sm:$0xf]
      %v346 = vld [vmem:[%s2 + $0x48] sm:$0xff]
      %v347 = vld [vmem:[%s2 + $0x50] sm:$0xf]
      %v348 = vld [vmem:[%s2 + $0x54] sm:$0xff]
      %v349 = vld [vmem:[%s2 + $0x5c] sm:$0xf]
      %v350 = vld [vmem:[%s2 + $0x60] sm:$0xff]
      %v351 = vld [vmem:[%s2 + $0x68] sm:$0xf]
      %v352 = vld [vmem:[%s2 + $0x6c] sm:$0xff]
      %v353 = vld [vmem:[%s2 + $0x74] sm:$0xf]
      %v354 = vld [vmem:[%s2 + $0x78] sm:$0xff]
      %v355 = vld [vmem:[%s2 + $0x80] sm:$0xf]
      %v356 = vld [vmem:[%s2 + $0x84] sm:$0xff]
      %v357 = vld [vmem:[%s2 + $0x8c] sm:$0xf]
      %v358 = vld [vmem:[%s2 + $0x90] sm:$0xff]
      %v359 = vld [vmem:[%s2 + $0x98] sm:$0xf]
      %v360 = vld [vmem:[%s2 + $0x9c] sm:$0xff]
      %v361 = vld [vmem:[%s2 + $0xa4] sm:$0xf]
      %v362 = vld [vmem:[%s2 + $0xa8] sm:$0xff]
      %v363 = vld [vmem:[%s2 + $0xb0] sm:$0xf]
      %v364 = vld [vmem:[%s2 + $0xb4] sm:$0xff]
      %v365 = vld [vmem:[%s2 + $0xbc] sm:$0xf]
      %v366 = vld [vmem:[%s3] sm:$0x7]
      %v368 = vperm.slane %v366, 0
      %v369 = vperm.slane %v366, 1
      %v370 = vperm.slane %v366, 2
      %v406 = vunpack.c.l.b16 %v334
      %v407 = vunpack.c.h.b16 %v334
      %v408 = vunpack.c.l.b16 %v335
      %v409 = vunpack.c.l.b16 %v336
      %v410 = vunpack.c.h.b16 %v336
      %v411 = vunpack.c.l.b16 %v337
      %v412 = vunpack.c.l.b16 %v338
      %v413 = vunpack.c.h.b16 %v338
      %v414 = vunpack.c.l.b16 %v339
      %v415 = vunpack.c.l.b16 %v340
      %v416 = vunpack.c.h.b16 %v340
      %v417 = vunpack.c.l.b16 %v341
      %v418 = vunpack.c.l.b16 %v342
      %v419 = vunpack.c.h.b16 %v342
      %v420 = vunpack.c.l.b16 %v343
      %v421 = vunpack.c.l.b16 %v344
      %v422 = vunpack.c.h.b16 %v344
      %v423 = vunpack.c.l.b16 %v345
      %v424 = vunpack.c.l.b16 %v346
      %v425 = vunpack.c.h.b16 %v346
      %v426 = vunpack.c.l.b16 %v347
      %v427 = vunpack.c.l.b16 %v348
      %v428 = vunpack.c.h.b16 %v348
      %v429 = vunpack.c.l.b16 %v349
      %v430 = vunpack.c.l.b16 %v350
      %v431 = vunpack.c.h.b16 %v350
      %v432 = vunpack.c.l.b16 %v351
      %v433 = vunpack.c.l.b16 %v352
      %v434 = vunpack.c.h.b16 %v352
      %v435 = vunpack.c.l.b16 %v353
      %v436 = vunpack.c.l.b16 %v354
      %v437 = vunpack.c.h.b16 %v354
      %v438 = vunpack.c.l.b16 %v355
      %v439 = vunpack.c.l.b16 %v356
      %v440 = vunpack.c.h.b16 %v356
      %v441 = vunpack.c.l.b16 %v357
      %v442 = vunpack.c.l.b16 %v358
      %v443 = vunpack.c.h.b16 %v358
      %v444 = vunpack.c.l.b16 %v359
      %v445 = vunpack.c.l.b16 %v360
      %v446 = vunpack.c.h.b16 %v360
      %v447 = vunpack.c.l.b16 %v361
      %v448 = vunpack.c.l.b16 %v362
      %v449 = vunpack.c.h.b16 %v362
      %v450 = vunpack.c.l.b16 %v363
      %v451 = vunpack.c.l.b16 %v364
      %v452 = vunpack.c.h.b16 %v364
      %v453 = vunpack.c.l.b16 %v365
      %v454 = vpack.c.b16 %v409, %v406
      %v455 = vpack.c.b16 %v410, %v407
      %v456 = vpack.c.b16 %v411, %v408
      %v457 = vpack.c.b16 %v415, %v412
      %v458 = vpack.c.b16 %v416, %v413
      %v459 = vpack.c.b16 %v417, %v414
      %v460 = vpack.c.b16 %v421, %v418
      %v461 = vpack.c.b16 %v422, %v419
      %v462 = vpack.c.b16 %v423, %v420
      %v463 = vpack.c.b16 %v427, %v424
      %v464 = vpack.c.b16 %v428, %v425
      %v465 = vpack.c.b16 %v429, %v426
      %v466 = vpack.c.b16 %v433, %v430
      %v467 = vpack.c.b16 %v434, %v431
      %v468 = vpack.c.b16 %v435, %v432
      %v469 = vpack.c.b16 %v439, %v436
      %v470 = vpack.c.b16 %v440, %v437
      %v471 = vpack.c.b16 %v441, %v438
      %v472 = vpack.c.b16 %v445, %v442
      %v473 = vpack.c.b16 %v446, %v443
      %v474 = vpack.c.b16 %v447, %v444
      %v475 = vpack.c.b16 %v451, %v448
      %v476 = vpack.c.b16 %v452, %v449
      %v477 = vpack.c.b16 %v453, %v450
      %502 = vmatpush.bf16.msra.mxu0 %v475
      %503 = vmatpush.bf16.msra.mxu0 %v472
      %504 = vmatpush.bf16.msra.mxu0 %v469
      %505 = vmatpush.bf16.msra.mxu0 %v466
      %506 = vmatpush.bf16.msra.mxu0 %v463
      %507 = vmatpush.bf16.msra.mxu0 %v460
      %508 = vmatpush.bf16.msra.mxu0 %v457
      %509 = vmatpush.bf16.msra.mxu0 %v454
      %510 = vmatmul.bf16.gmra.mxu0 %v330
      %v511 = vpop.f32.mrf.mxu0
      %v512 = vadd.f32 %v368, %v511
      %v513 = vpop.f32.mrf.mxu0
      %v514 = vadd.f32 %v368, %v513
      %515 = vmatmul.bf16.gmra.mxu0 %v331
      %v516 = vpop.f32.mrf.mxu0
      %v517 = vadd.f32 %v368, %v516
      %v518 = vpop.f32.mrf.mxu0
      %v519 = vadd.f32 %v368, %v518
      %520 = vmatmul.bf16.gmra.mxu0 %v332
      %v521 = vpop.f32.mrf.mxu0
      %v522 = vadd.f32 %v368, %v521
      %v523 = vpop.f32.mrf.mxu0
      %v524 = vadd.f32 %v368, %v523
      %525 = vmatmul.bf16.gmra.mxu0 %v333
      %v526 = vpop.f32.mrf.mxu0
      %v527 = vadd.f32 %v368, %v526
      %v528 = vpop.f32.mrf.mxu0
      %v529 = vadd.f32 %v368, %v528
      %530 = vdwg.mxu0
      %531 = vmatpush.bf16.msra.mxu0 %v476
      %532 = vmatpush.bf16.msra.mxu0 %v473
      %533 = vmatpush.bf16.msra.mxu0 %v470
      %534 = vmatpush.bf16.msra.mxu0 %v467
      %535 = vmatpush.bf16.msra.mxu0 %v464
      %536 = vmatpush.bf16.msra.mxu0 %v461
      %537 = vmatpush.bf16.msra.mxu0 %v458
      %538 = vmatpush.bf16.msra.mxu0 %v455
      %539 = vmatmul.bf16.gmra.mxu0 %v330
      %v540 = vpop.f32.mrf.mxu0
      %v541 = vadd.f32 %v369, %v540
      %v542 = vpop.f32.mrf.mxu0
      %v543 = vadd.f32 %v369, %v542
      %544 = vmatmul.bf16.gmra.mxu0 %v331
      %v545 = vpop.f32.mrf.mxu0
      %v546 = vadd.f32 %v369, %v545
      %v547 = vpop.f32.mrf.mxu0
      %v548 = vadd.f32 %v369, %v547
      %549 = vmatmul.bf16.gmra.mxu0 %v332
      %v550 = vpop.f32.mrf.mxu0
      %v551 = vadd.f32 %v369, %v550
      %v552 = vpop.f32.mrf.mxu0
      %v553 = vadd.f32 %v369, %v552
      %554 = vmatmul.bf16.gmra.mxu0 %v333
      %v555 = vpop.f32.mrf.mxu0
      %v556 = vadd.f32 %v369, %v555
      %v557 = vpop.f32.mrf.mxu0
      %v558 = vadd.f32 %v369, %v557
      %559 = vdwg.mxu0
      %560 = vmatpush.bf16.msra.mxu0 %v477
      %561 = vmatpush.bf16.msra.mxu0 %v474
      %562 = vmatpush.bf16.msra.mxu0 %v471
      %563 = vmatpush.bf16.msra.mxu0 %v468
      %564 = vmatpush.bf16.msra.mxu0 %v465
      %565 = vmatpush.bf16.msra.mxu0 %v462
      %566 = vmatpush.bf16.msra.mxu0 %v459
      %567 = vmatpush.bf16.msra.mxu0 %v456
      %568 = vmatmul.bf16.gmra.mxu0 %v330
      %v569 = vpop.f32.mrf.mxu0
      %v570 = vadd.f32 %v370, %v569
      %v571 = vpop.f32.mrf.mxu0
      %v572 = vadd.f32 %v370, %v571
      %573 = vmatmul.bf16.gmra.mxu0 %v331
      %v574 = vpop.f32.mrf.mxu0
      %v575 = vadd.f32 %v370, %v574
      %v576 = vpop.f32.mrf.mxu0
      %v577 = vadd.f32 %v370, %v576
      %578 = vmatmul.bf16.gmra.mxu0 %v332
      %v579 = vpop.f32.mrf.mxu0
      %v580 = vadd.f32 %v370, %v579
      %v581 = vpop.f32.mrf.mxu0
      %v582 = vadd.f32 %v370, %v581
      %583 = vmatmul.bf16.gmra.mxu0 %v333
      %v584 = vpop.f32.mrf.mxu0
      %v585 = vadd.f32 %v370, %v584
      %v586 = vpop.f32.mrf.mxu0
      %v587 = vadd.f32 %v370, %v586
      %588 = vdwg.mxu0
      %v589 = vpack.c.bf16 %v512, %v512
      %v590 = vpack.c.bf16 %v514, %v514
      %v591 = vpack.c.bf16 %v517, %v517
      %v592 = vpack.c.bf16 %v519, %v519
      %v593 = vpack.c.bf16 %v522, %v522
      %v594 = vpack.c.bf16 %v524, %v524
      %v595 = vpack.c.bf16 %v527, %v527
      %v596 = vpack.c.bf16 %v529, %v529
      %597 = vst [vmem:[%s268] sm:$0xf] %v589
      %598 = vst [vmem:[%s268 + $0x4] sm:$0xf] %v590
      %599 = vst [vmem:[%s268 + $0x8] sm:$0xf] %v591
      %600 = vst [vmem:[%s268 + $0xc] sm:$0xf] %v592
      %601 = vst [vmem:[%s268 + $0x10] sm:$0xf] %v593
      %602 = vst [vmem:[%s268 + $0x14] sm:$0xf] %v594
      %603 = vst [vmem:[%s268 + $0x18] sm:$0xf] %v595
      %604 = vst [vmem:[%s268 + $0x1c] sm:$0xf] %v596
      %v605 = vpack.c.bf16 %v541, %v541
      %v606 = vpack.c.bf16 %v543, %v543
      %v607 = vpack.c.bf16 %v546, %v546
      %v608 = vpack.c.bf16 %v548, %v548
      %v609 = vpack.c.bf16 %v551, %v551
      %v610 = vpack.c.bf16 %v553, %v553
      %v611 = vpack.c.bf16 %v556, %v556
      %v612 = vpack.c.bf16 %v558, %v558
      %613 = vst [vmem:[%s274] sm:$0xf] %v605
      %614 = vst [vmem:[%s274 + $0x4] sm:$0xf] %v606
      %615 = vst [vmem:[%s274 + $0x8] sm:$0xf] %v607
      %616 = vst [vmem:[%s274 + $0xc] sm:$0xf] %v608
      %617 = vst [vmem:[%s274 + $0x10] sm:$0xf] %v609
      %618 = vst [vmem:[%s274 + $0x14] sm:$0xf] %v610
      %619 = vst [vmem:[%s274 + $0x18] sm:$0xf] %v611
      %620 = vst [vmem:[%s274 + $0x1c] sm:$0xf] %v612
      %v621 = vpack.c.bf16 %v570, %v570
      %v622 = vpack.c.bf16 %v572, %v572
      %v623 = vpack.c.bf16 %v575, %v575
      %v624 = vpack.c.bf16 %v577, %v577
      %v625 = vpack.c.bf16 %v580, %v580
      %v626 = vpack.c.bf16 %v582, %v582
      %v627 = vpack.c.bf16 %v585, %v585
      %v628 = vpack.c.bf16 %v587, %v587
      %629 = vst [vmem:[%s280] sm:$0xf] %v621
      %630 = vst [vmem:[%s280 + $0x4] sm:$0xf] %v622
      %631 = vst [vmem:[%s280 + $0x8] sm:$0xf] %v623
      %632 = vst [vmem:[%s280 + $0xc] sm:$0xf] %v624
      %633 = vst [vmem:[%s280 + $0x10] sm:$0xf] %v625
      %634 = vst [vmem:[%s280 + $0x14] sm:$0xf] %v626
      %635 = vst [vmem:[%s280 + $0x18] sm:$0xf] %v627
      %636 = vst [vmem:[%s280 + $0x1c] sm:$0xf] %v628
      %s637 = smul.u32 8, %s18
      %p638 = scmp.lt.s32.totalorder %s637, 15
      %s639 = scalar_select %p638, %s637, 15
      %s640 = smul.addr %s639, 4
      %s641 = scalar_lea.vmem %s4, %s640
      %s642 = smul.u32 8, %s18
      %p643 = scmp.lt.s32.totalorder %s642, 15
      %s644 = scalar_select %p643, %s642, 15
      %s645 = smul.addr %s644, 4
      %s646 = scalar_lea.vmem %s5, %s645
      %s647 = smul.u32 8, %s18
      %p648 = scmp.lt.s32.totalorder %s647, 15
      %s649 = scalar_select %p648, %s647, 15
      %s650 = smul.addr %s649, 4
      %s651 = scalar_lea.vmem %s6, %s650
      // Predicated region
      $region37: #{encoder_forward.5} parent=35 // pred_check
        %p652 = pneg %p125
      $region38: #{encoder_forward.5} parent=35 // pred_check_branch
        %654 = sbr.rel (%p652) target = $region40
      $region39: #{encoder_forward.5} parent=35 // pred_region
        %s655 = smul.u32 8, %s18
      $region40: #{encoder_forward.5} parent=35 // pred_fallthru
        _
      // Predicated region
      $region41: #{encoder_forward.5} parent=35 // pred_check
        %p656 = pneg %p151
      $region42: #{encoder_forward.5} parent=35 // pred_check_branch
        %658 = sbr.rel (%p656) target = $region44
      $region43: #{encoder_forward.5} parent=35 // pred_region
        %s659 = smul.u32 8, %s18
      $region44: #{encoder_forward.5} parent=35 // pred_fallthru
        _
      // Predicated region
      $region45: #{encoder_forward.5} parent=35 // pred_check
        %p660 = pneg %p177
      $region46: #{encoder_forward.5} parent=35 // pred_check_branch
        %662 = sbr.rel (%p660) target = $region48
      $region47: #{encoder_forward.5} parent=35 // pred_region
        %s663 = smul.u32 8, %s18
      $region48: #{encoder_forward.5} parent=35 // pred_fallthru
        _
    $region36: #{encoder_forward.5} parent=5 // pred_fallthru
      _
    %p664 = scmp.le.s32.totalorder 2, %s13
    // Predicated region
    $region49: #{encoder_forward.5} parent=5 // pred_check
      %p665 = pneg %p664
    $region50: #{encoder_forward.5} parent=5 // pred_check_branch
      %667 = sbr.rel (%p665) target = $region52
    $region51: #{encoder_forward.5} parent=5 // pred_region
      %s668 = ssub.s32 %s13, 2
      // Predicated region
      $region53: #{encoder_forward.5} parent=51 // pred_check
        %p669 = pneg %p131
      $region54: #{encoder_forward.5} parent=51 // pred_check_branch
        %671 = sbr.rel (%p669) target = $region56
      $region55: #{encoder_forward.5} parent=51 // pred_region
        %s672 = smul.u32 8, %s19
        %p673 = scmp.lt.s32.totalorder %s672, 15
        %s674 = scalar_select %p673, %s672, 15
        %s675 = smul.addr %s674, 4
        %s676 = scalar_lea.vmem %s4, %s675
      $region56: #{encoder_forward.5} parent=51 // pred_fallthru
        _
      // Predicated region
      $region57: #{encoder_forward.5} parent=51 // pred_check
        %p677 = pneg %p157
      $region58: #{encoder_forward.5} parent=51 // pred_check_branch
        %679 = sbr.rel (%p677) target = $region60
      $region59: #{encoder_forward.5} parent=51 // pred_region
        %s680 = smul.u32 8, %s19
        %p681 = scmp.lt.s32.totalorder %s680, 15
        %s682 = scalar_select %p681, %s680, 15
        %s683 = smul.addr %s682, 4
        %s684 = scalar_lea.vmem %s5, %s683
      $region60: #{encoder_forward.5} parent=51 // pred_fallthru
        _
      // Predicated region
      $region61: #{encoder_forward.5} parent=51 // pred_check
        %p685 = pneg %p183
      $region62: #{encoder_forward.5} parent=51 // pred_check_branch
        %687 = sbr.rel (%p685) target = $region64
      $region63: #{encoder_forward.5} parent=51 // pred_region
        %s688 = smul.u32 8, %s19
        %p689 = scmp.lt.s32.totalorder %s688, 15
        %s690 = scalar_select %p689, %s688, 15
        %s691 = smul.addr %s690, 4
        %s692 = scalar_lea.vmem %s6, %s691
      $region64: #{encoder_forward.5} parent=51 // pred_fallthru
        _
    $region52: #{encoder_forward.5} parent=5 // pred_fallthru
      _
  $region6: #{encoder_forward.5} parent=0 // loop_footer
    %s17 = sadd.s32 1, %s13
  $region7: #{encoder_forward.5} parent=0 // loop_footer_branch
    %12 = sbr.rel target = $region3
  $region8: #{encoder_forward.5} parent=0 // loop_exit
    _

// kernel: encoder_forward.6
$region0: #{encoder_forward.6}
  #allocation0 [shape = 'u32[]', space=smem, size = 0x4, offset = 0x4, fixed_abs, tag = 'smem constant byte address 0x4 - core index']
  #allocation1 [shape = 'u32[72,128]{1,0:T(1,128)}', space=vmem, size = 0x9000, scoped, tag = 'internal scratch']
  %s0 = inlined_call_operand.vmem [shape: bf16[128,128], index: 0, kind: input, shape index: {}]
  %s1 = inlined_call_operand.vmem [shape: bf16[128,128], index: 1, kind: input, shape index: {}]
  %s2 = inlined_call_operand.vmem [shape: bf16[128,128], index: 2, kind: input, shape index: {}]
  %s3 = inlined_call_operand.vmem [shape: bf16[128,128], index: 3, kind: input, shape index: {}]
  %s4 = inlined_call_operand.vmem [shape: f32[1,128], index: 4, kind: input, shape index: {}]
  %s5 = inlined_call_operand.vmem [shape: bf16[128,128], index: 5, kind: output, shape index: {0}]
  %s6 = inlined_call_operand.vmem [shape: f32[2,1,128], index: 6, kind: output, shape index: {1}]
  %s7 = inlined_call_operand.vmem [shape: f32[2,1,128], index: 7, kind: output, shape index: {2}]
  %8 = xla_tuple %s5, %s6, %s7
  %s9 = sld [smem:[#allocation0]]
  $region69: #{encoder_forward.6} parent=0
    _
  %s11 = ssub.s32 1, %s9
  %s12 = scalar_select 0, %s11, %s9
  loop: start=0, step=1, limit=4
  $region2: #{encoder_forward.6} parent=0 // loop_pre_header
    _
  $region3: #{encoder_forward.6} parent=0 // loop_header
    %s14 = sphi 0, %s18
    %p15 = scmp.ge.s32.totalorder %s14, 4
    %s24 = sphi 0, %s26
    %s27 = sphi 0, %s24
    %s28 = sphi 0, %s27
    %s44 = sphi 0, %s28
    %s50 = sphi 0, %s52
    %s53 = sphi 0, %s50
    %s54 = sphi 0, %s53
    %s70 = sphi 0, %s54
    %s76 = sphi 0, %s78
    %s79 = sphi 0, %s76
    %s80 = sphi 0, %s79
    %s96 = sphi 0, %s80
    %s100 = sphi 0, %s100
    %s102 = sphi 0, %s100
    %s103 = sphi 0, %s102
    %s117 = sphi 0, %s103
    %s121 = sphi 0, %s121
    %s123 = sphi 0, %s121
    %s124 = sphi 0, %s123
    %s138 = sphi 0, %s124
    %s144 = sphi 0, %s146
    %s147 = sphi 0, %s144
    %s148 = sphi 0, %s147
    %s164 = sphi 0, %s148
    %s170 = sphi 0, %s172
    %s173 = sphi 0, %s170
    %s174 = sphi 0, %s173
    %s190 = sphi 0, %s174
    %s196 = sphi 0, %s198
    %s199 = sphi 0, %s196
    %s200 = sphi 0, %s199
    %s216 = sphi 0, %s200
  $region4: #{encoder_forward.6} parent=0 // loop_header_branch
    %17 = sbr.rel (%p15) target = $region8
  $region5: #{encoder_forward.6} parent=0 // loop_body
    %s19 = ssub.s32 %s14, 1
    %s20 = ssub.s32 %s14, 2
    %s21 = sadd.s32 %s14, 1
    %s22 = ssub.s32 %s14, %s21
    %p23 = scmp.eq.s32.totalorder %s22, 0
    %s25 = sadd.s32 %s24, 1
    %s26 = scalar_select %p23, %s24, %s25
    %p29 = pneg %p23
    %p30 = scmp.eq.s32.totalorder %s14, 1
    %p31 = por %p29, %p30
    %p32 = scmp.ne.s32.totalorder %s24, %s27
    %p33 = scmp.eq.s32.totalorder %s14, 0
    %p34 = por %p32, %p33
    %p35 = scmp.ne.s32.totalorder %s24, %s27
    %p36 = scmp.eq.s32.totalorder %s19, 1
    %p37 = por %p35, %p36
    %p38 = scmp.ne.s32.totalorder %s27, %s28
    %p39 = scmp.eq.s32.totalorder %s19, 0
    %p40 = por %p38, %p39
    %p41 = scmp.ne.s32.totalorder %s27, %s28
    %p42 = scmp.eq.s32.totalorder %s20, 1
    %p43 = por %p41, %p42
    %p45 = scmp.ne.s32.totalorder %s28, %s44
    %p46 = scmp.eq.s32.totalorder %s20, 0
    %p47 = por %p45, %p46
    %s48 = ssub.s32 %s14, %s21
    %p49 = scmp.eq.s32.totalorder %s48, 0
    %s51 = sadd.s32 %s50, 1
    %s52 = scalar_select %p49, %s50, %s51
    %p55 = pneg %p49
    %p56 = scmp.eq.s32.totalorder %s14, 1
    %p57 = por %p55, %p56
    %p58 = scmp.ne.s32.totalorder %s50, %s53
    %p59 = scmp.eq.s32.totalorder %s14, 0
    %p60 = por %p58, %p59
    %p61 = scmp.ne.s32.totalorder %s50, %s53
    %p62 = scmp.eq.s32.totalorder %s19, 1
    %p63 = por %p61, %p62
    %p64 = scmp.ne.s32.totalorder %s53, %s54
    %p65 = scmp.eq.s32.totalorder %s19, 0
    %p66 = por %p64, %p65
    %p67 = scmp.ne.s32.totalorder %s53, %s54
    %p68 = scmp.eq.s32.totalorder %s20, 1
    %p69 = por %p67, %p68
    %p71 = scmp.ne.s32.totalorder %s54, %s70
    %p72 = scmp.eq.s32.totalorder %s20, 0
    %p73 = por %p71, %p72
    %s74 = ssub.s32 %s14, %s21
    %p75 = scmp.eq.s32.totalorder %s74, 0
    %s77 = sadd.s32 %s76, 1
    %s78 = scalar_select %p75, %s76, %s77
    %p81 = pneg %p75
    %p82 = scmp.eq.s32.totalorder %s14, 1
    %p83 = por %p81, %p82
    %p84 = scmp.ne.s32.totalorder %s76, %s79
    %p85 = scmp.eq.s32.totalorder %s14, 0
    %p86 = por %p84, %p85
    %p87 = scmp.ne.s32.totalorder %s76, %s79
    %p88 = scmp.eq.s32.totalorder %s19, 1
    %p89 = por %p87, %p88
    %p90 = scmp.ne.s32.totalorder %s79, %s80
    %p91 = scmp.eq.s32.totalorder %s19, 0
    %p92 = por %p90, %p91
    %p93 = scmp.ne.s32.totalorder %s79, %s80
    %p94 = scmp.eq.s32.totalorder %s20, 1
    %p95 = por %p93, %p94
    %p97 = scmp.ne.s32.totalorder %s80, %s96
    %p98 = scmp.eq.s32.totalorder %s20, 0
    %p99 = por %p97, %p98
    %s101 = sadd.s32 %s100, 1
    %p104 = scmp.eq.s32.totalorder %s14, 1
    %p105 = scmp.ne.s32.totalorder %s100, %s102
    %p106 = scmp.eq.s32.totalorder %s14, 0
    %p107 = por %p105, %p106
    %p108 = scmp.ne.s32.totalorder %s100, %s102
    %p109 = scmp.eq.s32.totalorder %s19, 1
    %p110 = por %p108, %p109
    %p111 = scmp.ne.s32.totalorder %s102, %s103
    %p112 = scmp.eq.s32.totalorder %s19, 0
    %p113 = por %p111, %p112
    %p114 = scmp.ne.s32.totalorder %s102, %s103
    %p115 = scmp.eq.s32.totalorder %s20, 1
    %p116 = por %p114, %p115
    %p118 = scmp.ne.s32.totalorder %s103, %s117
    %p119 = scmp.eq.s32.totalorder %s20, 0
    %p120 = por %p118, %p119
    %s122 = sadd.s32 %s121, 1
    %p125 = scmp.eq.s32.totalorder %s14, 1
    %p126 = scmp.ne.s32.totalorder %s121, %s123
    %p127 = scmp.eq.s32.totalorder %s14, 0
    %p128 = por %p126, %p127
    %p129 = scmp.ne.s32.totalorder %s121, %s123
    %p130 = scmp.eq.s32.totalorder %s19, 1
    %p131 = por %p129, %p130
    %p132 = scmp.ne.s32.totalorder %s123, %s124
    %p133 = scmp.eq.s32.totalorder %s19, 0
    %p134 = por %p132, %p133
    %p135 = scmp.ne.s32.totalorder %s123, %s124
    %p136 = scmp.eq.s32.totalorder %s20, 1
    %p137 = por %p135, %p136
    %p139 = scmp.ne.s32.totalorder %s124, %s138
    %p140 = scmp.eq.s32.totalorder %s20, 0
    %p141 = por %p139, %p140
    %s142 = ssub.s32 %s14, %s21
    %p143 = scmp.eq.s32.totalorder %s142, 0
    %s145 = sadd.s32 %s144, 1
    %s146 = scalar_select %p143, %s144, %s145
    %p149 = pneg %p143
    %p150 = scmp.eq.s32.totalorder %s14, 1
    %p151 = por %p149, %p150
    %p152 = scmp.ne.s32.totalorder %s144, %s147
    %p153 = scmp.eq.s32.totalorder %s14, 0
    %p154 = por %p152, %p153
    %p155 = scmp.ne.s32.totalorder %s144, %s147
    %p156 = scmp.eq.s32.totalorder %s19, 1
    %p157 = por %p155, %p156
    %p158 = scmp.ne.s32.totalorder %s147, %s148
    %p159 = scmp.eq.s32.totalorder %s19, 0
    %p160 = por %p158, %p159
    %p161 = scmp.ne.s32.totalorder %s147, %s148
    %p162 = scmp.eq.s32.totalorder %s20, 1
    %p163 = por %p161, %p162
    %p165 = scmp.ne.s32.totalorder %s148, %s164
    %p166 = scmp.eq.s32.totalorder %s20, 0
    %p167 = por %p165, %p166
    %s168 = ssub.s32 %s14, %s21
    %p169 = scmp.eq.s32.totalorder %s168, 0
    %s171 = sadd.s32 %s170, 1
    %s172 = scalar_select %p169, %s170, %s171
    %p175 = pneg %p169
    %p176 = scmp.eq.s32.totalorder %s14, 1
    %p177 = por %p175, %p176
    %p178 = scmp.ne.s32.totalorder %s170, %s173
    %p179 = scmp.eq.s32.totalorder %s14, 0
    %p180 = por %p178, %p179
    %p181 = scmp.ne.s32.totalorder %s170, %s173
    %p182 = scmp.eq.s32.totalorder %s19, 1
    %p183 = por %p181, %p182
    %p184 = scmp.ne.s32.totalorder %s173, %s174
    %p185 = scmp.eq.s32.totalorder %s19, 0
    %p186 = por %p184, %p185
    %p187 = scmp.ne.s32.totalorder %s173, %s174
    %p188 = scmp.eq.s32.totalorder %s20, 1
    %p189 = por %p187, %p188
    %p191 = scmp.ne.s32.totalorder %s174, %s190
    %p192 = scmp.eq.s32.totalorder %s20, 0
    %p193 = por %p191, %p192
    %s194 = ssub.s32 %s14, %s21
    %p195 = scmp.eq.s32.totalorder %s194, 0
    %s197 = sadd.s32 %s196, 1
    %s198 = scalar_select %p195, %s196, %s197
    %p201 = pneg %p195
    %p202 = scmp.eq.s32.totalorder %s14, 1
    %p203 = por %p201, %p202
    %p204 = scmp.ne.s32.totalorder %s196, %s199
    %p205 = scmp.eq.s32.totalorder %s14, 0
    %p206 = por %p204, %p205
    %p207 = scmp.ne.s32.totalorder %s196, %s199
    %p208 = scmp.eq.s32.totalorder %s19, 1
    %p209 = por %p207, %p208
    %p210 = scmp.ne.s32.totalorder %s199, %s200
    %p211 = scmp.eq.s32.totalorder %s19, 0
    %p212 = por %p210, %p211
    %p213 = scmp.ne.s32.totalorder %s199, %s200
    %p214 = scmp.eq.s32.totalorder %s20, 1
    %p215 = por %p213, %p214
    %p217 = scmp.ne.s32.totalorder %s200, %s216
    %p218 = scmp.eq.s32.totalorder %s20, 0
    %p219 = por %p217, %p218
    %p220 = scmp.le.s32.totalorder 1, %s14
    %p221 = scmp.lt.s32.totalorder %s14, 3
    %p222 = pnand %p220, %p221
    %p223 = pneg %p222
    // Predicated region
    $region9: #{encoder_forward.6} parent=5 // pred_check
      _
    $region10: #{encoder_forward.6} parent=5 // pred_check_branch
      %225 = sbr.rel (%p222) target = $region12
    $region11: #{encoder_forward.6} parent=5 // pred_region
      %s226 = ssub.s32 %s14, 1
      // Predicated region
      $region13: #{encoder_forward.6} parent=11 // pred_check
        %p227 = pneg %p113
      $region14: #{encoder_forward.6} parent=11 // pred_check_branch
        %229 = sbr.rel (%p227) target = $region16
      $region15: #{encoder_forward.6} parent=11 // pred_region
        _
      $region16: #{encoder_forward.6} parent=11 // pred_fallthru
        _
      // Predicated region
      $region17: #{encoder_forward.6} parent=11 // pred_check
        %p230 = pneg %p134
      $region18: #{encoder_forward.6} parent=11 // pred_check_branch
        %232 = sbr.rel (%p230) target = $region20
      $region19: #{encoder_forward.6} parent=11 // pred_region
        _
      $region20: #{encoder_forward.6} parent=11 // pred_fallthru
        _
    $region12: #{encoder_forward.6} parent=5 // pred_fallthru
      _
    %p233 = scmp.lt.s32.totalorder %s14, 2
    // Predicated region
    $region21: #{encoder_forward.6} parent=5 // pred_check
      %p234 = pneg %p233
    $region22: #{encoder_forward.6} parent=5 // pred_check_branch
      %236 = sbr.rel (%p234) target = $region24
    $region23: #{encoder_forward.6} parent=5 // pred_region
      // Predicated region
      $region25: #{encoder_forward.6} parent=23 // pred_check
        %p237 = pneg %p34
      $region26: #{encoder_forward.6} parent=23 // pred_check_branch
        %239 = sbr.rel (%p237) target = $region28
      $region27: #{encoder_forward.6} parent=23 // pred_region
        %s240 = smul.u32 8, %s14
        %p241 = scmp.lt.s32.totalorder %s240, 15
        %s242 = scalar_select %p241, %s240, 15
        %s243 = smul.addr %s242, 4
        %s244 = scalar_lea.vmem %s0, %s243
        %s245 = smul.u32 8, %s14
      $region28: #{encoder_forward.6} parent=23 // pred_fallthru
        _
      // Predicated region
      $region29: #{encoder_forward.6} parent=23 // pred_check
        %p246 = pneg %p60
      $region30: #{encoder_forward.6} parent=23 // pred_check_branch
        %248 = sbr.rel (%p246) target = $region32
      $region31: #{encoder_forward.6} parent=23 // pred_region
        %s249 = smul.u32 8, %s14
        %p250 = scmp.lt.s32.totalorder %s249, 15
        %s251 = scalar_select %p250, %s249, 15
        %s252 = smul.addr %s251, 4
        %s253 = scalar_lea.vmem %s1, %s252
        %s254 = smul.u32 8, %s14
      $region32: #{encoder_forward.6} parent=23 // pred_fallthru
        _
      // Predicated region
      $region33: #{encoder_forward.6} parent=23 // pred_check
        %p255 = pneg %p86
      $region34: #{encoder_forward.6} parent=23 // pred_check_branch
        %257 = sbr.rel (%p255) target = $region36
      $region35: #{encoder_forward.6} parent=23 // pred_region
        %s258 = smul.u32 8, %s14
        %p259 = scmp.lt.s32.totalorder %s258, 15
        %s260 = scalar_select %p259, %s258, 15
        %s261 = smul.addr %s260, 4
        %s262 = scalar_lea.vmem %s2, %s261
        %s263 = smul.u32 8, %s14
      $region36: #{encoder_forward.6} parent=23 // pred_fallthru
        _
    $region24: #{encoder_forward.6} parent=5 // pred_fallthru
      _
    %p264 = scmp.le.s32.totalorder 1, %s14
    %p265 = scmp.lt.s32.totalorder %s14, 3
    %p266 = pnand %p264, %p265
    %p267 = pneg %p266
    // Predicated region
    $region37: #{encoder_forward.6} parent=5 // pred_check
      _
    $region38: #{encoder_forward.6} parent=5 // pred_check_branch
      %269 = sbr.rel (%p266) target = $region40
    $region39: #{encoder_forward.6} parent=5 // pred_region
      %s270 = ssub.s32 %s14, 1
      %s271 = smul.u32 8, %s19
      %p272 = scmp.lt.s32.totalorder %s271, 15
      %s273 = scalar_select %p272, %s271, 15
      %s274 = smul.addr %s273, 4
      %s275 = scalar_lea.vmem %s0, %s274
      %p276 = pneg %p40
      %p277 = pneg %p37
      %s278 = smul.u32 8, %s19
      %p279 = scmp.lt.s32.totalorder %s278, 15
      %s280 = scalar_select %p279, %s278, 15
      %s281 = smul.addr %s280, 4
      %s282 = scalar_lea.vmem %s1, %s281
      %p283 = pneg %p66
      %p284 = pneg %p63
      %s285 = smul.u32 8, %s19
      %p286 = scmp.lt.s32.totalorder %s285, 15
      %s287 = scalar_select %p286, %s285, 15
      %s288 = smul.addr %s287, 4
      %s289 = scalar_lea.vmem %s2, %s288
      %p290 = pneg %p92
      %p291 = pneg %p89
      %p292 = pneg %p113
      %p293 = pneg %p110
      %p294 = pneg %p134
      %p295 = pneg %p131
      %p296 = pneg %p160
      %p297 = pneg %p157
      %s298 = smul.u32 8, %s19
      %p299 = scmp.lt.s32.totalorder %s298, 15
      %s300 = scalar_select %p299, %s298, 15
      %s301 = smul.addr %s300, 4
      %s302 = scalar_lea.vmem %s5, %s301
      %p303 = pneg %p186
      %p304 = pneg %p183
      %p305 = scmp.lt.s32.totalorder %s19, 1
      %s306 = scalar_select %p305, %s19, 1
      %s307 = scalar_lea.vmem %s6, %s306
      %p308 = pneg %p212
      %p309 = pneg %p209
      %p310 = scmp.lt.s32.totalorder %s19, 1
      %s311 = scalar_select %p310, %s19, 1
      %s312 = scalar_lea.vmem %s7, %s311
      %s313 = smul.u32 8, %s19
      %p314 = scmp.lt.s32.totalorder %s313, 15
      %s315 = scalar_select %p314, %s313, 15
      %s316 = smul.addr %s315, 4
      %s317 = scalar_lea.vmem %s0, %s316
      %s318 = smul.u32 8, %s19
      %s319 = smul.u32 8, %s19
      %p320 = scmp.lt.s32.totalorder %s319, 15
      %s321 = scalar_select %p320, %s319, 15
      %s322 = smul.addr %s321, 4
      %s323 = scalar_lea.vmem %s1, %s322
      %s324 = smul.u32 8, %s19
      %s325 = smul.u32 8, %s19
      %p326 = scmp.lt.s32.totalorder %s325, 15
      %s327 = scalar_select %p326, %s325, 15
      %s328 = smul.addr %s327, 4
      %s329 = scalar_lea.vmem %s2, %s328
      %s330 = smul.u32 8, %s19
      %s331 = smul.u32 8, %s19
      %p332 = scmp.lt.s32.totalorder %s331, 15
      %s333 = scalar_select %p332, %s331, 15
      %s334 = smul.addr %s333, 4
      %s335 = scalar_lea.vmem %s5, %s334
      %s336 = smul.u32 8, %s19
      %p337 = scmp.lt.s32.totalorder %s19, 1
      %s338 = scalar_select %p337, %s19, 1
      %s339 = scalar_lea.vmem %s6, %s338
      %p340 = scmp.lt.s32.totalorder %s19, 1
      %s341 = scalar_select %p340, %s19, 1
      %s342 = scalar_lea.vmem %s7, %s341
      %v344 = vld [vmem:[%s317] sm:$0xf]
      %v345 = vld [vmem:[%s317 + $0x4] sm:$0xf]
      %v346 = vld [vmem:[%s317 + $0x8] sm:$0xf]
      %v347 = vld [vmem:[%s317 + $0xc] sm:$0xf]
      %v348 = vld [vmem:[%s317 + $0x10] sm:$0xf]
      %v349 = vld [vmem:[%s317 + $0x14] sm:$0xf]
      %v350 = vld [vmem:[%s317 + $0x18] sm:$0xf]
      %v351 = vld [vmem:[%s317 + $0x1c] sm:$0xf]
      %v352 = vld [vmem:[%s323] sm:$0xf]
      %v353 = vld [vmem:[%s323 + $0x4] sm:$0xf]
      %v354 = vld [vmem:[%s323 + $0x8] sm:$0xf]
      %v355 = vld [vmem:[%s323 + $0xc] sm:$0xf]
      %v356 = vld [vmem:[%s323 + $0x10] sm:$0xf]
      %v357 = vld [vmem:[%s323 + $0x14] sm:$0xf]
      %v358 = vld [vmem:[%s323 + $0x18] sm:$0xf]
      %v359 = vld [vmem:[%s323 + $0x1c] sm:$0xf]
      %v360 = vld [vmem:[%s329] sm:$0xf]
      %v361 = vld [vmem:[%s329 + $0x4] sm:$0xf]
      %v362 = vld [vmem:[%s329 + $0x8] sm:$0xf]
      %v363 = vld [vmem:[%s329 + $0xc] sm:$0xf]
      %v364 = vld [vmem:[%s329 + $0x10] sm:$0xf]
      %v365 = vld [vmem:[%s329 + $0x14] sm:$0xf]
      %v366 = vld [vmem:[%s329 + $0x18] sm:$0xf]
      %v367 = vld [vmem:[%s329 + $0x1c] sm:$0xf]
      %v376 = vunpack.c.l.b16 %v344
      %v377 = vunpack.c.l.b16 %v345
      %v378 = vunpack.c.l.b16 %v346
      %v379 = vunpack.c.l.b16 %v347
      %v380 = vunpack.c.l.b16 %v348
      %v381 = vunpack.c.l.b16 %v349
      %v382 = vunpack.c.l.b16 %v350
      %v383 = vunpack.c.l.b16 %v351
      %v384 = vpack.c.b16 %v377, %v376
      %v385 = vpack.c.b16 %v379, %v378
      %v386 = vpack.c.b16 %v381, %v380
      %v387 = vpack.c.b16 %v383, %v382
      %v396 = vunpack.c.l.b16 %v352
      %v397 = vunpack.c.l.b16 %v353
      %v398 = vunpack.c.l.b16 %v354
      %v399 = vunpack.c.l.b16 %v355
      %v400 = vunpack.c.l.b16 %v356
      %v401 = vunpack.c.l.b16 %v357
      %v402 = vunpack.c.l.b16 %v358
      %v403 = vunpack.c.l.b16 %v359
      %v404 = vpack.c.b16 %v397, %v396
      %v405 = vpack.c.b16 %v399, %v398
      %v406 = vpack.c.b16 %v401, %v400
      %v407 = vpack.c.b16 %v403, %v402
      %vm408 = vcmask 261120
      %v410 = vsel %vm408, %v384, 0
      %v413 = vsel %vm408, %v385, 0
      %v416 = vsel %vm408, %v386, 0
      %v419 = vsel %vm408, %v387, 0
      %v422 = vsel %vm408, %v404, 0
      %v425 = vsel %vm408, %v405, 0
      %v428 = vsel %vm408, %v406, 0
      %v431 = vsel %vm408, %v407, 0
      %433 = vmatpush.bf16.xpose.msra.mxu0 0
      %434 = vmatpush.bf16.xpose.msra.mxu0 0
      %435 = vmatpush.bf16.xpose.msra.mxu0 0
      %436 = vmatpush.bf16.xpose.msra.mxu0 0
      %437 = vmatpush.bf16.xpose.msra.mxu0 %v431
      %438 = vmatpush.bf16.xpose.msra.mxu0 %v428
      %439 = vmatpush.bf16.xpose.msra.mxu0 %v425
      %440 = vmatpush.bf16.xpose.msra.mxu0 %v422
      %441 = vmatmul.bf16.gmra.mxu0 %v410
      %v442 = vpop.f32.mrf.mxu0
      %v443 = vadd.f32 0.0, %v442
      %v444 = vpop.f32.mrf.mxu0
      %v445 = vadd.f32 0.0, %v444
      %446 = vmatmul.bf16.gmra.mxu0 %v413
      %v447 = vpop.f32.mrf.mxu0
      %v448 = vadd.f32 0.0, %v447
      %v449 = vpop.f32.mrf.mxu0
      %v450 = vadd.f32 0.0, %v449
      %451 = vmatmul.bf16.gmra.mxu0 %v416
      %v452 = vpop.f32.mrf.mxu0
      %v453 = vadd.f32 0.0, %v452
      %v454 = vpop.f32.mrf.mxu0
      %v455 = vadd.f32 0.0, %v454
      %456 = vmatmul.bf16.gmra.mxu0 %v419
      %v457 = vpop.f32.mrf.mxu0
      %v458 = vadd.f32 0.0, %v457
      %v459 = vpop.f32.mrf.mxu0
      %v460 = vadd.f32 0.0, %v459
      %461 = vdwg.mxu0
      %vm462 = vcmask 523264
      %v463 = vsel %vm462, %v443, -inf
      %464 = vmax.xlane.f32.xlu0 %v463
      %v465 = vpop.xlane.xlu0 %464
      %v466 = vsel %vm462, %v445, -inf
      %467 = vmax.xlane.f32.xlu0 %v466
      %v468 = vpop.xlane.xlu0 %467
      %v469 = vsel %vm462, %v448, -inf
      %470 = vmax.xlane.f32.xlu0 %v469
      %v471 = vpop.xlane.xlu0 %470
      %v472 = vsel %vm462, %v450, -inf
      %473 = vmax.xlane.f32.xlu0 %v472
      %v474 = vpop.xlane.xlu0 %473
      %v475 = vsel %vm462, %v453, -inf
      %476 = vmax.xlane.f32.xlu0 %v475
      %v477 = vpop.xlane.xlu0 %476
      %v478 = vsel %vm462, %v455, -inf
      %479 = vmax.xlane.f32.xlu0 %v478
      %v480 = vpop.xlane.xlu0 %479
      %v481 = vsel %vm462, %v458, -inf
      %482 = vmax.xlane.f32.xlu0 %v481
      %v483 = vpop.xlane.xlu0 %482
      %v484 = vsel %vm462, %v460, -inf
      %485 = vmax.xlane.f32.xlu0 %v484
      %v486 = vpop.xlane.xlu0 %485
      %v487 = vsub.f32 %v443, %v465
      %v488 = vsub.f32 %v445, %v468
      %v489 = vsub.f32 %v448, %v471
      %v490 = vsub.f32 %v450, %v474
      %v491 = vsub.f32 %v453, %v477
      %v492 = vsub.f32 %v455, %v480
      %v493 = vsub.f32 %v458, %v483
      %v494 = vsub.f32 %v460, %v486
      %v495 = vmul.f32 %v487, 1.442695
      %v496 = vpow.pop %v495
      %v497 = vmul.f32 %v488, 1.442695
      %v498 = vpow.pop %v497
      %v499 = vmul.f32 %v489, 1.442695
      %v500 = vpow.pop %v499
      %v501 = vmul.f32 %v490, 1.442695
      %v502 = vpow.pop %v501
      %v503 = vmul.f32 %v491, 1.442695
      %v504 = vpow.pop %v503
      %v505 = vmul.f32 %v492, 1.442695
      %v506 = vpow.pop %v505
      %v507 = vmul.f32 %v493, 1.442695
      %v508 = vpow.pop %v507
      %v509 = vmul.f32 %v494, 1.442695
      %v510 = vpow.pop %v509
      %v511 = vsel %vm462, %v496, 0.0
      %512 = vadd.xlane.f32.xlu0 %v511
      %v513 = vpop.xlane.xlu0 %512
      %v514 = vsel %vm462, %v498, 0.0
      %515 = vadd.xlane.f32.xlu0 %v514
      %v516 = vpop.xlane.xlu0 %515
      %v517 = vsel %vm462, %v500, 0.0
      %518 = vadd.xlane.f32.xlu0 %v517
      %v519 = vpop.xlane.xlu0 %518
      %v520 = vsel %vm462, %v502, 0.0
      %521 = vadd.xlane.f32.xlu0 %v520
      %v522 = vpop.xlane.xlu0 %521
      %v523 = vsel %vm462, %v504, 0.0
      %524 = vadd.xlane.f32.xlu0 %v523
      %v525 = vpop.xlane.xlu0 %524
      %v526 = vsel %vm462, %v506, 0.0
      %527 = vadd.xlane.f32.xlu0 %v526
      %v528 = vpop.xlane.xlu0 %527
      %v529 = vsel %vm462, %v508, 0.0
      %530 = vadd.xlane.f32.xlu0 %v529
      %v531 = vpop.xlane.xlu0 %530
      %v532 = vsel %vm462, %v510, 0.0
      %533 = vadd.xlane.f32.xlu0 %v532
      %v534 = vpop.xlane.xlu0 %533
      %v535 = vpack.c.bf16 %v498, %v496
      %v536 = vpack.c.bf16 %v502, %v500
      %v537 = vpack.c.bf16 %v506, %v504
      %v538 = vpack.c.bf16 %v510, %v508
      %v547 = vunpack.c.l.b16 %v360
      %v548 = vunpack.c.l.b16 %v361
      %v549 = vunpack.c.l.b16 %v362
      %v550 = vunpack.c.l.b16 %v363
      %v551 = vunpack.c.l.b16 %v364
      %v552 = vunpack.c.l.b16 %v365
      %v553 = vunpack.c.l.b16 %v366
      %v554 = vunpack.c.l.b16 %v367
      %v555 = vpack.c.b16 %v548, %v547
      %v556 = vpack.c.b16 %v550, %v549
      %v557 = vpack.c.b16 %v552, %v551
      %v558 = vpack.c.b16 %v554, %v553
      %v564 = vsel %vm462, %v535, 0
      %v567 = vsel %vm462, %v536, 0
      %v570 = vsel %vm462, %v537, 0
      %v573 = vsel %vm462, %v538, 0
      %575 = vmatpush.bf16.msra.mxu0 0
      %576 = vmatpush.bf16.msra.mxu0 0
      %577 = vmatpush.bf16.msra.mxu0 0
      %578 = vmatpush.bf16.msra.mxu0 0
      %579 = vmatpush.bf16.msra.mxu0 %v558
      %580 = vmatpush.bf16.msra.mxu0 %v557
      %581 = vmatpush.bf16.msra.mxu0 %v556
      %582 = vmatpush.bf16.msra.mxu0 %v555
      %583 = vmatmul.bf16.gmra.mxu0 %v564
      %v584 = vpop.f32.mrf.mxu0
      %v585 = vadd.f32 0.0, %v584
      %v586 = vpop.f32.mrf.mxu0
      %v587 = vadd.f32 0.0, %v586
      %588 = vmatmul.bf16.gmra.mxu0 %v567
      %v589 = vpop.f32.mrf.mxu0
      %v590 = vadd.f32 0.0, %v589
      %v591 = vpop.f32.mrf.mxu0
      %v592 = vadd.f32 0.0, %v591
      %593 = vmatmul.bf16.gmra.mxu0 %v570
      %v594 = vpop.f32.mrf.mxu0
      %v595 = vadd.f32 0.0, %v594
      %v596 = vpop.f32.mrf.mxu0
      %v597 = vadd.f32 0.0, %v596
      %598 = vmatmul.bf16.gmra.mxu0 %v573
      %v599 = vpop.f32.mrf.mxu0
      %v600 = vadd.f32 0.0, %v599
      %v601 = vpop.f32.mrf.mxu0
      %v602 = vadd.f32 0.0, %v601
      %603 = vdwg.mxu0
      %v604 = vrcp.pop %v513
      %v605 = vrcp.pop %v516
      %v606 = vrcp.pop %v519
      %v607 = vrcp.pop %v522
      %v608 = vrcp.pop %v525
      %v609 = vrcp.pop %v528
      %v610 = vrcp.pop %v531
      %v611 = vrcp.pop %v534
      %v612 = vmul.f32 %v585, %v604
      %v613 = vmul.f32 %v587, %v605
      %v614 = vmul.f32 %v590, %v606
      %v615 = vmul.f32 %v592, %v607
      %v616 = vmul.f32 %v595, %v608
      %v617 = vmul.f32 %v597, %v609
      %v618 = vmul.f32 %v600, %v610
      %v619 = vmul.f32 %v602, %v611
      %620 = vrot.lane.b32.xlu0 %v384, 96
      %v621 = vpop.permute.xlu0 %620
      %622 = vrot.lane.b32.xlu0 %v385, 96
      %v623 = vpop.permute.xlu0 %622
      %624 = vrot.lane.b32.xlu0 %v386, 96
      %v625 = vpop.permute.xlu0 %624
      %626 = vrot.lane.b32.xlu0 %v387, 96
      %v627 = vpop.permute.xlu0 %626
      %628 = vrot.lane.b32.xlu0 %v404, 96
      %v629 = vpop.permute.xlu0 %628
      %630 = vrot.lane.b32.xlu0 %v405, 96
      %v631 = vpop.permute.xlu0 %630
      %632 = vrot.lane.b32.xlu0 %v406, 96
      %v633 = vpop.permute.xlu0 %632
      %634 = vrot.lane.b32.xlu0 %v407, 96
      %v635 = vpop.permute.xlu0 %634
      %v637 = vsel %vm408, %v621, 0
      %v640 = vsel %vm408, %v623, 0
      %v643 = vsel %vm408, %v625, 0
      %v646 = vsel %vm408, %v627, 0
      %v649 = vsel %vm408, %v629, 0
      %v652 = vsel %vm408, %v631, 0
      %v655 = vsel %vm408, %v633, 0
      %v658 = vsel %vm408, %v635, 0
      %660 = vmatpush.bf16.xpose.msra.mxu0 0
      %661 = vmatpush.bf16.xpose.msra.mxu0 0
      %662 = vmatpush.bf16.xpose.msra.mxu0 0
      %663 = vmatpush.bf16.xpose.msra.mxu0 0
      %664 = vmatpush.bf16.xpose.msra.mxu0 %v658
      %665 = vmatpush.bf16.xpose.msra.mxu0 %v655
      %666 = vmatpush.bf16.xpose.msra.mxu0 %v652
      %667 = vmatpush.bf16.xpose.msra.mxu0 %v649
      %668 = vmatmul.bf16.gmra.mxu0 %v637
      %v669 = vpop.f32.mrf.mxu0
      %v670 = vadd.f32 0.0, %v669
      %v671 = vpop.f32.mrf.mxu0
      %v672 = vadd.f32 0.0, %v671
      %673 = vmatmul.bf16.gmra.mxu0 %v640
      %v674 = vpop.f32.mrf.mxu0
      %v675 = vadd.f32 0.0, %v674
      %v676 = vpop.f32.mrf.mxu0
      %v677 = vadd.f32 0.0, %v676
      %678 = vmatmul.bf16.gmra.mxu0 %v643
      %v679 = vpop.f32.mrf.mxu0
      %v680 = vadd.f32 0.0, %v679
      %v681 = vpop.f32.mrf.mxu0
      %v682 = vadd.f32 0.0, %v681
      %683 = vmatmul.bf16.gmra.mxu0 %v646
      %v684 = vpop.f32.mrf.mxu0
      %v685 = vadd.f32 0.0, %v684
      %v686 = vpop.f32.mrf.mxu0
      %v687 = vadd.f32 0.0, %v686
      %688 = vdwg.mxu0
      %v689 = vsel %vm462, %v670, -inf
      %690 = vmax.xlane.f32.xlu0 %v689
      %v691 = vpop.xlane.xlu0 %690
      %v692 = vsel %vm462, %v672, -inf
      %693 = vmax.xlane.f32.xlu0 %v692
      %v694 = vpop.xlane.xlu0 %693
      %v695 = vsel %vm462, %v675, -inf
      %696 = vmax.xlane.f32.xlu0 %v695
      %v697 = vpop.xlane.xlu0 %696
      %v698 = vsel %vm462, %v677, -inf
      %699 = vmax.xlane.f32.xlu0 %v698
      %v700 = vpop.xlane.xlu0 %699
      %v701 = vsel %vm462, %v680, -inf
      %702 = vmax.xlane.f32.xlu0 %v701
      %v703 = vpop.xlane.xlu0 %702
      %v704 = vsel %vm462, %v682, -inf
      %705 = vmax.xlane.f32.xlu0 %v704
      %v706 = vpop.xlane.xlu0 %705
      %v707 = vsel %vm462, %v685, -inf
      %708 = vmax.xlane.f32.xlu0 %v707
      %v709 = vpop.xlane.xlu0 %708
      %v710 = vsel %vm462, %v687, -inf
      %711 = vmax.xlane.f32.xlu0 %v710
      %v712 = vpop.xlane.xlu0 %711
      %v713 = vsub.f32 %v670, %v691
      %v714 = vsub.f32 %v672, %v694
      %v715 = vsub.f32 %v675, %v697
      %v716 = vsub.f32 %v677, %v700
      %v717 = vsub.f32 %v680, %v703
      %v718 = vsub.f32 %v682, %v706
      %v719 = vsub.f32 %v685, %v709
      %v720 = vsub.f32 %v687, %v712
      %v721 = vmul.f32 %v713, 1.442695
      %v722 = vpow.pop %v721
      %v723 = vmul.f32 %v714, 1.442695
      %v724 = vpow.pop %v723
      %v725 = vmul.f32 %v715, 1.442695
      %v726 = vpow.pop %v725
      %v727 = vmul.f32 %v716, 1.442695
      %v728 = vpow.pop %v727
      %v729 = vmul.f32 %v717, 1.442695
      %v730 = vpow.pop %v729
      %v731 = vmul.f32 %v718, 1.442695
      %v732 = vpow.pop %v731
      %v733 = vmul.f32 %v719, 1.442695
      %v734 = vpow.pop %v733
      %v735 = vmul.f32 %v720, 1.442695
      %v736 = vpow.pop %v735
      %v737 = vsel %vm462, %v722, 0.0
      %738 = vadd.xlane.f32.xlu0 %v737
      %v739 = vpop.xlane.xlu0 %738
      %v740 = vsel %vm462, %v724, 0.0
      %741 = vadd.xlane.f32.xlu0 %v740
      %v742 = vpop.xlane.xlu0 %741
      %v743 = vsel %vm462, %v726, 0.0
      %744 = vadd.xlane.f32.xlu0 %v743
      %v745 = vpop.xlane.xlu0 %744
      %v746 = vsel %vm462, %v728, 0.0
      %747 = vadd.xlane.f32.xlu0 %v746
      %v748 = vpop.xlane.xlu0 %747
      %v749 = vsel %vm462, %v730, 0.0
      %750 = vadd.xlane.f32.xlu0 %v749
      %v751 = vpop.xlane.xlu0 %750
      %v752 = vsel %vm462, %v732, 0.0
      %753 = vadd.xlane.f32.xlu0 %v752
      %v754 = vpop.xlane.xlu0 %753
      %v755 = vsel %vm462, %v734, 0.0
      %756 = vadd.xlane.f32.xlu0 %v755
      %v757 = vpop.xlane.xlu0 %756
      %v758 = vsel %vm462, %v736, 0.0
      %759 = vadd.xlane.f32.xlu0 %v758
      %v760 = vpop.xlane.xlu0 %759
      %v761 = vpack.c.bf16 %v724, %v722
      %v762 = vpack.c.bf16 %v728, %v726
      %v763 = vpack.c.bf16 %v732, %v730
      %v764 = vpack.c.bf16 %v736, %v734
      %765 = vrot.lane.b32.xlu0 %v555, 96
      %v766 = vpop.permute.xlu0 %765
      %767 = vrot.lane.b32.xlu0 %v556, 96
      %v768 = vpop.permute.xlu0 %767
      %769 = vrot.lane.b32.xlu0 %v557, 96
      %v770 = vpop.permute.xlu0 %769
      %771 = vrot.lane.b32.xlu0 %v558, 96
      %v772 = vpop.permute.xlu0 %771
      %v778 = vsel %vm462, %v761, 0
      %v781 = vsel %vm462, %v762, 0
      %v784 = vsel %vm462, %v763, 0
      %v787 = vsel %vm462, %v764, 0
      %789 = vmatpush.bf16.msra.mxu0 0
      %790 = vmatpush.bf16.msra.mxu0 0
      %791 = vmatpush.bf16.msra.mxu0 0
      %792 = vmatpush.bf16.msra.mxu0 0
      %793 = vmatpush.bf16.msra.mxu0 %v772
      %794 = vmatpush.bf16.msra.mxu0 %v770
      %795 = vmatpush.bf16.msra.mxu0 %v768
      %796 = vmatpush.bf16.msra.mxu0 %v766
      %797 = vmatmul.bf16.gmra.mxu0 %v778
      %v798 = vpop.f32.mrf.mxu0
      %v799 = vadd.f32 0.0, %v798
      %v800 = vpop.f32.mrf.mxu0
      %v801 = vadd.f32 0.0, %v800
      %802 = vmatmul.bf16.gmra.mxu0 %v781
      %v803 = vpop.f32.mrf.mxu0
      %v804 = vadd.f32 0.0, %v803
      %v805 = vpop.f32.mrf.mxu0
      %v806 = vadd.f32 0.0, %v805
      %807 = vmatmul.bf16.gmra.mxu0 %v784
      %v808 = vpop.f32.mrf.mxu0
      %v809 = vadd.f32 0.0, %v808
      %v810 = vpop.f32.mrf.mxu0
      %v811 = vadd.f32 0.0, %v810
      %812 = vmatmul.bf16.gmra.mxu0 %v787
      %v813 = vpop.f32.mrf.mxu0
      %v814 = vadd.f32 0.0, %v813
      %v815 = vpop.f32.mrf.mxu0
      %v816 = vadd.f32 0.0, %v815
      %817 = vdwg.mxu0
      %v818 = vrcp.pop %v739
      %v819 = vrcp.pop %v742
      %v820 = vrcp.pop %v745
      %v821 = vrcp.pop %v748
      %v822 = vrcp.pop %v751
      %v823 = vrcp.pop %v754
      %v824 = vrcp.pop %v757
      %v825 = vrcp.pop %v760
      %v826 = vmul.f32 %v799, %v818
      %v827 = vmul.f32 %v801, %v819
      %v828 = vmul.f32 %v804, %v820
      %v829 = vmul.f32 %v806, %v821
      %v830 = vmul.f32 %v809, %v822
      %v831 = vmul.f32 %v811, %v823
      %v832 = vmul.f32 %v814, %v824
      %v833 = vmul.f32 %v816, %v825
      %834 = vrot.lane.b32.xlu0 %v384, 64
      %v835 = vpop.permute.xlu0 %834
      %836 = vrot.lane.b32.xlu0 %v385, 64
      %v837 = vpop.permute.xlu0 %836
      %838 = vrot.lane.b32.xlu0 %v386, 64
      %v839 = vpop.permute.xlu0 %838
      %840 = vrot.lane.b32.xlu0 %v387, 64
      %v841 = vpop.permute.xlu0 %840
      %842 = vrot.lane.b32.xlu0 %v404, 64
      %v843 = vpop.permute.xlu0 %842
      %844 = vrot.lane.b32.xlu0 %v405, 64
      %v845 = vpop.permute.xlu0 %844
      %846 = vrot.lane.b32.xlu0 %v406, 64
      %v847 = vpop.permute.xlu0 %846
      %848 = vrot.lane.b32.xlu0 %v407, 64
      %v849 = vpop.permute.xlu0 %848
      %v851 = vsel %vm408, %v835, 0
      %v854 = vsel %vm408, %v837, 0
      %v857 = vsel %vm408, %v839, 0
      %v860 = vsel %vm408, %v841, 0
      %v863 = vsel %vm408, %v843, 0
      %v866 = vsel %vm408, %v845, 0
      %v869 = vsel %vm408, %v847, 0
      %v872 = vsel %vm408, %v849, 0
      %874 = vmatpush.bf16.xpose.msra.mxu0 0
      %875 = vmatpush.bf16.xpose.msra.mxu0 0
      %876 = vmatpush.bf16.xpose.msra.mxu0 0
      %877 = vmatpush.bf16.xpose.msra.mxu0 0
      %878 = vmatpush.bf16.xpose.msra.mxu0 %v872
      %879 = vmatpush.bf16.xpose.msra.mxu0 %v869
      %880 = vmatpush.bf16.xpose.msra.mxu0 %v866
      %881 = vmatpush.bf16.xpose.msra.mxu0 %v863
      %882 = vmatmul.bf16.gmra.mxu0 %v851
      %v883 = vpop.f32.mrf.mxu0
      %v884 = vadd.f32 0.0, %v883
      %v885 = vpop.f32.mrf.mxu0
      %v886 = vadd.f32 0.0, %v885
      %887 = vmatmul.bf16.gmra.mxu0 %v854
      %v888 = vpop.f32.mrf.mxu0
      %v889 = vadd.f32 0.0, %v888
      %v890 = vpop.f32.mrf.mxu0
      %v891 = vadd.f32 0.0, %v890
      %892 = vmatmul.bf16.gmra.mxu0 %v857
      %v893 = vpop.f32.mrf.mxu0
      %v894 = vadd.f32 0.0, %v893
      %v895 = vpop.f32.mrf.mxu0
      %v896 = vadd.f32 0.0, %v895
      %897 = vmatmul.bf16.gmra.mxu0 %v860
      %v898 = vpop.f32.mrf.mxu0
      %v899 = vadd.f32 0.0, %v898
      %v900 = vpop.f32.mrf.mxu0
      %v901 = vadd.f32 0.0, %v900
      %902 = vdwg.mxu0
      %v903 = vsel %vm462, %v884, -inf
      %904 = vmax.xlane.f32.xlu0 %v903
      %v905 = vpop.xlane.xlu0 %904
      %v906 = vsel %vm462, %v886, -inf
      %907 = vmax.xlane.f32.xlu0 %v906
      %v908 = vpop.xlane.xlu0 %907
      %v909 = vsel %vm462, %v889, -inf
      %910 = vmax.xlane.f32.xlu0 %v909
      %v911 = vpop.xlane.xlu0 %910
      %v912 = vsel %vm462, %v891, -inf
      %913 = vmax.xlane.f32.xlu0 %v912
      %v914 = vpop.xlane.xlu0 %913
      %v915 = vsel %vm462, %v894, -inf
      %916 = vmax.xlane.f32.xlu0 %v915
      %v917 = vpop.xlane.xlu0 %916
      %v918 = vsel %vm462, %v896, -inf
      %919 = vmax.xlane.f32.xlu0 %v918
      %v920 = vpop.xlane.xlu0 %919
      %v921 = vsel %vm462, %v899, -inf
      %922 = vmax.xlane.f32.xlu0 %v921
      %v923 = vpop.xlane.xlu0 %922
      %v924 = vsel %vm462, %v901, -inf
      %925 = vmax.xlane.f32.xlu0 %v924
      %v926 = vpop.xlane.xlu0 %925
      %v927 = vsub.f32 %v884, %v905
      %v928 = vsub.f32 %v886, %v908
      %v929 = vsub.f32 %v889, %v911
      %v930 = vsub.f32 %v891, %v914
      %v931 = vsub.f32 %v894, %v917
      %v932 = vsub.f32 %v896, %v920
      %v933 = vsub.f32 %v899, %v923
      %v934 = vsub.f32 %v901, %v926
      %v935 = vmul.f32 %v927, 1.442695
      %v936 = vpow.pop %v935
      %v937 = vmul.f32 %v928, 1.442695
      %v938 = vpow.pop %v937
      %v939 = vmul.f32 %v929, 1.442695
      %v940 = vpow.pop %v939
      %v941 = vmul.f32 %v930, 1.442695
      %v942 = vpow.pop %v941
      %v943 = vmul.f32 %v931, 1.442695
      %v944 = vpow.pop %v943
      %v945 = vmul.f32 %v932, 1.442695
      %v946 = vpow.pop %v945
      %v947 = vmul.f32 %v933, 1.442695
      %v948 = vpow.pop %v947
      %v949 = vmul.f32 %v934, 1.442695
      %v950 = vpow.pop %v949
      %v951 = vsel %vm462, %v936, 0.0
      %952 = vadd.xlane.f32.xlu0 %v951
      %v953 = vpop.xlane.xlu0 %952
      %v954 = vsel %vm462, %v938, 0.0
      %955 = vadd.xlane.f32.xlu0 %v954
      %v956 = vpop.xlane.xlu0 %955
      %v957 = vsel %vm462, %v940, 0.0
      %958 = vadd.xlane.f32.xlu0 %v957
      %v959 = vpop.xlane.xlu0 %958
      %v960 = vsel %vm462, %v942, 0.0
      %961 = vadd.xlane.f32.xlu0 %v960
      %v962 = vpop.xlane.xlu0 %961
      %v963 = vsel %vm462, %v944, 0.0
      %964 = vadd.xlane.f32.xlu0 %v963
      %v965 = vpop.xlane.xlu0 %964
      %v966 = vsel %vm462, %v946, 0.0
      %967 = vadd.xlane.f32.xlu0 %v966
      %v968 = vpop.xlane.xlu0 %967
      %v969 = vsel %vm462, %v948, 0.0
      %970 = vadd.xlane.f32.xlu0 %v969
      %v971 = vpop.xlane.xlu0 %970
      %v972 = vsel %vm462, %v950, 0.0
      %973 = vadd.xlane.f32.xlu0 %v972
      %v974 = vpop.xlane.xlu0 %973
      %v975 = vpack.c.bf16 %v938, %v936
      %v976 = vpack.c.bf16 %v942, %v940
      %v977 = vpack.c.bf16 %v946, %v944
      %v978 = vpack.c.bf16 %v950, %v948
      %979 = vrot.lane.b32.xlu0 %v555, 64
      %v980 = vpop.permute.xlu0 %979
      %981 = vrot.lane.b32.xlu0 %v556, 64
      %v982 = vpop.permute.xlu0 %981
      %983 = vrot.lane.b32.xlu0 %v557, 64
      %v984 = vpop.permute.xlu0 %983
      %985 = vrot.lane.b32.xlu0 %v558, 64
      %v986 = vpop.permute.xlu0 %985
      %v992 = vsel %vm462, %v975, 0
      %v995 = vsel %vm462, %v976, 0
      %v998 = vsel %vm462, %v977, 0
      %v1001 = vsel %vm462, %v978, 0
      %1003 = vmatpush.bf16.msra.mxu0 0
      %1004 = vmatpush.bf16.msra.mxu0 0
      %1005 = vmatpush.bf16.msra.mxu0 0
      %1006 = vmatpush.bf16.msra.mxu0 0
      %1007 = vmatpush.bf16.msra.mxu0 %v986
      %1008 = vmatpush.bf16.msra.mxu0 %v984
      %1009 = vmatpush.bf16.msra.mxu0 %v982
      %1010 = vmatpush.bf16.msra.mxu0 %v980
      %1011 = vmatmul.bf16.gmra.mxu0 %v992
      %v1012 = vpop.f32.mrf.mxu0
      %v1013 = vadd.f32 0.0, %v1012
      %v1014 = vpop.f32.mrf.mxu0
      %v1015 = vadd.f32 0.0, %v1014
      %1016 = vmatmul.bf16.gmra.mxu0 %v995
      %v1017 = vpop.f32.mrf.mxu0
      %v1018 = vadd.f32 0.0, %v1017
      %v1019 = vpop.f32.mrf.mxu0
      %v1020 = vadd.f32 0.0, %v1019
      %1021 = vmatmul.bf16.gmra.mxu0 %v998
      %v1022 = vpop.f32.mrf.mxu0
      %v1023 = vadd.f32 0.0, %v1022
      %v1024 = vpop.f32.mrf.mxu0
      %v1025 = vadd.f32 0.0, %v1024
      %1026 = vmatmul.bf16.gmra.mxu0 %v1001
      %v1027 = vpop.f32.mrf.mxu0
      %v1028 = vadd.f32 0.0, %v1027
      %v1029 = vpop.f32.mrf.mxu0
      %v1030 = vadd.f32 0.0, %v1029
      %1031 = vdwg.mxu0
      %v1032 = vrcp.pop %v953
      %v1033 = vrcp.pop %v956
      %v1034 = vrcp.pop %v959
      %v1035 = vrcp.pop %v962
      %v1036 = vrcp.pop %v965
      %v1037 = vrcp.pop %v968
      %v1038 = vrcp.pop %v971
      %v1039 = vrcp.pop %v974
      %v1040 = vmul.f32 %v1013, %v1032
      %v1041 = vmul.f32 %v1015, %v1033
      %v1042 = vmul.f32 %v1018, %v1034
      %v1043 = vmul.f32 %v1020, %v1035
      %v1044 = vmul.f32 %v1023, %v1036
      %v1045 = vmul.f32 %v1025, %v1037
      %v1046 = vmul.f32 %v1028, %v1038
      %v1047 = vmul.f32 %v1030, %v1039
      %1048 = vrot.lane.b32.xlu0 %v384, 32
      %v1049 = vpop.permute.xlu0 %1048
      %1050 = vrot.lane.b32.xlu0 %v385, 32
      %v1051 = vpop.permute.xlu0 %1050
      %1052 = vrot.lane.b32.xlu0 %v386, 32
      %v1053 = vpop.permute.xlu0 %1052
      %1054 = vrot.lane.b32.xlu0 %v387, 32
      %v1055 = vpop.permute.xlu0 %1054
      %1056 = vrot.lane.b32.xlu0 %v404, 32
      %v1057 = vpop.permute.xlu0 %1056
      %1058 = vrot.lane.b32.xlu0 %v405, 32
      %v1059 = vpop.permute.xlu0 %1058
      %1060 = vrot.lane.b32.xlu0 %v406, 32
      %v1061 = vpop.permute.xlu0 %1060
      %1062 = vrot.lane.b32.xlu0 %v407, 32
      %v1063 = vpop.permute.xlu0 %1062
      %v1065 = vsel %vm408, %v1049, 0
      %v1068 = vsel %vm408, %v1051, 0
      %v1071 = vsel %vm408, %v1053, 0
      %v1074 = vsel %vm408, %v1055, 0
      %v1077 = vsel %vm408, %v1057, 0
      %v1080 = vsel %vm408, %v1059, 0
      %v1083 = vsel %vm408, %v1061, 0
      %v1086 = vsel %vm408, %v1063, 0
      %1088 = vmatpush.bf16.xpose.msra.mxu0 0
      %1089 = vmatpush.bf16.xpose.msra.mxu0 0
      %1090 = vmatpush.bf16.xpose.msra.mxu0 0
      %1091 = vmatpush.bf16.xpose.msra.mxu0 0
      %1092 = vmatpush.bf16.xpose.msra.mxu0 %v1086
      %1093 = vmatpush.bf16.xpose.msra.mxu0 %v1083
      %1094 = vmatpush.bf16.xpose.msra.mxu0 %v1080
      %1095 = vmatpush.bf16.xpose.msra.mxu0 %v1077
      %1096 = vmatmul.bf16.gmra.mxu0 %v1065
      %v1097 = vpop.f32.mrf.mxu0
      %v1098 = vadd.f32 0.0, %v1097
      %v1099 = vpop.f32.mrf.mxu0
      %v1100 = vadd.f32 0.0, %v1099
      %1101 = vmatmul.bf16.gmra.mxu0 %v1068
      %v1102 = vpop.f32.mrf.mxu0
      %v1103 = vadd.f32 0.0, %v1102
      %v1104 = vpop.f32.mrf.mxu0
      %v1105 = vadd.f32 0.0, %v1104
      %1106 = vmatmul.bf16.gmra.mxu0 %v1071
      %v1107 = vpop.f32.mrf.mxu0
      %v1108 = vadd.f32 0.0, %v1107
      %v1109 = vpop.f32.mrf.mxu0
      %v1110 = vadd.f32 0.0, %v1109
      %1111 = vmatmul.bf16.gmra.mxu0 %v1074
      %v1112 = vpop.f32.mrf.mxu0
      %v1113 = vadd.f32 0.0, %v1112
      %v1114 = vpop.f32.mrf.mxu0
      %v1115 = vadd.f32 0.0, %v1114
      %1116 = vdwg.mxu0
      %v1117 = vsel %vm462, %v1098, -inf
      %1118 = vmax.xlane.f32.xlu0 %v1117
      %v1119 = vpop.xlane.xlu0 %1118
      %v1120 = vsel %vm462, %v1100, -inf
      %1121 = vmax.xlane.f32.xlu0 %v1120
      %v1122 = vpop.xlane.xlu0 %1121
      %v1123 = vsel %vm462, %v1103, -inf
      %1124 = vmax.xlane.f32.xlu0 %v1123
      %v1125 = vpop.xlane.xlu0 %1124
      %v1126 = vsel %vm462, %v1105, -inf
      %1127 = vmax.xlane.f32.xlu0 %v1126
      %v1128 = vpop.xlane.xlu0 %1127
      %v1129 = vsel %vm462, %v1108, -inf
      %1130 = vmax.xlane.f32.xlu0 %v1129
      %v1131 = vpop.xlane.xlu0 %1130
      %v1132 = vsel %vm462, %v1110, -inf
      %1133 = vmax.xlane.f32.xlu0 %v1132
      %v1134 = vpop.xlane.xlu0 %1133
      %v1135 = vsel %vm462, %v1113, -inf
      %1136 = vmax.xlane.f32.xlu0 %v1135
      %v1137 = vpop.xlane.xlu0 %1136
      %v1138 = vsel %vm462, %v1115, -inf
      %1139 = vmax.xlane.f32.xlu0 %v1138
      %v1140 = vpop.xlane.xlu0 %1139
      %v1141 = vsub.f32 %v1098, %v1119
      %v1142 = vsub.f32 %v1100, %v1122
      %v1143 = vsub.f32 %v1103, %v1125
      %v1144 = vsub.f32 %v1105, %v1128
      %v1145 = vsub.f32 %v1108, %v1131
      %v1146 = vsub.f32 %v1110, %v1134
      %v1147 = vsub.f32 %v1113, %v1137
      %v1148 = vsub.f32 %v1115, %v1140
      %v1149 = vmul.f32 %v1141, 1.442695
      %v1150 = vpow.pop %v1149
      %v1151 = vmul.f32 %v1142, 1.442695
      %v1152 = vpow.pop %v1151
      %v1153 = vmul.f32 %v1143, 1.442695
      %v1154 = vpow.pop %v1153
      %v1155 = vmul.f32 %v1144, 1.442695
      %v1156 = vpow.pop %v1155
      %v1157 = vmul.f32 %v1145, 1.442695
      %v1158 = vpow.pop %v1157
      %v1159 = vmul.f32 %v1146, 1.442695
      %v1160 = vpow.pop %v1159
      %v1161 = vmul.f32 %v1147, 1.442695
      %v1162 = vpow.pop %v1161
      %v1163 = vmul.f32 %v1148, 1.442695
      %v1164 = vpow.pop %v1163
      %v1165 = vsel %vm462, %v1150, 0.0
      %1166 = vadd.xlane.f32.xlu0 %v1165
      %v1167 = vpop.xlane.xlu0 %1166
      %v1168 = vsel %vm462, %v1152, 0.0
      %1169 = vadd.xlane.f32.xlu0 %v1168
      %v1170 = vpop.xlane.xlu0 %1169
      %v1171 = vsel %vm462, %v1154, 0.0
      %1172 = vadd.xlane.f32.xlu0 %v1171
      %v1173 = vpop.xlane.xlu0 %1172
      %v1174 = vsel %vm462, %v1156, 0.0
      %1175 = vadd.xlane.f32.xlu0 %v1174
      %v1176 = vpop.xlane.xlu0 %1175
      %v1177 = vsel %vm462, %v1158, 0.0
      %1178 = vadd.xlane.f32.xlu0 %v1177
      %v1179 = vpop.xlane.xlu0 %1178
      %v1180 = vsel %vm462, %v1160, 0.0
      %1181 = vadd.xlane.f32.xlu0 %v1180
      %v1182 = vpop.xlane.xlu0 %1181
      %v1183 = vsel %vm462, %v1162, 0.0
      %1184 = vadd.xlane.f32.xlu0 %v1183
      %v1185 = vpop.xlane.xlu0 %1184
      %v1186 = vsel %vm462, %v1164, 0.0
      %1187 = vadd.xlane.f32.xlu0 %v1186
      %v1188 = vpop.xlane.xlu0 %1187
      %v1189 = vpack.c.bf16 %v1152, %v1150
      %v1190 = vpack.c.bf16 %v1156, %v1154
      %v1191 = vpack.c.bf16 %v1160, %v1158
      %v1192 = vpack.c.bf16 %v1164, %v1162
      %1193 = vrot.lane.b32.xlu0 %v555, 32
      %v1194 = vpop.permute.xlu0 %1193
      %1195 = vrot.lane.b32.xlu0 %v556, 32
      %v1196 = vpop.permute.xlu0 %1195
      %1197 = vrot.lane.b32.xlu0 %v557, 32
      %v1198 = vpop.permute.xlu0 %1197
      %1199 = vrot.lane.b32.xlu0 %v558, 32
      %v1200 = vpop.permute.xlu0 %1199
      %v1206 = vsel %vm462, %v1189, 0
      %v1209 = vsel %vm462, %v1190, 0
      %v1212 = vsel %vm462, %v1191, 0
      %v1215 = vsel %vm462, %v1192, 0
      %1217 = vmatpush.bf16.msra.mxu0 0
      %1218 = vmatpush.bf16.msra.mxu0 0
      %1219 = vmatpush.bf16.msra.mxu0 0
      %1220 = vmatpush.bf16.msra.mxu0 0
      %1221 = vmatpush.bf16.msra.mxu0 %v1200
      %1222 = vmatpush.bf16.msra.mxu0 %v1198
      %1223 = vmatpush.bf16.msra.mxu0 %v1196
      %1224 = vmatpush.bf16.msra.mxu0 %v1194
      %1225 = vmatmul.bf16.gmra.mxu0 %v1206
      %v1226 = vpop.f32.mrf.mxu0
      %v1227 = vadd.f32 0.0, %v1226
      %v1228 = vpop.f32.mrf.mxu0
      %v1229 = vadd.f32 0.0, %v1228
      %1230 = vmatmul.bf16.gmra.mxu0 %v1209
      %v1231 = vpop.f32.mrf.mxu0
      %v1232 = vadd.f32 0.0, %v1231
      %v1233 = vpop.f32.mrf.mxu0
      %v1234 = vadd.f32 0.0, %v1233
      %1235 = vmatmul.bf16.gmra.mxu0 %v1212
      %v1236 = vpop.f32.mrf.mxu0
      %v1237 = vadd.f32 0.0, %v1236
      %v1238 = vpop.f32.mrf.mxu0
      %v1239 = vadd.f32 0.0, %v1238
      %1240 = vmatmul.bf16.gmra.mxu0 %v1215
      %v1241 = vpop.f32.mrf.mxu0
      %v1242 = vadd.f32 0.0, %v1241
      %v1243 = vpop.f32.mrf.mxu0
      %v1244 = vadd.f32 0.0, %v1243
      %1245 = vdwg.mxu0
      %v1246 = vrcp.pop %v1167
      %v1247 = vrcp.pop %v1170
      %v1248 = vrcp.pop %v1173
      %v1249 = vrcp.pop %v1176
      %v1250 = vrcp.pop %v1179
      %v1251 = vrcp.pop %v1182
      %v1252 = vrcp.pop %v1185
      %v1253 = vrcp.pop %v1188
      %v1254 = vmul.f32 %v1227, %v1246
      %v1255 = vmul.f32 %v1229, %v1247
      %v1256 = vmul.f32 %v1232, %v1248
      %v1257 = vmul.f32 %v1234, %v1249
      %v1258 = vmul.f32 %v1237, %v1250
      %v1259 = vmul.f32 %v1239, %v1251
      %v1260 = vmul.f32 %v1242, %v1252
      %v1261 = vmul.f32 %v1244, %v1253
      %1270 = vrot.lane.b32.xlu0 %v826, 32
      %v1271 = vpop.permute.xlu0 %1270
      %1272 = vrot.lane.b32.xlu0 %v827, 32
      %v1273 = vpop.permute.xlu0 %1272
      %1274 = vrot.lane.b32.xlu0 %v828, 32
      %v1275 = vpop.permute.xlu0 %1274
      %1276 = vrot.lane.b32.xlu0 %v829, 32
      %v1277 = vpop.permute.xlu0 %1276
      %1278 = vrot.lane.b32.xlu0 %v830, 32
      %v1279 = vpop.permute.xlu0 %1278
      %1280 = vrot.lane.b32.xlu0 %v831, 32
      %v1281 = vpop.permute.xlu0 %1280
      %1282 = vrot.lane.b32.xlu0 %v832, 32
      %v1283 = vpop.permute.xlu0 %1282
      %1284 = vrot.lane.b32.xlu0 %v833, 32
      %v1285 = vpop.permute.xlu0 %1284
      %1302 = vrot.lane.b32.xlu0 %v1040, 64
      %v1303 = vpop.permute.xlu0 %1302
      %1304 = vrot.lane.b32.xlu0 %v1041, 64
      %v1305 = vpop.permute.xlu0 %1304
      %1306 = vrot.lane.b32.xlu0 %v1042, 64
      %v1307 = vpop.permute.xlu0 %1306
      %1308 = vrot.lane.b32.xlu0 %v1043, 64
      %v1309 = vpop.permute.xlu0 %1308
      %1310 = vrot.lane.b32.xlu0 %v1044, 64
      %v1311 = vpop.permute.xlu0 %1310
      %1312 = vrot.lane.b32.xlu0 %v1045, 64
      %v1313 = vpop.permute.xlu0 %1312
      %1314 = vrot.lane.b32.xlu0 %v1046, 64
      %v1315 = vpop.permute.xlu0 %1314
      %1316 = vrot.lane.b32.xlu0 %v1047, 64
      %v1317 = vpop.permute.xlu0 %1316
      %1334 = vrot.lane.b32.xlu0 %v1254, 96
      %v1335 = vpop.permute.xlu0 %1334
      %1336 = vrot.lane.b32.xlu0 %v1255, 96
      %v1337 = vpop.permute.xlu0 %1336
      %1338 = vrot.lane.b32.xlu0 %v1256, 96
      %v1339 = vpop.permute.xlu0 %1338
      %1340 = vrot.lane.b32.xlu0 %v1257, 96
      %v1341 = vpop.permute.xlu0 %1340
      %1342 = vrot.lane.b32.xlu0 %v1258, 96
      %v1343 = vpop.permute.xlu0 %1342
      %1344 = vrot.lane.b32.xlu0 %v1259, 96
      %v1345 = vpop.permute.xlu0 %1344
      %1346 = vrot.lane.b32.xlu0 %v1260, 96
      %v1347 = vpop.permute.xlu0 %1346
      %1348 = vrot.lane.b32.xlu0 %v1261, 96
      %v1349 = vpop.permute.xlu0 %1348
      %v1358 = vsel %vm408, %v612, %v1271
      %v1359 = vsel %vm408, %v613, %v1273
      %v1360 = vsel %vm408, %v614, %v1275
      %v1361 = vsel %vm408, %v615, %v1277
      %v1362 = vsel %vm408, %v616, %v1279
      %v1363 = vsel %vm408, %v617, %v1281
      %v1364 = vsel %vm408, %v618, %v1283
      %v1365 = vsel %vm408, %v619, %v1285
      %v1366 = vsel %vm462, %v1358, %v1303
      %v1367 = vsel %vm462, %v1359, %v1305
      %v1368 = vsel %vm462, %v1360, %v1307
      %v1369 = vsel %vm462, %v1361, %v1309
      %v1370 = vsel %vm462, %v1362, %v1311
      %v1371 = vsel %vm462, %v1363, %v1313
      %v1372 = vsel %vm462, %v1364, %v1315
      %v1373 = vsel %vm462, %v1365, %v1317
      %vm1374 = vcmask 785408
      %v1375 = vsel %vm1374, %v1366, %v1335
      %v1376 = vsel %vm1374, %v1367, %v1337
      %v1377 = vsel %vm1374, %v1368, %v1339
      %v1378 = vsel %vm1374, %v1369, %v1341
      %v1379 = vsel %vm1374, %v1370, %v1343
      %v1380 = vsel %vm1374, %v1371, %v1345
      %v1381 = vsel %vm1374, %v1372, %v1347
      %v1382 = vsel %vm1374, %v1373, %v1349
      %v1383 = vpack.c.bf16 %v1376, %v1375
      %v1384 = vpack.c.bf16 %v1378, %v1377
      %v1385 = vpack.c.bf16 %v1380, %v1379
      %v1386 = vpack.c.bf16 %v1382, %v1381
      %v1387 = vld [vmem:[%s3] sm:$0xf]
      %v1388 = vld [vmem:[%s3 + $0x4] sm:$0xf]
      %v1389 = vld [vmem:[%s3 + $0x8] sm:$0xf]
      %v1390 = vld [vmem:[%s3 + $0xc] sm:$0xf]
      %v1391 = vld [vmem:[%s3 + $0x10] sm:$0xf]
      %v1392 = vld [vmem:[%s3 + $0x14] sm:$0xf]
      %v1393 = vld [vmem:[%s3 + $0x18] sm:$0xf]
      %v1394 = vld [vmem:[%s3 + $0x1c] sm:$0xf]
      %v1395 = vld [vmem:[%s3 + $0x20] sm:$0xf]
      %v1396 = vld [vmem:[%s3 + $0x24] sm:$0xf]
      %v1397 = vld [vmem:[%s3 + $0x28] sm:$0xf]
      %v1398 = vld [vmem:[%s3 + $0x2c] sm:$0xf]
      %v1399 = vld [vmem:[%s3 + $0x30] sm:$0xf]
      %v1400 = vld [vmem:[%s3 + $0x34] sm:$0xf]
      %v1401 = vld [vmem:[%s3 + $0x38] sm:$0xf]
      %v1402 = vld [vmem:[%s3 + $0x3c] sm:$0xf]
      %v1403 = vld [vmem:[%s4] sm:$0x1]
      %v1405 = vperm.slane %v1403, 0
      %v1423 = vunpack.c.l.b16 %v1387
      %v1424 = vunpack.c.l.b16 %v1388
      %v1425 = vunpack.c.l.b16 %v1389
      %v1426 = vunpack.c.l.b16 %v1390
      %v1427 = vunpack.c.l.b16 %v1391
      %v1428 = vunpack.c.l.b16 %v1392
      %v1429 = vunpack.c.l.b16 %v1393
      %v1430 = vunpack.c.l.b16 %v1394
      %v1431 = vunpack.c.l.b16 %v1395
      %v1432 = vunpack.c.l.b16 %v1396
      %v1433 = vunpack.c.l.b16 %v1397
      %v1434 = vunpack.c.l.b16 %v1398
      %v1435 = vunpack.c.l.b16 %v1399
      %v1436 = vunpack.c.l.b16 %v1400
      %v1437 = vunpack.c.l.b16 %v1401
      %v1438 = vunpack.c.l.b16 %v1402
      %v1439 = vpack.c.b16 %v1424, %v1423
      %v1440 = vpack.c.b16 %v1426, %v1425
      %v1441 = vpack.c.b16 %v1428, %v1427
      %v1442 = vpack.c.b16 %v1430, %v1429
      %v1443 = vpack.c.b16 %v1432, %v1431
      %v1444 = vpack.c.b16 %v1434, %v1433
      %v1445 = vpack.c.b16 %v1436, %v1435
      %v1446 = vpack.c.b16 %v1438, %v1437
      %1455 = vmatpush.bf16.msra.mxu0 %v1446
      %1456 = vmatpush.bf16.msra.mxu0 %v1445
      %1457 = vmatpush.bf16.msra.mxu0 %v1444
      %1458 = vmatpush.bf16.msra.mxu0 %v1443
      %1459 = vmatpush.bf16.msra.mxu0 %v1442
      %1460 = vmatpush.bf16.msra.mxu0 %v1441
      %1461 = vmatpush.bf16.msra.mxu0 %v1440
      %1462 = vmatpush.bf16.msra.mxu0 %v1439
      %1463 = vmatmul.bf16.gmra.mxu0 %v1383
      %v1464 = vpop.f32.mrf.mxu0
      %v1465 = vadd.f32 %v1405, %v1464
      %v1466 = vpop.f32.mrf.mxu0
      %v1467 = vadd.f32 %v1405, %v1466
      %1468 = vmatmul.bf16.gmra.mxu0 %v1384
      %v1469 = vpop.f32.mrf.mxu0
      %v1470 = vadd.f32 %v1405, %v1469
      %v1471 = vpop.f32.mrf.mxu0
      %v1472 = vadd.f32 %v1405, %v1471
      %1473 = vmatmul.bf16.gmra.mxu0 %v1385
      %v1474 = vpop.f32.mrf.mxu0
      %v1475 = vadd.f32 %v1405, %v1474
      %v1476 = vpop.f32.mrf.mxu0
      %v1477 = vadd.f32 %v1405, %v1476
      %1478 = vmatmul.bf16.gmra.mxu0 %v1386
      %v1479 = vpop.f32.mrf.mxu0
      %v1480 = vadd.f32 %v1405, %v1479
      %v1481 = vpop.f32.mrf.mxu0
      %v1482 = vadd.f32 %v1405, %v1481
      %1483 = vdwg.mxu0
      %v1484 = vpack.c.bf16 %v1465, %v1465
      %v1485 = vpack.c.bf16 %v1467, %v1467
      %v1486 = vpack.c.bf16 %v1470, %v1470
      %v1487 = vpack.c.bf16 %v1472, %v1472
      %v1488 = vpack.c.bf16 %v1475, %v1475
      %v1489 = vpack.c.bf16 %v1477, %v1477
      %v1490 = vpack.c.bf16 %v1480, %v1480
      %v1491 = vpack.c.bf16 %v1482, %v1482
      %1492 = vst [vmem:[%s335] sm:$0xf] %v1484
      %1493 = vst [vmem:[%s335 + $0x4] sm:$0xf] %v1485
      %1494 = vst [vmem:[%s335 + $0x8] sm:$0xf] %v1486
      %1495 = vst [vmem:[%s335 + $0xc] sm:$0xf] %v1487
      %1496 = vst [vmem:[%s335 + $0x10] sm:$0xf] %v1488
      %1497 = vst [vmem:[%s335 + $0x14] sm:$0xf] %v1489
      %1498 = vst [vmem:[%s335 + $0x18] sm:$0xf] %v1490
      %1499 = vst [vmem:[%s335 + $0x1c] sm:$0xf] %v1491
      %vm1500 = vcmp.ge.f32.partialorder %v1465, 0.0
      %vm1501 = vcmp.ge.f32.partialorder %v1467, 0.0
      %vm1502 = vcmp.ge.f32.partialorder %v1470, 0.0
      %vm1503 = vcmp.ge.f32.partialorder %v1472, 0.0
      %vm1504 = vcmp.ge.f32.partialorder %v1475, 0.0
      %vm1505 = vcmp.ge.f32.partialorder %v1477, 0.0
      %vm1506 = vcmp.ge.f32.partialorder %v1480, 0.0
      %vm1507 = vcmp.ge.f32.partialorder %v1482, 0.0
      %v1508 = vmul.f32 %v1465, 0.2
      %v1509 = vmul.f32 %v1467, 0.2
      %v1510 = vmul.f32 %v1470, 0.2
      %v1511 = vmul.f32 %v1472, 0.2
      %v1512 = vmul.f32 %v1475, 0.2
      %v1513 = vmul.f32 %v1477, 0.2
      %v1514 = vmul.f32 %v1480, 0.2
      %v1515 = vmul.f32 %v1482, 0.2
      %v1516 = vsel %vm1500, %v1465, %v1508
      %v1517 = vsel %vm1501, %v1467, %v1509
      %v1518 = vsel %vm1502, %v1470, %v1510
      %v1519 = vsel %vm1503, %v1472, %v1511
      %v1520 = vsel %vm1504, %v1475, %v1512
      %v1521 = vsel %vm1505, %v1477, %v1513
      %v1522 = vsel %vm1506, %v1480, %v1514
      %v1523 = vsel %vm1507, %v1482, %v1515
      %v1524 = vadd.f32 %v1516, %v1517
      %v1525 = vadd.f32 %v1524, %v1518
      %v1526 = vadd.f32 %v1525, %v1519
      %v1527 = vadd.f32 %v1526, %v1520
      %v1528 = vadd.f32 %v1527, %v1521
      %v1529 = vadd.f32 %v1528, %v1522
      %v1530 = vadd.f32 %v1529, %v1523
      %v1531 = vrot.slane %v1530, 4
      %v1532 = vadd.f32 %v1530, %v1531
      %v1533 = vrot.slane %v1532, 2
      %v1534 = vadd.f32 %v1532, %v1533
      %v1535 = vrot.slane %v1534, 1
      %v1536 = vadd.f32 %v1534, %v1535
      %1537 = vst [vmem:[%s339] sm:$0x1] %v1536
      %v1538 = vmul.f32 %v1516, %v1516
      %v1539 = vmul.f32 %v1517, %v1517
      %v1540 = vmul.f32 %v1518, %v1518
      %v1541 = vmul.f32 %v1519, %v1519
      %v1542 = vmul.f32 %v1520, %v1520
      %v1543 = vmul.f32 %v1521, %v1521
      %v1544 = vmul.f32 %v1522, %v1522
      %v1545 = vmul.f32 %v1523, %v1523
      %v1546 = vadd.f32 %v1538, %v1539
      %v1547 = vadd.f32 %v1546, %v1540
      %v1548 = vadd.f32 %v1547, %v1541
      %v1549 = vadd.f32 %v1548, %v1542
      %v1550 = vadd.f32 %v1549, %v1543
      %v1551 = vadd.f32 %v1550, %v1544
      %v1552 = vadd.f32 %v1551, %v1545
      %v1553 = vrot.slane %v1552, 4
      %v1554 = vadd.f32 %v1552, %v1553
      %v1555 = vrot.slane %v1554, 2
      %v1556 = vadd.f32 %v1554, %v1555
      %v1557 = vrot.slane %v1556, 1
      %v1558 = vadd.f32 %v1556, %v1557
      %1559 = vst [vmem:[%s342] sm:$0x1] %v1558
      %s1560 = smul.u32 8, %s19
      %p1561 = scmp.lt.s32.totalorder %s1560, 15
      %s1562 = scalar_select %p1561, %s1560, 15
      %s1563 = smul.addr %s1562, 4
      %s1564 = scalar_lea.vmem %s5, %s1563
      %p1565 = scmp.lt.s32.totalorder %s19, 1
      %s1566 = scalar_select %p1565, %s19, 1
      %s1567 = scalar_lea.vmem %s6, %s1566
      %p1568 = scmp.lt.s32.totalorder %s19, 1
      %s1569 = scalar_select %p1568, %s19, 1
      %s1570 = scalar_lea.vmem %s7, %s1569
      // Predicated region
      $region41: #{encoder_forward.6} parent=39 // pred_check
        %p1571 = pneg %p157
      $region42: #{encoder_forward.6} parent=39 // pred_check_branch
        %1573 = sbr.rel (%p1571) target = $region44
      $region43: #{encoder_forward.6} parent=39 // pred_region
        %s1574 = smul.u32 8, %s19
      $region44: #{encoder_forward.6} parent=39 // pred_fallthru
        _
      // Predicated region
      $region45: #{encoder_forward.6} parent=39 // pred_check
        %p1575 = pneg %p183
      $region46: #{encoder_forward.6} parent=39 // pred_check_branch
        %1577 = sbr.rel (%p1575) target = $region48
      $region47: #{encoder_forward.6} parent=39 // pred_region
        _
      $region48: #{encoder_forward.6} parent=39 // pred_fallthru
        _
      // Predicated region
      $region49: #{encoder_forward.6} parent=39 // pred_check
        %p1578 = pneg %p209
      $region50: #{encoder_forward.6} parent=39 // pred_check_branch
        %1580 = sbr.rel (%p1578) target = $region52
      $region51: #{encoder_forward.6} parent=39 // pred_region
        _
      $region52: #{encoder_forward.6} parent=39 // pred_fallthru
        _
    $region40: #{encoder_forward.6} parent=5 // pred_fallthru
      _
    %p1581 = scmp.le.s32.totalorder 2, %s14
    // Predicated region
    $region53: #{encoder_forward.6} parent=5 // pred_check
      %p1582 = pneg %p1581
    $region54: #{encoder_forward.6} parent=5 // pred_check_branch
      %1584 = sbr.rel (%p1582) target = $region56
    $region55: #{encoder_forward.6} parent=5 // pred_region
      %s1585 = ssub.s32 %s14, 2
      // Predicated region
      $region57: #{encoder_forward.6} parent=55 // pred_check
        %p1586 = pneg %p163
      $region58: #{encoder_forward.6} parent=55 // pred_check_branch
        %1588 = sbr.rel (%p1586) target = $region60
      $region59: #{encoder_forward.6} parent=55 // pred_region
        %s1589 = smul.u32 8, %s20
        %p1590 = scmp.lt.s32.totalorder %s1589, 15
        %s1591 = scalar_select %p1590, %s1589, 15
        %s1592 = smul.addr %s1591, 4
        %s1593 = scalar_lea.vmem %s5, %s1592
      $region60: #{encoder_forward.6} parent=55 // pred_fallthru
        _
      // Predicated region
      $region61: #{encoder_forward.6} parent=55 // pred_check
        %p1594 = pneg %p189
      $region62: #{encoder_forward.6} parent=55 // pred_check_branch
        %1596 = sbr.rel (%p1594) target = $region64
      $region63: #{encoder_forward.6} parent=55 // pred_region
        %p1597 = scmp.lt.s32.totalorder %s20, 1
        %s1598 = scalar_select %p1597, %s20, 1
        %s1599 = scalar_lea.vmem %s6, %s1598
      $region64: #{encoder_forward.6} parent=55 // pred_fallthru
        _
      // Predicated region
      $region65: #{encoder_forward.6} parent=55 // pred_check
        %p1600 = pneg %p215
      $region66: #{encoder_forward.6} parent=55 // pred_check_branch
        %1602 = sbr.rel (%p1600) target = $region68
      $region67: #{encoder_forward.6} parent=55 // pred_region
        %p1603 = scmp.lt.s32.totalorder %s20, 1
        %s1604 = scalar_select %p1603, %s20, 1
        %s1605 = scalar_lea.vmem %s7, %s1604
      $region68: #{encoder_forward.6} parent=55 // pred_fallthru
        _
    $region56: #{encoder_forward.6} parent=5 // pred_fallthru
      _
  $region6: #{encoder_forward.6} parent=0 // loop_footer
    %s18 = sadd.s32 1, %s14
  $region7: #{encoder_forward.6} parent=0 // loop_footer_branch
    %13 = sbr.rel target = $region3
  $region8: #{encoder_forward.6} parent=0 // loop_exit
    _

</llo_original>
